<compile_context>
chip_gen: v5e
topology: v5e:2x2
jax: 0.10.0
libtpu: 0.0.40
codegen_flags: <defaults>
</compile_context>

<pallas_src>
import numpy as np

import jax
import jax.numpy as jnp
from jax.experimental import pallas as pl
from jax.experimental.pallas import tpu as pltpu

# ------------------------- hyper-parameters (small, synthetic) -------------------------
B = 2                      # batch
# CMR (ResNet50-3D-MLP stand-in)
T, CMR_C, CMR_H, CMR_W = 4, 1, 16, 16
CMR_P = 4                  # spatial patch
P_CMR = (CMR_H // CMR_P) * (CMR_W // CMR_P)     # 16 patches / frame
K_CMR = CMR_C * CMR_P * CMR_P                   # 16
CMR_E = 32                 # per-frame embedding
T_HID = 64                 # temporal-MLP hidden
LATENT = 32                # cmr_encoder.latent_dim
# ECG (MAE-ViT stand-in)
ECG_C, ECG_H, ECG_W = 2, 8, 32
ECG_PH, ECG_PW = 4, 8
ECG_P = (ECG_H // ECG_PH) * (ECG_W // ECG_PW)   # 8 tokens
K_ECG = ECG_C * ECG_PH * ECG_PW                 # 64
ECG_E = 32
HEADS = 4
HEAD_D = ECG_E // HEADS
DEPTH = 2
ECG_FEAT = 1000            # logical ecg_encoder output dim (folded into SimCLR w1 at init)
# projection heads
HID_CMR = 64
HID_ECG = 64
PROJ_DIM = 32

LN_EPS = 1e-6
BN_EPS = 1e-5
MXU_DTYPE = jnp.bfloat16   # bf16 on the MXU, f32 accumulation

_L_ROWS = 7                # ECG bias-slab rows per transformer layer
_G_BASE = DEPTH * _L_ROWS  # start of global rows in the ECG slab


# ===================================== small helpers =====================================

def _mm(a, b):
    """MXU matmul, bf16 inputs, f32 accumulation."""
    return jnp.dot(a.astype(MXU_DTYPE), b.astype(MXU_DTYPE),
                   preferred_element_type=jnp.float32)


def _mm_t(a, b):
    """a @ b.T on the MXU without an explicit transpose."""
    return jax.lax.dot_general(a.astype(MXU_DTYPE), b.astype(MXU_DTYPE),
                               dimension_numbers=(((1,), (1,)), ((), ())),
                               preferred_element_type=jnp.float32)


def _ln(z, g, b):
    mu = jnp.mean(z, axis=-1, keepdims=True)
    var = jnp.mean((z - mu) ** 2, axis=-1, keepdims=True)
    return (z - mu) * jax.lax.rsqrt(var + LN_EPS) * g + b


def _full_spec(shape):
    nd = len(shape)
    return pl.BlockSpec(tuple(shape), lambda i, _nd=nd: (0,) * _nd)


def _branch_spec(shape):
    # leading axis = {diastole, systole}; grid step 2 (ECG) re-uses branch 1's (unused) block
    nd = len(shape)
    return pl.BlockSpec((1,) + tuple(shape[1:]),
                        lambda i, _nd=nd: (jnp.minimum(i, 1),) + (0,) * (_nd - 1))


# ===================================== fused kernel =====================================
# grid=(3,) over {diastole, systole, ecg}; branch bodies gated with pl.when.

def _fused_kernel(
        # CMR branch-indexed inputs (leading axis = branch)
        cmr_patches_ref, cmr_wf_ref, cmr_hw1_ref, cmr_hw2_ref, cmr_slab_ref,
        # CMR shared (temporal MLP + pooling)
        cmr_pool_ref, cmr_tw1_ref, cmr_tw2_ref,
        # ECG inputs
        ecg_patches_ref, ecg_pe_w_ref, ecg_pos_ref, ecg_pool_ref, ecg_amask_ref,
        ecg_wqkv_ref, ecg_bqkv_ref, ecg_wo_ref, ecg_fc1_ref, ecg_fc2_ref,
        ecg_pw1_ref, ecg_pw2_ref, ecg_slab_ref,
        # output
        o_ref):
    branch = pl.program_id(0)

    # ---------------- CMR: diastole (i=0) / systole (i=1) ----------------
    @pl.when(branch < 2)
    def _cmr_branch():
        slab = cmr_slab_ref[0]                                     # (6, 128) f32
        bf = slab[0:1, 0:CMR_E]
        tb1 = slab[1:2, 0:T_HID]
        tb2 = slab[2:3, 0:LATENT]
        hg = slab[3:4, 0:HID_CMR]
        hb = slab[4:5, 0:HID_CMR]
        hb2 = slab[5:6, 0:PROJ_DIM]

        # per-frame patch embed: one (B*T*P, K)x(K, E) matmul
        y = _mm(cmr_patches_ref[0], cmr_wf_ref[0]) + bf            # (128, 32)
        # spatial mean pool of ALL frames in ONE (8,128)x(128,32) matmul (rows ordered t*B+b)
        frames = _mm(cmr_pool_ref[...], y)                         # (T*B, CMR_E)
        # temporal MLP layer 1: back-to-back MXU accumulation over frames
        acc = _mm(frames[0:B], cmr_tw1_ref[0:CMR_E, :])
        for t in range(1, T):
            acc = acc + _mm(frames[t * B:(t + 1) * B],
                            cmr_tw1_ref[t * CMR_E:(t + 1) * CMR_E, :])
        h1 = jnp.maximum(acc + tb1, 0.0)                           # (B, T_HID)
        z = _mm(h1, cmr_tw2_ref[...]) + tb2                        # (B, LATENT)

        # SimCLR head: Linear(no bias) -> BatchNorm1d (train-mode batch stats) -> ReLU -> Linear
        hp = _mm(z, cmr_hw1_ref[0])                                # (B, HID_CMR)
        mu = jnp.mean(hp, axis=0, keepdims=True)
        var = jnp.mean((hp - mu) ** 2, axis=0, keepdims=True)      # biased var (PyTorch BN)
        hp = jnp.maximum((hp - mu) * jax.lax.rsqrt(var + BN_EPS) * hg + hb, 0.0)
        o_ref[0] = _mm(hp, cmr_hw2_ref[0]) + hb2                   # (B, PROJ_DIM)

    # ---------------- ECG ViT (i=2) ----------------
    @pl.when(branch == 2)
    def _ecg_branch():
        BP = B * ECG_P
        scale = HEAD_D ** -0.5
        slab = ecg_slab_ref[...]                                   # (DEPTH*7+7, 128) f32

        tok = (_mm(ecg_patches_ref[...], ecg_pe_w_ref[...])
               + slab[_G_BASE + 0:_G_BASE + 1, 0:ECG_E]
               + ecg_pos_ref[...])                                 # (BP, E) f32
        amask = ecg_amask_ref[...]                                 # (HEADS*BP, HEADS*BP)

        for l in range(DEPTH):                                     # unrolled; static indexing
            base = l * _L_ROWS
            g1 = slab[base + 0:base + 1, 0:ECG_E]
            b1 = slab[base + 1:base + 2, 0:ECG_E]
            bo = slab[base + 2:base + 3, 0:ECG_E]
            g2 = slab[base + 3:base + 4, 0:ECG_E]
            b2 = slab[base + 4:base + 5, 0:ECG_E]
            fb1 = slab[base + 5:base + 6, 0:4 * ECG_E]
            fb2 = slab[base + 6:base + 7, 0:ECG_E]

            # ---- attention (_attention_forward_wrapper math, all heads fused) ----
            h_bf = _ln(tok, g1, b1).astype(MXU_DTYPE)              # cast ONCE per layer
            # stacked-head qkv: per-head (16,32)x(32,24) matmuls, sublane-concat -> (HEADS*BP, 3d)
            blocks = []
            for hh in range(HEADS):
                r0 = (l * HEADS + hh) * ECG_E
                blocks.append(_mm(h_bf, ecg_wqkv_ref[r0:r0 + ECG_E, :]))
            qkv = (jnp.concatenate(blocks, axis=0)
                   + ecg_bqkv_ref[l * HEADS * BP:(l + 1) * HEADS * BP, :])
            q = qkv[:, 0:HEAD_D]
            k = qkv[:, HEAD_D:2 * HEAD_D]
            v = qkv[:, 2 * HEAD_D:3 * HEAD_D]
            # ONE score matmul + ONE softmax for all heads & batches (block-diag additive mask)
            s = _mm_t(q, k) * scale + amask                        # (64, 64) f32
            a = jax.nn.softmax(s, axis=-1)
            av = _mm(a, v)                                         # (HEADS*BP, HEAD_D)
            # per-head output projection: back-to-back MXU accumulation, no interleaved VPU work
            wo0 = l * HEADS * HEAD_D
            attn_out = _mm(av[0:BP], ecg_wo_ref[wo0:wo0 + HEAD_D, :])
            for hh in range(1, HEADS):
                attn_out = attn_out + _mm(
                    av[hh * BP:(hh + 1) * BP],
                    ecg_wo_ref[wo0 + hh * HEAD_D:wo0 + (hh + 1) * HEAD_D, :])
            tok = tok + attn_out + bo

            # ---- MLP ----
            h2 = _ln(tok, g2, b2)
            m = _mm(h2, ecg_fc1_ref[l * ECG_E:(l + 1) * ECG_E, :]) + fb1
            m = jax.nn.gelu(m, approximate=True)   # TODO(synk): timm nn.GELU is erf-exact
            tok = tok + _mm(m, ecg_fc2_ref[l * 4 * ECG_E:(l + 1) * 4 * ECG_E, :]) + fb2

        # token mean pool -> fc_norm LN -> (1000-dim encoder head folded into SimCLR w1) ->
        # BatchNorm1d (batch stats) -> ReLU -> Linear
        pooled = _mm(ecg_pool_ref[...], tok)                       # (B, E)
        pooled = _ln(pooled,
                     slab[_G_BASE + 1:_G_BASE + 2, 0:ECG_E],
                     slab[_G_BASE + 2:_G_BASE + 3, 0:ECG_E])
        hp = _mm(pooled, ecg_pw1_ref[...]) + slab[_G_BASE + 3:_G_BASE + 4, 0:HID_ECG]
        mu = jnp.mean(hp, axis=0, keepdims=True)
        var = jnp.mean((hp - mu) ** 2, axis=0, keepdims=True)
        hp = ((hp - mu) * jax.lax.rsqrt(var + BN_EPS)
              * slab[_G_BASE + 4:_G_BASE + 5, 0:HID_ECG]
              + slab[_G_BASE + 5:_G_BASE + 6, 0:HID_ECG])
        hp = jnp.maximum(hp, 0.0)
        o_ref[0] = _mm(hp, ecg_pw2_ref[...]) + slab[_G_BASE + 6:_G_BASE + 7, 0:PROJ_DIM]


def _fused_forward(cmr_patches, ecg_patches, p):
    branch_args = (cmr_patches, p["cmr_wf"], p["cmr_hw1"], p["cmr_hw2"], p["cmr_slab"])
    shared_args = (p["cmr_pool"], p["cmr_tw1"], p["cmr_tw2"],
                   ecg_patches, p["ecg_pe_w"], p["ecg_pos"], p["ecg_pool"], p["ecg_amask"],
                   p["ecg_wqkv"], p["ecg_bqkv"], p["ecg_wo"], p["ecg_fc1"], p["ecg_fc2"],
                   p["ecg_pw1"], p["ecg_pw2"], p["ecg_slab"])
    args = branch_args + shared_args
    in_specs = ([_branch_spec(a.shape) for a in branch_args]
                + [_full_spec(a.shape) for a in shared_args])
    return pl.pallas_call(
        _fused_kernel,
        out_shape=jax.ShapeDtypeStruct((3, B, PROJ_DIM), jnp.float32),
        grid=(3,),
        in_specs=in_specs,
        out_specs=pl.BlockSpec((1, B, PROJ_DIM), lambda i: (i, 0, 0)),
        # Branches are independent -> "parallel" lets megacore/multi-TC chips shard them.
        # TODO(synk): on v7x consider pltpu.CORE_PARALLEL / pl.core_map for explicit 2-TC split,
        #             and per-layer weight streaming (pl.Buffered / pltpu.emit_pipeline) plus an
        #             explicit vmem_limit_bytes once real ResNet50-3D-MLP / MAE-ViT weights
        #             replace these stand-ins (64 MiB VMEM on v7x).
        compiler_params=pltpu.CompilerParams(dimension_semantics=("parallel",)),
    )(*args)


# ===================== patchify glue (wrapper-level layout only) =====================

def _cmr_patchify(x):
    # x: [B, T, C, H, W] -> (B*T*P, C*p*p), row order (b*T + t)*P + patch
    Bb, Tt, C, H, W_ = x.shape
    x = x.reshape(Bb * Tt, C, H // CMR_P, CMR_P, W_ // CMR_P, CMR_P)
    x = x.transpose(0, 2, 4, 1, 3, 5)
    return x.reshape(Bb * Tt * P_CMR, K_CMR)


def _ecg_patchify(x):
    # x: [B, C, H, W] -> (B*P, C*ph*pw), row order b*P + token
    Bb, C, H, W_ = x.shape
    x = x.reshape(Bb, C, H // ECG_PH, ECG_PH, W_ // ECG_PW, ECG_PW)
    x = x.transpose(0, 2, 4, 1, 3, 5)
    return x.reshape(Bb * ECG_P, K_ECG)


# ===================================== parameter init =====================================
# Everything the kernel consumes is pre-packed here (no per-call stacking / tiling / padding).

def init_params(key):
    ks = iter(jax.random.split(key, 32))

    def W(*shape):
        return (0.02 * jax.random.normal(next(ks), shape)).astype(jnp.float32)

    def Z(*shape):
        return jnp.zeros(shape, jnp.float32)

    def O(*shape):
        return jnp.ones(shape, jnp.float32)

    def row(v):   # pad a (1, n) vector to a 128-lane slab row
        return jnp.pad(v, ((0, 0), (0, 128 - v.shape[-1])))

    def bf16(x):
        return x.astype(jnp.bfloat16)

    # ---------------- CMR (ResNet50-3D-MLP stand-in) ----------------
    wf = jnp.stack([W(K_CMR, CMR_E), W(K_CMR, CMR_E)], 0)       # per-branch frame backbone
    bfr = jnp.stack([Z(1, CMR_E), Z(1, CMR_E)], 0)
    tw1, tb1 = W(T * CMR_E, T_HID), Z(1, T_HID)                 # SHARED temporal MLP
    tw2, tb2 = W(T_HID, LATENT), Z(1, LATENT)
    hw1 = jnp.stack([W(LATENT, HID_CMR), W(LATENT, HID_CMR)], 0)   # per-branch SimCLR heads
    hg = jnp.stack([O(1, HID_CMR), O(1, HID_CMR)], 0)
    hb = jnp.stack([Z(1, HID_CMR), Z(1, HID_CMR)], 0)
    hw2 = jnp.stack([W(HID_CMR, PROJ_DIM), W(HID_CMR, PROJ_DIM)], 0)
    hb2 = jnp.stack([Z(1, PROJ_DIM), Z(1, PROJ_DIM)], 0)
    cmr_slab = jnp.stack([
        jnp.concatenate([row(bfr[i]), row(tb1), row(tb2),
                         row(hg[i]), row(hb[i]), row(hb2[i])], axis=0)
        for i in range(2)], 0)                                   # (2, 6, 128)

    # spatial mean-pool folded into ONE matmul: rows t*B+b, columns (b*T+t)*P + p
    pool_cmr = np.zeros((T * B, B * T * P_CMR), np.float32)
    for t in range(T):
        for b in range(B):
            f = b * T + t
            pool_cmr[t * B + b, f * P_CMR:(f + 1) * P_CMR] = 1.0 / P_CMR

    # ---------------- ECG (MAE-ViT stand-in) ----------------
    pe_w, pe_b = W(K_ECG, ECG_E), Z(1, ECG_E)
    pos = W(ECG_P, ECG_E)
    wq = W(DEPTH, HEADS, ECG_E, HEAD_D)
    wk = W(DEPTH, HEADS, ECG_E, HEAD_D)
    wv = W(DEPTH, HEADS, ECG_E, HEAD_D)
    bq, bk, bv = Z(DEPTH, HEADS, HEAD_D), Z(DEPTH, HEADS, HEAD_D), Z(DEPTH, HEADS, HEAD_D)
    wo = W(DEPTH, HEADS, HEAD_D, ECG_E)
    bo = Z(DEPTH, 1, ECG_E)
    ln1_g, ln1_b = O(DEPTH, 1, ECG_E), Z(DEPTH, 1, ECG_E)
    ln2_g, ln2_b = O(DEPTH, 1, ECG_E), Z(DEPTH, 1, ECG_E)
    fc1_w, fc1_b = W(DEPTH, ECG_E, 4 * ECG_E), Z(DEPTH, 1, 4 * ECG_E)
    fc2_w, fc2_b = W(DEPTH, 4 * ECG_E, ECG_E), Z(DEPTH, 1, ECG_E)
    fng, fnb = O(1, ECG_E), Z(1, ECG_E)
    head_w, head_b = W(ECG_E, ECG_FEAT), Z(1, ECG_FEAT)          # 1000-dim encoder head
    pw1 = W(ECG_FEAT, HID_ECG)                                   # SimCLR first Linear (no bias)
    pg, pb = O(1, HID_ECG), Z(1, HID_ECG)
    pw2, pb2 = W(HID_ECG, PROJ_DIM), Z(1, PROJ_DIM)

    # fold the 1000-dim encoder head into the SimCLR first layer (algebraically identical)
    pw1_eff = head_w @ pw1                                       # (ECG_E, HID_ECG)
    pb1_eff = head_b @ pw1                                       # (1, HID_ECG)

    # pack per-layer / per-head weights into lane-dense slabs, statically sliced in-kernel
    wqkv = jnp.concatenate([wq, wk, wv], axis=-1).reshape(DEPTH * HEADS * ECG_E, 3 * HEAD_D)
    bqkv = jnp.broadcast_to(
        jnp.concatenate([bq, bk, bv], axis=-1)[:, :, None, :],
        (DEPTH, HEADS, B * ECG_P, 3 * HEAD_D)).reshape(DEPTH * HEADS * B * ECG_P, 3 * HEAD_D)
    wo_p = wo.reshape(DEPTH * HEADS * HEAD_D, ECG_E)
    fc1_p = fc1_w.reshape(DEPTH * ECG_E, 4 * ECG_E)
    fc2_p = fc2_w.reshape(DEPTH * 4 * ECG_E, ECG_E)

    layer_rows = []
    for l in range(DEPTH):
        layer_rows += [row(ln1_g[l]), row(ln1_b[l]), row(bo[l]),
                       row(ln2_g[l]), row(ln2_b[l]), row(fc1_b[l]), row(fc2_b[l])]
    ecg_slab = jnp.concatenate(
        layer_rows + [row(pe_b), row(fng), row(fnb), row(pb1_eff), row(pg), row(pb), row(pb2)],
        axis=0)                                                  # (DEPTH*7 + 7, 128)

    pool_ecg = np.zeros((B, B * ECG_P), np.float32)
    for b in range(B):
        pool_ecg[b, b * ECG_P:(b + 1) * ECG_P] = 1.0 / ECG_P

    # combined head x batch block-diagonal additive mask for the fused-head softmax
    amask = np.full((HEADS * B * ECG_P, HEADS * B * ECG_P), -1e30, np.float32)
    for h in range(HEADS):
        for b in range(B):
            lo = h * B * ECG_P + b * ECG_P
            amask[lo:lo + ECG_P, lo:lo + ECG_P] = 0.0

    return dict(
        cmr_wf=bf16(wf), cmr_hw1=bf16(hw1), cmr_hw2=bf16(hw2), cmr_slab=cmr_slab,
        cmr_pool=bf16(jnp.asarray(pool_cmr)), cmr_tw1=bf16(tw1), cmr_tw2=bf16(tw2),
        ecg_pe_w=bf16(pe_w), ecg_pos=jnp.tile(pos, (B, 1)),
        ecg_pool=bf16(jnp.asarray(pool_ecg)), ecg_amask=jnp.asarray(amask),
        ecg_wqkv=bf16(wqkv), ecg_bqkv=bqkv, ecg_wo=bf16(wo_p),
        ecg_fc1=bf16(fc1_p), ecg_fc2=bf16(fc2_p),
        ecg_pw1=bf16(pw1_eff), ecg_pw2=bf16(pw2), ecg_slab=ecg_slab,
    )


# ===================================== forward =====================================

def forward(params, x_diast, x_ecg, x_syst):
    cmr_patches = jnp.stack([_cmr_patchify(x_diast), _cmr_patchify(x_syst)], axis=0)
    ecg_patches = _ecg_patchify(x_ecg)
    out = _fused_forward(cmr_patches, ecg_patches, params)
    return out[0], out[1], out[2]   # diastole_proj, systole_proj, ecg_proj


if __name__ == "__main__":
    key = jax.random.PRNGKey(0)
    kp, k1, k2, k3 = jax.random.split(key, 4)
    params = init_params(kp)

    x_diast = jax.random.normal(k1, (B, T, CMR_C, CMR_H, CMR_W), jnp.float32)
    x_syst = jax.random.normal(k2, (B, T, CMR_C, CMR_H, CMR_W), jnp.float32)
    x_ecg = jax.random.normal(k3, (B, ECG_C, ECG_H, ECG_W), jnp.float32)

    fwd = jax.jit(forward)
    d_proj, s_proj, e_proj = fwd(params, x_diast, x_ecg, x_syst)
    jax.block_until_ready((d_proj, s_proj, e_proj))

    assert d_proj.shape == (B, PROJ_DIM)
    assert s_proj.shape == (B, PROJ_DIM)
    assert e_proj.shape == (B, PROJ_DIM)
    assert bool(jnp.all(jnp.isfinite(d_proj)))
    assert bool(jnp.all(jnp.isfinite(s_proj)))
    assert bool(jnp.all(jnp.isfinite(e_proj)))
    print("KERNEL_OK")
</pallas_src>

<mosaic_0001>
module attributes {stable_mosaic.version = 11 : i64} {
  func.func @_fused_kernel(%arg0: i32, %arg1: memref<1x128x16xf32, #tpu.memory_space<vmem>>, %arg2: memref<1x16x32xbf16, #tpu.memory_space<vmem>>, %arg3: memref<1x32x64xbf16, #tpu.memory_space<vmem>>, %arg4: memref<1x64x32xbf16, #tpu.memory_space<vmem>>, %arg5: memref<1x6x128xf32, #tpu.memory_space<vmem>>, %arg6: memref<8x128xbf16, #tpu.memory_space<vmem>>, %arg7: memref<128x64xbf16, #tpu.memory_space<vmem>>, %arg8: memref<64x32xbf16, #tpu.memory_space<vmem>>, %arg9: memref<16x64xf32, #tpu.memory_space<vmem>>, %arg10: memref<64x32xbf16, #tpu.memory_space<vmem>>, %arg11: memref<16x32xf32, #tpu.memory_space<vmem>>, %arg12: memref<2x16xbf16, #tpu.memory_space<vmem>>, %arg13: memref<64x64xf32, #tpu.memory_space<vmem>>, %arg14: memref<256x24xbf16, #tpu.memory_space<vmem>>, %arg15: memref<128x24xf32, #tpu.memory_space<vmem>>, %arg16: memref<64x32xbf16, #tpu.memory_space<vmem>>, %arg17: memref<64x128xbf16, #tpu.memory_space<vmem>>, %arg18: memref<256x32xbf16, #tpu.memory_space<vmem>>, %arg19: memref<32x64xbf16, #tpu.memory_space<vmem>>, %arg20: memref<64x32xbf16, #tpu.memory_space<vmem>>, %arg21: memref<21x128xf32, #tpu.memory_space<vmem>>, %arg22: memref<1x2x32xf32, #tpu.memory_space<vmem>>) attributes {dimension_semantics = [#tpu.dimension_semantics<parallel>], iteration_bounds = array<i64: 3>, scalar_prefetch = 0 : i64, scratch_operands = 0 : i64, tpu.core_type = #tpu.core_type<tc>, window_params = [{transform_indices = @transform_0, window_bounds = array<i64: 1, 128, 16>}, {transform_indices = @transform_1, window_bounds = array<i64: 1, 16, 32>}, {transform_indices = @transform_2, window_bounds = array<i64: 1, 32, 64>}, {transform_indices = @transform_3, window_bounds = array<i64: 1, 64, 32>}, {transform_indices = @transform_4, window_bounds = array<i64: 1, 6, 128>}, {pipeline_mode = #tpu.pipeline_mode<synchronous>, transform_indices = @transform_5, window_bounds = array<i64: 8, 128>}, {pipeline_mode = #tpu.pipeline_mode<synchronous>, transform_indices = @transform_6, window_bounds = array<i64: 128, 64>}, {pipeline_mode = #tpu.pipeline_mode<synchronous>, transform_indices = @transform_7, window_bounds = array<i64: 64, 32>}, {pipeline_mode = #tpu.pipeline_mode<synchronous>, transform_indices = @transform_8, window_bounds = array<i64: 16, 64>}, {pipeline_mode = #tpu.pipeline_mode<synchronous>, transform_indices = @transform_9, window_bounds = array<i64: 64, 32>}, {pipeline_mode = #tpu.pipeline_mode<synchronous>, transform_indices = @transform_10, window_bounds = array<i64: 16, 32>}, {pipeline_mode = #tpu.pipeline_mode<synchronous>, transform_indices = @transform_11, window_bounds = array<i64: 2, 16>}, {pipeline_mode = #tpu.pipeline_mode<synchronous>, transform_indices = @transform_12, window_bounds = array<i64: 64, 64>}, {pipeline_mode = #tpu.pipeline_mode<synchronous>, transform_indices = @transform_13, window_bounds = array<i64: 256, 24>}, {pipeline_mode = #tpu.pipeline_mode<synchronous>, transform_indices = @transform_14, window_bounds = array<i64: 128, 24>}, {pipeline_mode = #tpu.pipeline_mode<synchronous>, transform_indices = @transform_15, window_bounds = array<i64: 64, 32>}, {pipeline_mode = #tpu.pipeline_mode<synchronous>, transform_indices = @transform_16, window_bounds = array<i64: 64, 128>}, {pipeline_mode = #tpu.pipeline_mode<synchronous>, transform_indices = @transform_17, window_bounds = array<i64: 256, 32>}, {pipeline_mode = #tpu.pipeline_mode<synchronous>, transform_indices = @transform_18, window_bounds = array<i64: 32, 64>}, {pipeline_mode = #tpu.pipeline_mode<synchronous>, transform_indices = @transform_19, window_bounds = array<i64: 64, 32>}, {pipeline_mode = #tpu.pipeline_mode<synchronous>, transform_indices = @transform_20, window_bounds = array<i64: 21, 128>}, {transform_indices = @transform_21, window_bounds = array<i64: 1, 2, 32>}]} {
    %c2_i32 = arith.constant 2 : i32
    %0 = arith.cmpi slt, %arg0, %c2_i32 : i32
    %1 = arith.extui %0 : i1 to i32
    %c0_i32 = arith.constant 0 : i32
    %2 = arith.cmpi ne, %1, %c0_i32 : i32
    scf.if %2 {
      %c0 = arith.constant 0 : index
      %c0_2 = arith.constant 0 : index
      %c0_3 = arith.constant 0 : index
      %6 = vector.load %arg5[%c0, %c0_2, %c0_3] : memref<1x6x128xf32, #tpu.memory_space<vmem>>, vector<1x6x128xf32>
      %7 = vector.shape_cast %6 : vector<1x6x128xf32> to vector<6x128xf32>
      %8 = vector.extract_strided_slice %7 {offsets = [0, 0], sizes = [1, 32], strides = [1, 1]} : vector<6x128xf32> to vector<1x32xf32>
      %9 = vector.extract_strided_slice %7 {offsets = [1, 0], sizes = [1, 64], strides = [1, 1]} : vector<6x128xf32> to vector<1x64xf32>
      %10 = vector.extract_strided_slice %7 {offsets = [2, 0], sizes = [1, 32], strides = [1, 1]} : vector<6x128xf32> to vector<1x32xf32>
      %11 = vector.extract_strided_slice %7 {offsets = [3, 0], sizes = [1, 64], strides = [1, 1]} : vector<6x128xf32> to vector<1x64xf32>
      %12 = vector.extract_strided_slice %7 {offsets = [4, 0], sizes = [1, 64], strides = [1, 1]} : vector<6x128xf32> to vector<1x64xf32>
      %13 = vector.extract_strided_slice %7 {offsets = [5, 0], sizes = [1, 32], strides = [1, 1]} : vector<6x128xf32> to vector<1x32xf32>
      %c0_4 = arith.constant 0 : index
      %c0_5 = arith.constant 0 : index
      %c0_6 = arith.constant 0 : index
      %14 = vector.load %arg1[%c0_4, %c0_5, %c0_6] : memref<1x128x16xf32, #tpu.memory_space<vmem>>, vector<1x128x16xf32>
      %15 = vector.shape_cast %14 : vector<1x128x16xf32> to vector<128x16xf32>
      %c0_7 = arith.constant 0 : index
      %c0_8 = arith.constant 0 : index
      %c0_9 = arith.constant 0 : index
      %16 = vector.load %arg2[%c0_7, %c0_8, %c0_9] : memref<1x16x32xbf16, #tpu.memory_space<vmem>>, vector<1x16x32xbf16>
      %17 = vector.shape_cast %16 : vector<1x16x32xbf16> to vector<16x32xbf16>
      %18 = arith.truncf %15 : vector<128x16xf32> to vector<128x16xbf16>
      %cst = arith.constant dense<0.000000e+00> : vector<128x32xf32>
      %19 = tpu.matmul %18, %17, %cst {dimension_numbers = #tpu.dot_dimension_numbers<[1], [0], [0], [1], [0, 0, 1, 1], [], []>} : vector<128x16xbf16>, vector<16x32xbf16>, vector<128x32xf32> -> vector<128x32xf32>
      %20 = vector.broadcast %8 : vector<1x32xf32> to vector<128x32xf32>
      %21 = arith.addf %19, %20 : vector<128x32xf32>
      %c0_10 = arith.constant 0 : index
      %c0_11 = arith.constant 0 : index
      %22 = vector.load %arg6[%c0_10, %c0_11] : memref<8x128xbf16, #tpu.memory_space<vmem>>, vector<8x128xbf16>
      %23 = arith.truncf %21 : vector<128x32xf32> to vector<128x32xbf16>
      %cst_12 = arith.constant dense<0.000000e+00> : vector<8x32xf32>
      %24 = tpu.matmul %22, %23, %cst_12 {dimension_numbers = #tpu.dot_dimension_numbers<[1], [0], [0], [1], [0, 0, 1, 1], [], []>} : vector<8x128xbf16>, vector<128x32xbf16>, vector<8x32xf32> -> vector<8x32xf32>
      %25 = vector.extract_strided_slice %24 {offsets = [0, 0], sizes = [2, 32], strides = [1, 1]} : vector<8x32xf32> to vector<2x32xf32>
      %c0_13 = arith.constant 0 : index
      %c0_14 = arith.constant 0 : index
      %26 = vector.load %arg7[%c0_13, %c0_14] : memref<128x64xbf16, #tpu.memory_space<vmem>>, vector<32x64xbf16>
      %27 = arith.truncf %25 : vector<2x32xf32> to vector<2x32xbf16>
      %cst_15 = arith.constant dense<0.000000e+00> : vector<2x64xf32>
      %28 = tpu.matmul %27, %26, %cst_15 {dimension_numbers = #tpu.dot_dimension_numbers<[1], [0], [0], [1], [0, 0, 1, 1], [], []>} : vector<2x32xbf16>, vector<32x64xbf16>, vector<2x64xf32> -> vector<2x64xf32>
      %29 = vector.extract_strided_slice %24 {offsets = [2, 0], sizes = [2, 32], strides = [1, 1]} : vector<8x32xf32> to vector<2x32xf32>
      %c32 = arith.constant 32 : index
      %c0_16 = arith.constant 0 : index
      %30 = vector.load %arg7[%c32, %c0_16] : memref<128x64xbf16, #tpu.memory_space<vmem>>, vector<32x64xbf16>
      %31 = arith.truncf %29 : vector<2x32xf32> to vector<2x32xbf16>
      %cst_17 = arith.constant dense<0.000000e+00> : vector<2x64xf32>
      %32 = tpu.matmul %31, %30, %cst_17 {dimension_numbers = #tpu.dot_dimension_numbers<[1], [0], [0], [1], [0, 0, 1, 1], [], []>} : vector<2x32xbf16>, vector<32x64xbf16>, vector<2x64xf32> -> vector<2x64xf32>
      %33 = arith.addf %28, %32 : vector<2x64xf32>
      %34 = vector.extract_strided_slice %24 {offsets = [4, 0], sizes = [2, 32], strides = [1, 1]} : vector<8x32xf32> to vector<2x32xf32>
      %c64 = arith.constant 64 : index
      %c0_18 = arith.constant 0 : index
      %35 = vector.load %arg7[%c64, %c0_18] : memref<128x64xbf16, #tpu.memory_space<vmem>>, vector<32x64xbf16>
      %36 = arith.truncf %34 : vector<2x32xf32> to vector<2x32xbf16>
      %cst_19 = arith.constant dense<0.000000e+00> : vector<2x64xf32>
      %37 = tpu.matmul %36, %35, %cst_19 {dimension_numbers = #tpu.dot_dimension_numbers<[1], [0], [0], [1], [0, 0, 1, 1], [], []>} : vector<2x32xbf16>, vector<32x64xbf16>, vector<2x64xf32> -> vector<2x64xf32>
      %38 = arith.addf %33, %37 : vector<2x64xf32>
      %39 = vector.extract_strided_slice %24 {offsets = [6, 0], sizes = [2, 32], strides = [1, 1]} : vector<8x32xf32> to vector<2x32xf32>
      %c96 = arith.constant 96 : index
      %c0_20 = arith.constant 0 : index
      %40 = vector.load %arg7[%c96, %c0_20] : memref<128x64xbf16, #tpu.memory_space<vmem>>, vector<32x64xbf16>
      %41 = arith.truncf %39 : vector<2x32xf32> to vector<2x32xbf16>
      %cst_21 = arith.constant dense<0.000000e+00> : vector<2x64xf32>
      %42 = tpu.matmul %41, %40, %cst_21 {dimension_numbers = #tpu.dot_dimension_numbers<[1], [0], [0], [1], [0, 0, 1, 1], [], []>} : vector<2x32xbf16>, vector<32x64xbf16>, vector<2x64xf32> -> vector<2x64xf32>
      %43 = arith.addf %38, %42 : vector<2x64xf32>
      %44 = vector.broadcast %9 : vector<1x64xf32> to vector<2x64xf32>
      %45 = arith.addf %43, %44 : vector<2x64xf32>
      %cst_22 = arith.constant 0.000000e+00 : f32
      %46 = vector.broadcast %cst_22 : f32 to vector<2x64xf32>
      %47 = arith.maximumf %45, %46 : vector<2x64xf32>
      %c0_23 = arith.constant 0 : index
      %c0_24 = arith.constant 0 : index
      %48 = vector.load %arg8[%c0_23, %c0_24] : memref<64x32xbf16, #tpu.memory_space<vmem>>, vector<64x32xbf16>
      %49 = arith.truncf %47 : vector<2x64xf32> to vector<2x64xbf16>
      %cst_25 = arith.constant dense<0.000000e+00> : vector<2x32xf32>
      %50 = tpu.matmul %49, %48, %cst_25 {dimension_numbers = #tpu.dot_dimension_numbers<[1], [0], [0], [1], [0, 0, 1, 1], [], []>} : vector<2x64xbf16>, vector<64x32xbf16>, vector<2x32xf32> -> vector<2x32xf32>
      %51 = vector.broadcast %10 : vector<1x32xf32> to vector<2x32xf32>
      %52 = arith.addf %50, %51 : vector<2x32xf32>
      %c0_26 = arith.constant 0 : index
      %c0_27 = arith.constant 0 : index
      %c0_28 = arith.constant 0 : index
      %53 = vector.load %arg3[%c0_26, %c0_27, %c0_28] : memref<1x32x64xbf16, #tpu.memory_space<vmem>>, vector<1x32x64xbf16>
      %54 = vector.shape_cast %53 : vector<1x32x64xbf16> to vector<32x64xbf16>
      %55 = arith.truncf %52 : vector<2x32xf32> to vector<2x32xbf16>
      %cst_29 = arith.constant dense<0.000000e+00> : vector<2x64xf32>
      %56 = tpu.matmul %55, %54, %cst_29 {dimension_numbers = #tpu.dot_dimension_numbers<[1], [0], [0], [1], [0, 0, 1, 1], [], []>} : vector<2x32xbf16>, vector<32x64xbf16>, vector<2x64xf32> -> vector<2x64xf32>
      %cst_30 = arith.constant dense<0.000000e+00> : vector<64xf32>
      %57 = vector.multi_reduction <add>, %56, %cst_30 [0] : vector<2x64xf32> to vector<64xf32>
      %58 = vector.shape_cast %57 : vector<64xf32> to vector<1x64xf32>
      %cst_31 = arith.constant 2.000000e+00 : f32
      %59 = vector.broadcast %cst_31 : f32 to vector<1x64xf32>
      %60 = arith.divf %58, %59 : vector<1x64xf32>
      %61 = vector.broadcast %60 : vector<1x64xf32> to vector<2x64xf32>
      %62 = arith.subf %56, %61 : vector<2x64xf32>
      %63 = arith.mulf %62, %62 : vector<2x64xf32>
      %cst_32 = arith.constant dense<0.000000e+00> : vector<64xf32>
      %64 = vector.multi_reduction <add>, %63, %cst_32 [0] : vector<2x64xf32> to vector<64xf32>
      %65 = vector.shape_cast %64 : vector<64xf32> to vector<1x64xf32>
      %cst_33 = arith.constant 2.000000e+00 : f32
      %66 = vector.broadcast %cst_33 : f32 to vector<1x64xf32>
      %67 = arith.divf %65, %66 : vector<1x64xf32>
      %68 = vector.broadcast %60 : vector<1x64xf32> to vector<2x64xf32>
      %69 = arith.subf %56, %68 : vector<2x64xf32>
      %cst_34 = arith.constant 9.99999974E-6 : f32
      %70 = vector.broadcast %cst_34 : f32 to vector<1x64xf32>
      %71 = arith.addf %67, %70 : vector<1x64xf32>
      %72 = math.rsqrt %71 : vector<1x64xf32>
      %73 = vector.broadcast %72 : vector<1x64xf32> to vector<2x64xf32>
      %74 = arith.mulf %69, %73 : vector<2x64xf32>
      %75 = vector.broadcast %11 : vector<1x64xf32> to vector<2x64xf32>
      %76 = arith.mulf %74, %75 : vector<2x64xf32>
      %77 = vector.broadcast %12 : vector<1x64xf32> to vector<2x64xf32>
      %78 = arith.addf %76, %77 : vector<2x64xf32>
      %cst_35 = arith.constant 0.000000e+00 : f32
      %79 = vector.broadcast %cst_35 : f32 to vector<2x64xf32>
      %80 = arith.maximumf %78, %79 : vector<2x64xf32>
      %c0_36 = arith.constant 0 : index
      %c0_37 = arith.constant 0 : index
      %c0_38 = arith.constant 0 : index
      %81 = vector.load %arg4[%c0_36, %c0_37, %c0_38] : memref<1x64x32xbf16, #tpu.memory_space<vmem>>, vector<1x64x32xbf16>
      %82 = vector.shape_cast %81 : vector<1x64x32xbf16> to vector<64x32xbf16>
      %83 = arith.truncf %80 : vector<2x64xf32> to vector<2x64xbf16>
      %cst_39 = arith.constant dense<0.000000e+00> : vector<2x32xf32>
      %84 = tpu.matmul %83, %82, %cst_39 {dimension_numbers = #tpu.dot_dimension_numbers<[1], [0], [0], [1], [0, 0, 1, 1], [], []>} : vector<2x64xbf16>, vector<64x32xbf16>, vector<2x32xf32> -> vector<2x32xf32>
      %85 = vector.broadcast %13 : vector<1x32xf32> to vector<2x32xf32>
      %86 = arith.addf %84, %85 : vector<2x32xf32>
      %c0_40 = arith.constant 0 : index
      %c0_41 = arith.constant 0 : index
      %c0_42 = arith.constant 0 : index
      %87 = vector.load %arg22[%c0_40, %c0_41, %c0_42] : memref<1x2x32xf32, #tpu.memory_space<vmem>>, vector<1x2x32xf32>
      %88 = vector.shape_cast %87 : vector<1x2x32xf32> to vector<2x32xf32>
      %89 = vector.shape_cast %86 : vector<2x32xf32> to vector<1x2x32xf32>
      tpu.vector_store %arg22[%c0_40, %c0_41, %c0_42], %89 {strides = array<i32>} : memref<1x2x32xf32, #tpu.memory_space<vmem>>, vector<1x2x32xf32>,
    } else {
    }
    %c2_i32_0 = arith.constant 2 : i32
    %3 = arith.cmpi eq, %arg0, %c2_i32_0 : i32
    %4 = arith.extui %3 : i1 to i32
    %c0_i32_1 = arith.constant 0 : i32
    %5 = arith.cmpi ne, %4, %c0_i32_1 : i32
    scf.if %5 {
      %c0 = arith.constant 0 : index
      %c0_2 = arith.constant 0 : index
      %6 = vector.load %arg21[%c0, %c0_2] : memref<21x128xf32, #tpu.memory_space<vmem>>, vector<21x128xf32>
      %c0_3 = arith.constant 0 : index
      %c0_4 = arith.constant 0 : index
      %7 = vector.load %arg9[%c0_3, %c0_4] : memref<16x64xf32, #tpu.memory_space<vmem>>, vector<16x64xf32>
      %c0_5 = arith.constant 0 : index
      %c0_6 = arith.constant 0 : index
      %8 = vector.load %arg10[%c0_5, %c0_6] : memref<64x32xbf16, #tpu.memory_space<vmem>>, vector<64x32xbf16>
      %9 = arith.truncf %7 : vector<16x64xf32> to vector<16x64xbf16>
      %cst = arith.constant dense<0.000000e+00> : vector<16x32xf32>
      %10 = tpu.matmul %9, %8, %cst {dimension_numbers = #tpu.dot_dimension_numbers<[1], [0], [0], [1], [0, 0, 1, 1], [], []>} : vector<16x64xbf16>, vector<64x32xbf16>, vector<16x32xf32> -> vector<16x32xf32>
      %11 = vector.extract_strided_slice %6 {offsets = [14, 0], sizes = [1, 32], strides = [1, 1]} : vector<21x128xf32> to vector<1x32xf32>
      %12 = vector.broadcast %11 : vector<1x32xf32> to vector<16x32xf32>
      %13 = arith.addf %10, %12 : vector<16x32xf32>
      %c0_7 = arith.constant 0 : index
      %c0_8 = arith.constant 0 : index
      %14 = vector.load %arg11[%c0_7, %c0_8] : memref<16x32xf32, #tpu.memory_space<vmem>>, vector<16x32xf32>
      %15 = arith.addf %13, %14 : vector<16x32xf32>
      %c0_9 = arith.constant 0 : index
      %c0_10 = arith.constant 0 : index
      %16 = vector.load %arg13[%c0_9, %c0_10] : memref<64x64xf32, #tpu.memory_space<vmem>>, vector<64x64xf32>
      %17 = vector.extract_strided_slice %6 {offsets = [0, 0], sizes = [1, 32], strides = [1, 1]} : vector<21x128xf32> to vector<1x32xf32>
      %18 = vector.extract_strided_slice %6 {offsets = [1, 0], sizes = [1, 32], strides = [1, 1]} : vector<21x128xf32> to vector<1x32xf32>
      %19 = vector.extract_strided_slice %6 {offsets = [2, 0], sizes = [1, 32], strides = [1, 1]} : vector<21x128xf32> to vector<1x32xf32>
      %20 = vector.extract_strided_slice %6 {offsets = [3, 0], sizes = [1, 32], strides = [1, 1]} : vector<21x128xf32> to vector<1x32xf32>
      %21 = vector.extract_strided_slice %6 {offsets = [4, 0], sizes = [1, 32], strides = [1, 1]} : vector<21x128xf32> to vector<1x32xf32>
      %22 = vector.extract_strided_slice %6 {offsets = [5, 0], sizes = [1, 128], strides = [1, 1]} : vector<21x128xf32> to vector<1x128xf32>
      %23 = vector.extract_strided_slice %6 {offsets = [6, 0], sizes = [1, 32], strides = [1, 1]} : vector<21x128xf32> to vector<1x32xf32>
      %cst_11 = arith.constant dense<0.000000e+00> : vector<16xf32>
      %24 = vector.multi_reduction <add>, %15, %cst_11 [1] : vector<16x32xf32> to vector<16xf32>
      %25 = vector.shape_cast %24 : vector<16xf32> to vector<16x1xf32>
      %cst_12 = arith.constant 3.200000e+01 : f32
      %26 = vector.broadcast %cst_12 : f32 to vector<16x1xf32>
      %27 = arith.divf %25, %26 : vector<16x1xf32>
      %28 = vector.broadcast %27 : vector<16x1xf32> to vector<16x32xf32>
      %29 = arith.subf %15, %28 : vector<16x32xf32>
      %30 = arith.mulf %29, %29 : vector<16x32xf32>
      %cst_13 = arith.constant dense<0.000000e+00> : vector<16xf32>
      %31 = vector.multi_reduction <add>, %30, %cst_13 [1] : vector<16x32xf32> to vector<16xf32>
      %32 = vector.shape_cast %31 : vector<16xf32> to vector<16x1xf32>
      %cst_14 = arith.constant 3.200000e+01 : f32
      %33 = vector.broadcast %cst_14 : f32 to vector<16x1xf32>
      %34 = arith.divf %32, %33 : vector<16x1xf32>
      %35 = vector.broadcast %27 : vector<16x1xf32> to vector<16x32xf32>
      %36 = arith.subf %15, %35 : vector<16x32xf32>
      %cst_15 = arith.constant 9.99999997E-7 : f32
      %37 = vector.broadcast %cst_15 : f32 to vector<16x1xf32>
      %38 = arith.addf %34, %37 : vector<16x1xf32>
      %39 = math.rsqrt %38 : vector<16x1xf32>
      %40 = vector.broadcast %39 : vector<16x1xf32> to vector<16x32xf32>
      %41 = arith.mulf %36, %40 : vector<16x32xf32>
      %42 = vector.broadcast %17 : vector<1x32xf32> to vector<16x32xf32>
      %43 = arith.mulf %41, %42 : vector<16x32xf32>
      %44 = vector.broadcast %18 : vector<1x32xf32> to vector<16x32xf32>
      %45 = arith.addf %43, %44 : vector<16x32xf32>
      %46 = arith.truncf %45 : vector<16x32xf32> to vector<16x32xbf16>
      %c0_16 = arith.constant 0 : index
      %c0_17 = arith.constant 0 : index
      %47 = vector.load %arg14[%c0_16, %c0_17] : memref<256x24xbf16, #tpu.memory_space<vmem>>, vector<32x24xbf16>
      %cst_18 = arith.constant dense<0.000000e+00> : vector<16x24xf32>
      %48 = tpu.matmul %46, %47, %cst_18 {dimension_numbers = #tpu.dot_dimension_numbers<[1], [0], [0], [1], [0, 0, 1, 1], [], []>} : vector<16x32xbf16>, vector<32x24xbf16>, vector<16x24xf32> -> vector<16x24xf32>
      %c32 = arith.constant 32 : index
      %c0_19 = arith.constant 0 : index
      %49 = vector.load %arg14[%c32, %c0_19] : memref<256x24xbf16, #tpu.memory_space<vmem>>, vector<32x24xbf16>
      %cst_20 = arith.constant dense<0.000000e+00> : vector<16x24xf32>
      %50 = tpu.matmul %46, %49, %cst_20 {dimension_numbers = #tpu.dot_dimension_numbers<[1], [0], [0], [1], [0, 0, 1, 1], [], []>} : vector<16x32xbf16>, vector<32x24xbf16>, vector<16x24xf32> -> vector<16x24xf32>
      %c64 = arith.constant 64 : index
      %c0_21 = arith.constant 0 : index
      %51 = vector.load %arg14[%c64, %c0_21] : memref<256x24xbf16, #tpu.memory_space<vmem>>, vector<32x24xbf16>
      %cst_22 = arith.constant dense<0.000000e+00> : vector<16x24xf32>
      %52 = tpu.matmul %46, %51, %cst_22 {dimension_numbers = #tpu.dot_dimension_numbers<[1], [0], [0], [1], [0, 0, 1, 1], [], []>} : vector<16x32xbf16>, vector<32x24xbf16>, vector<16x24xf32> -> vector<16x24xf32>
      %c96 = arith.constant 96 : index
      %c0_23 = arith.constant 0 : index
      %53 = vector.load %arg14[%c96, %c0_23] : memref<256x24xbf16, #tpu.memory_space<vmem>>, vector<32x24xbf16>
      %cst_24 = arith.constant dense<0.000000e+00> : vector<16x24xf32>
      %54 = tpu.matmul %46, %53, %cst_24 {dimension_numbers = #tpu.dot_dimension_numbers<[1], [0], [0], [1], [0, 0, 1, 1], [], []>} : vector<16x32xbf16>, vector<32x24xbf16>, vector<16x24xf32> -> vector<16x24xf32>
      %55 = tpu.concatenate %48, %50, %52, %54 in 0 : vector<16x24xf32>, vector<16x24xf32>, vector<16x24xf32>, vector<16x24xf32> -> vector<64x24xf32>
      %c0_25 = arith.constant 0 : index
      %c0_26 = arith.constant 0 : index
      %56 = vector.load %arg15[%c0_25, %c0_26] : memref<128x24xf32, #tpu.memory_space<vmem>>, vector<64x24xf32>
      %57 = arith.addf %55, %56 : vector<64x24xf32>
      %58 = vector.extract_strided_slice %57 {offsets = [0, 0], sizes = [64, 8], strides = [1, 1]} : vector<64x24xf32> to vector<64x8xf32>
      %59 = vector.extract_strided_slice %57 {offsets = [0, 8], sizes = [64, 8], strides = [1, 1]} : vector<64x24xf32> to vector<64x8xf32>
      %60 = vector.extract_strided_slice %57 {offsets = [0, 16], sizes = [64, 8], strides = [1, 1]} : vector<64x24xf32> to vector<64x8xf32>
      %61 = arith.truncf %58 : vector<64x8xf32> to vector<64x8xbf16>
      %62 = arith.truncf %59 : vector<64x8xf32> to vector<64x8xbf16>
      %cst_27 = arith.constant dense<0.000000e+00> : vector<64x64xf32>
      %63 = tpu.matmul %61, %62, %cst_27 {dimension_numbers = #tpu.dot_dimension_numbers<[1], [1], [0], [0], [0, 0, 1, 0], [], []>} : vector<64x8xbf16>, vector<64x8xbf16>, vector<64x64xf32> -> vector<64x64xf32>
      %cst_28 = arith.constant 0.353553385 : f32
      %64 = vector.broadcast %cst_28 : f32 to vector<64x64xf32>
      %65 = arith.mulf %63, %64 : vector<64x64xf32>
      %66 = arith.addf %65, %16 : vector<64x64xf32>
      %cst_29 = arith.constant dense<0xFF800000> : vector<64xf32>
      %67 = vector.multi_reduction <maximumf>, %66, %cst_29 [1] : vector<64x64xf32> to vector<64xf32>
      %cst_30 = arith.constant 0xFF800000 : f32
      %68 = vector.broadcast %cst_30 : f32 to vector<64xf32>
      %69 = arith.maximumf %68, %67 : vector<64xf32>
      %70 = vector.shape_cast %69 : vector<64xf32> to vector<64x1xf32>
      %71 = vector.broadcast %70 : vector<64x1xf32> to vector<64x64xf32>
      %72 = arith.subf %66, %71 : vector<64x64xf32>
      %73 = math.exp %72 : vector<64x64xf32>
      %cst_31 = arith.constant dense<0.000000e+00> : vector<64xf32>
      %74 = vector.multi_reduction <add>, %73, %cst_31 [1] : vector<64x64xf32> to vector<64xf32>
      %75 = vector.shape_cast %74 : vector<64xf32> to vector<64x1xf32>
      %76 = vector.broadcast %75 : vector<64x1xf32> to vector<64x64xf32>
      %77 = arith.divf %73, %76 : vector<64x64xf32>
      %78 = arith.truncf %77 : vector<64x64xf32> to vector<64x64xbf16>
      %79 = arith.truncf %60 : vector<64x8xf32> to vector<64x8xbf16>
      %cst_32 = arith.constant dense<0.000000e+00> : vector<64x8xf32>
      %80 = tpu.matmul %78, %79, %cst_32 {dimension_numbers = #tpu.dot_dimension_numbers<[1], [0], [0], [1], [0, 0, 1, 1], [], []>} : vector<64x64xbf16>, vector<64x8xbf16>, vector<64x8xf32> -> vector<64x8xf32>
      %81 = vector.extract_strided_slice %80 {offsets = [0, 0], sizes = [16, 8], strides = [1, 1]} : vector<64x8xf32> to vector<16x8xf32>
      %c0_33 = arith.constant 0 : index
      %c0_34 = arith.constant 0 : index
      %82 = vector.load %arg16[%c0_33, %c0_34] : memref<64x32xbf16, #tpu.memory_space<vmem>>, vector<8x32xbf16>
      %83 = arith.truncf %81 : vector<16x8xf32> to vector<16x8xbf16>
      %cst_35 = arith.constant dense<0.000000e+00> : vector<16x32xf32>
      %84 = tpu.matmul %83, %82, %cst_35 {dimension_numbers = #tpu.dot_dimension_numbers<[1], [0], [0], [1], [0, 0, 1, 1], [], []>} : vector<16x8xbf16>, vector<8x32xbf16>, vector<16x32xf32> -> vector<16x32xf32>
      %85 = vector.extract_strided_slice %80 {offsets = [16, 0], sizes = [16, 8], strides = [1, 1]} : vector<64x8xf32> to vector<16x8xf32>
      %c8 = arith.constant 8 : index
      %c0_36 = arith.constant 0 : index
      %86 = vector.load %arg16[%c8, %c0_36] : memref<64x32xbf16, #tpu.memory_space<vmem>>, vector<8x32xbf16>
      %87 = arith.truncf %85 : vector<16x8xf32> to vector<16x8xbf16>
      %cst_37 = arith.constant dense<0.000000e+00> : vector<16x32xf32>
      %88 = tpu.matmul %87, %86, %cst_37 {dimension_numbers = #tpu.dot_dimension_numbers<[1], [0], [0], [1], [0, 0, 1, 1], [], []>} : vector<16x8xbf16>, vector<8x32xbf16>, vector<16x32xf32> -> vector<16x32xf32>
      %89 = arith.addf %84, %88 : vector<16x32xf32>
      %90 = vector.extract_strided_slice %80 {offsets = [32, 0], sizes = [16, 8], strides = [1, 1]} : vector<64x8xf32> to vector<16x8xf32>
      %c16 = arith.constant 16 : index
      %c0_38 = arith.constant 0 : index
      %91 = vector.load %arg16[%c16, %c0_38] : memref<64x32xbf16, #tpu.memory_space<vmem>>, vector<8x32xbf16>
      %92 = arith.truncf %90 : vector<16x8xf32> to vector<16x8xbf16>
      %cst_39 = arith.constant dense<0.000000e+00> : vector<16x32xf32>
      %93 = tpu.matmul %92, %91, %cst_39 {dimension_numbers = #tpu.dot_dimension_numbers<[1], [0], [0], [1], [0, 0, 1, 1], [], []>} : vector<16x8xbf16>, vector<8x32xbf16>, vector<16x32xf32> -> vector<16x32xf32>
      %94 = arith.addf %89, %93 : vector<16x32xf32>
      %95 = vector.extract_strided_slice %80 {offsets = [48, 0], sizes = [16, 8], strides = [1, 1]} : vector<64x8xf32> to vector<16x8xf32>
      %c24 = arith.constant 24 : index
      %c0_40 = arith.constant 0 : index
      %96 = vector.load %arg16[%c24, %c0_40] : memref<64x32xbf16, #tpu.memory_space<vmem>>, vector<8x32xbf16>
      %97 = arith.truncf %95 : vector<16x8xf32> to vector<16x8xbf16>
      %cst_41 = arith.constant dense<0.000000e+00> : vector<16x32xf32>
      %98 = tpu.matmul %97, %96, %cst_41 {dimension_numbers = #tpu.dot_dimension_numbers<[1], [0], [0], [1], [0, 0, 1, 1], [], []>} : vector<16x8xbf16>, vector<8x32xbf16>, vector<16x32xf32> -> vector<16x32xf32>
      %99 = arith.addf %94, %98 : vector<16x32xf32>
      %100 = arith.addf %15, %99 : vector<16x32xf32>
      %101 = vector.broadcast %19 : vector<1x32xf32> to vector<16x32xf32>
      %102 = arith.addf %100, %101 : vector<16x32xf32>
      %cst_42 = arith.constant dense<0.000000e+00> : vector<16xf32>
      %103 = vector.multi_reduction <add>, %102, %cst_42 [1] : vector<16x32xf32> to vector<16xf32>
      %104 = vector.shape_cast %103 : vector<16xf32> to vector<16x1xf32>
      %cst_43 = arith.constant 3.200000e+01 : f32
      %105 = vector.broadcast %cst_43 : f32 to vector<16x1xf32>
      %106 = arith.divf %104, %105 : vector<16x1xf32>
      %107 = vector.broadcast %106 : vector<16x1xf32> to vector<16x32xf32>
      %108 = arith.subf %102, %107 : vector<16x32xf32>
      %109 = arith.mulf %108, %108 : vector<16x32xf32>
      %cst_44 = arith.constant dense<0.000000e+00> : vector<16xf32>
      %110 = vector.multi_reduction <add>, %109, %cst_44 [1] : vector<16x32xf32> to vector<16xf32>
      %111 = vector.shape_cast %110 : vector<16xf32> to vector<16x1xf32>
      %cst_45 = arith.constant 3.200000e+01 : f32
      %112 = vector.broadcast %cst_45 : f32 to vector<16x1xf32>
      %113 = arith.divf %111, %112 : vector<16x1xf32>
      %114 = vector.broadcast %106 : vector<16x1xf32> to vector<16x32xf32>
      %115 = arith.subf %102, %114 : vector<16x32xf32>
      %cst_46 = arith.constant 9.99999997E-7 : f32
      %116 = vector.broadcast %cst_46 : f32 to vector<16x1xf32>
      %117 = arith.addf %113, %116 : vector<16x1xf32>
      %118 = math.rsqrt %117 : vector<16x1xf32>
      %119 = vector.broadcast %118 : vector<16x1xf32> to vector<16x32xf32>
      %120 = arith.mulf %115, %119 : vector<16x32xf32>
      %121 = vector.broadcast %20 : vector<1x32xf32> to vector<16x32xf32>
      %122 = arith.mulf %120, %121 : vector<16x32xf32>
      %123 = vector.broadcast %21 : vector<1x32xf32> to vector<16x32xf32>
      %124 = arith.addf %122, %123 : vector<16x32xf32>
      %c0_47 = arith.constant 0 : index
      %c0_48 = arith.constant 0 : index
      %125 = vector.load %arg17[%c0_47, %c0_48] : memref<64x128xbf16, #tpu.memory_space<vmem>>, vector<32x128xbf16>
      %126 = arith.truncf %124 : vector<16x32xf32> to vector<16x32xbf16>
      %cst_49 = arith.constant dense<0.000000e+00> : vector<16x128xf32>
      %127 = tpu.matmul %126, %125, %cst_49 {dimension_numbers = #tpu.dot_dimension_numbers<[1], [0], [0], [1], [0, 0, 1, 1], [], []>} : vector<16x32xbf16>, vector<32x128xbf16>, vector<16x128xf32> -> vector<16x128xf32>
      %128 = vector.broadcast %22 : vector<1x128xf32> to vector<16x128xf32>
      %129 = arith.addf %127, %128 : vector<16x128xf32>
      %130 = arith.mulf %129, %129 : vector<16x128xf32>
      %131 = arith.mulf %129, %130 : vector<16x128xf32>
      %cst_50 = arith.constant 4.471500e-02 : f32
      %132 = vector.broadcast %cst_50 : f32 to vector<16x128xf32>
      %133 = arith.mulf %132, %131 : vector<16x128xf32>
      %134 = arith.addf %129, %133 : vector<16x128xf32>
      %cst_51 = arith.constant 0.797884583 : f32
      %135 = vector.broadcast %cst_51 : f32 to vector<16x128xf32>
      %136 = arith.mulf %135, %134 : vector<16x128xf32>
      %137 = math.tanh %136 : vector<16x128xf32>
      %cst_52 = arith.constant 1.000000e+00 : f32
      %138 = vector.broadcast %cst_52 : f32 to vector<16x128xf32>
      %139 = arith.addf %138, %137 : vector<16x128xf32>
      %cst_53 = arith.constant 5.000000e-01 : f32
      %140 = vector.broadcast %cst_53 : f32 to vector<16x128xf32>
      %141 = arith.mulf %140, %139 : vector<16x128xf32>
      %142 = arith.mulf %129, %141 : vector<16x128xf32>
      %c0_54 = arith.constant 0 : index
      %c0_55 = arith.constant 0 : index
      %143 = vector.load %arg18[%c0_54, %c0_55] : memref<256x32xbf16, #tpu.memory_space<vmem>>, vector<128x32xbf16>
      %144 = arith.truncf %142 : vector<16x128xf32> to vector<16x128xbf16>
      %cst_56 = arith.constant dense<0.000000e+00> : vector<16x32xf32>
      %145 = tpu.matmul %144, %143, %cst_56 {dimension_numbers = #tpu.dot_dimension_numbers<[1], [0], [0], [1], [0, 0, 1, 1], [], []>} : vector<16x128xbf16>, vector<128x32xbf16>, vector<16x32xf32> -> vector<16x32xf32>
      %146 = arith.addf %102, %145 : vector<16x32xf32>
      %147 = vector.broadcast %23 : vector<1x32xf32> to vector<16x32xf32>
      %148 = arith.addf %146, %147 : vector<16x32xf32>
      %149 = vector.extract_strided_slice %6 {offsets = [7, 0], sizes = [1, 32], strides = [1, 1]} : vector<21x128xf32> to vector<1x32xf32>
      %150 = vector.extract_strided_slice %6 {offsets = [8, 0], sizes = [1, 32], strides = [1, 1]} : vector<21x128xf32> to vector<1x32xf32>
      %151 = vector.extract_strided_slice %6 {offsets = [9, 0], sizes = [1, 32], strides = [1, 1]} : vector<21x128xf32> to vector<1x32xf32>
      %152 = vector.extract_strided_slice %6 {offsets = [10, 0], sizes = [1, 32], strides = [1, 1]} : vector<21x128xf32> to vector<1x32xf32>
      %153 = vector.extract_strided_slice %6 {offsets = [11, 0], sizes = [1, 32], strides = [1, 1]} : vector<21x128xf32> to vector<1x32xf32>
      %154 = vector.extract_strided_slice %6 {offsets = [12, 0], sizes = [1, 128], strides = [1, 1]} : vector<21x128xf32> to vector<1x128xf32>
      %155 = vector.extract_strided_slice %6 {offsets = [13, 0], sizes = [1, 32], strides = [1, 1]} : vector<21x128xf32> to vector<1x32xf32>
      %cst_57 = arith.constant dense<0.000000e+00> : vector<16xf32>
      %156 = vector.multi_reduction <add>, %148, %cst_57 [1] : vector<16x32xf32> to vector<16xf32>
      %157 = vector.shape_cast %156 : vector<16xf32> to vector<16x1xf32>
      %cst_58 = arith.constant 3.200000e+01 : f32
      %158 = vector.broadcast %cst_58 : f32 to vector<16x1xf32>
      %159 = arith.divf %157, %158 : vector<16x1xf32>
      %160 = vector.broadcast %159 : vector<16x1xf32> to vector<16x32xf32>
      %161 = arith.subf %148, %160 : vector<16x32xf32>
      %162 = arith.mulf %161, %161 : vector<16x32xf32>
      %cst_59 = arith.constant dense<0.000000e+00> : vector<16xf32>
      %163 = vector.multi_reduction <add>, %162, %cst_59 [1] : vector<16x32xf32> to vector<16xf32>
      %164 = vector.shape_cast %163 : vector<16xf32> to vector<16x1xf32>
      %cst_60 = arith.constant 3.200000e+01 : f32
      %165 = vector.broadcast %cst_60 : f32 to vector<16x1xf32>
      %166 = arith.divf %164, %165 : vector<16x1xf32>
      %167 = vector.broadcast %159 : vector<16x1xf32> to vector<16x32xf32>
      %168 = arith.subf %148, %167 : vector<16x32xf32>
      %cst_61 = arith.constant 9.99999997E-7 : f32
      %169 = vector.broadcast %cst_61 : f32 to vector<16x1xf32>
      %170 = arith.addf %166, %169 : vector<16x1xf32>
      %171 = math.rsqrt %170 : vector<16x1xf32>
      %172 = vector.broadcast %171 : vector<16x1xf32> to vector<16x32xf32>
      %173 = arith.mulf %168, %172 : vector<16x32xf32>
      %174 = vector.broadcast %149 : vector<1x32xf32> to vector<16x32xf32>
      %175 = arith.mulf %173, %174 : vector<16x32xf32>
      %176 = vector.broadcast %150 : vector<1x32xf32> to vector<16x32xf32>
      %177 = arith.addf %175, %176 : vector<16x32xf32>
      %178 = arith.truncf %177 : vector<16x32xf32> to vector<16x32xbf16>
      %c128 = arith.constant 128 : index
      %c0_62 = arith.constant 0 : index
      %179 = vector.load %arg14[%c128, %c0_62] : memref<256x24xbf16, #tpu.memory_space<vmem>>, vector<32x24xbf16>
      %cst_63 = arith.constant dense<0.000000e+00> : vector<16x24xf32>
      %180 = tpu.matmul %178, %179, %cst_63 {dimension_numbers = #tpu.dot_dimension_numbers<[1], [0], [0], [1], [0, 0, 1, 1], [], []>} : vector<16x32xbf16>, vector<32x24xbf16>, vector<16x24xf32> -> vector<16x24xf32>
      %c160 = arith.constant 160 : index
      %c0_64 = arith.constant 0 : index
      %181 = vector.load %arg14[%c160, %c0_64] : memref<256x24xbf16, #tpu.memory_space<vmem>>, vector<32x24xbf16>
      %cst_65 = arith.constant dense<0.000000e+00> : vector<16x24xf32>
      %182 = tpu.matmul %178, %181, %cst_65 {dimension_numbers = #tpu.dot_dimension_numbers<[1], [0], [0], [1], [0, 0, 1, 1], [], []>} : vector<16x32xbf16>, vector<32x24xbf16>, vector<16x24xf32> -> vector<16x24xf32>
      %c192 = arith.constant 192 : index
      %c0_66 = arith.constant 0 : index
      %183 = vector.load %arg14[%c192, %c0_66] : memref<256x24xbf16, #tpu.memory_space<vmem>>, vector<32x24xbf16>
      %cst_67 = arith.constant dense<0.000000e+00> : vector<16x24xf32>
      %184 = tpu.matmul %178, %183, %cst_67 {dimension_numbers = #tpu.dot_dimension_numbers<[1], [0], [0], [1], [0, 0, 1, 1], [], []>} : vector<16x32xbf16>, vector<32x24xbf16>, vector<16x24xf32> -> vector<16x24xf32>
      %c224 = arith.constant 224 : index
      %c0_68 = arith.constant 0 : index
      %185 = vector.load %arg14[%c224, %c0_68] : memref<256x24xbf16, #tpu.memory_space<vmem>>, vector<32x24xbf16>
      %cst_69 = arith.constant dense<0.000000e+00> : vector<16x24xf32>
      %186 = tpu.matmul %178, %185, %cst_69 {dimension_numbers = #tpu.dot_dimension_numbers<[1], [0], [0], [1], [0, 0, 1, 1], [], []>} : vector<16x32xbf16>, vector<32x24xbf16>, vector<16x24xf32> -> vector<16x24xf32>
      %187 = tpu.concatenate %180, %182, %184, %186 in 0 : vector<16x24xf32>, vector<16x24xf32>, vector<16x24xf32>, vector<16x24xf32> -> vector<64x24xf32>
      %c64_70 = arith.constant 64 : index
      %c0_71 = arith.constant 0 : index
      %188 = vector.load %arg15[%c64_70, %c0_71] : memref<128x24xf32, #tpu.memory_space<vmem>>, vector<64x24xf32>
      %189 = arith.addf %187, %188 : vector<64x24xf32>
      %190 = vector.extract_strided_slice %189 {offsets = [0, 0], sizes = [64, 8], strides = [1, 1]} : vector<64x24xf32> to vector<64x8xf32>
      %191 = vector.extract_strided_slice %189 {offsets = [0, 8], sizes = [64, 8], strides = [1, 1]} : vector<64x24xf32> to vector<64x8xf32>
      %192 = vector.extract_strided_slice %189 {offsets = [0, 16], sizes = [64, 8], strides = [1, 1]} : vector<64x24xf32> to vector<64x8xf32>
      %193 = arith.truncf %190 : vector<64x8xf32> to vector<64x8xbf16>
      %194 = arith.truncf %191 : vector<64x8xf32> to vector<64x8xbf16>
      %cst_72 = arith.constant dense<0.000000e+00> : vector<64x64xf32>
      %195 = tpu.matmul %193, %194, %cst_72 {dimension_numbers = #tpu.dot_dimension_numbers<[1], [1], [0], [0], [0, 0, 1, 0], [], []>} : vector<64x8xbf16>, vector<64x8xbf16>, vector<64x64xf32> -> vector<64x64xf32>
      %cst_73 = arith.constant 0.353553385 : f32
      %196 = vector.broadcast %cst_73 : f32 to vector<64x64xf32>
      %197 = arith.mulf %195, %196 : vector<64x64xf32>
      %198 = arith.addf %197, %16 : vector<64x64xf32>
      %cst_74 = arith.constant dense<0xFF800000> : vector<64xf32>
      %199 = vector.multi_reduction <maximumf>, %198, %cst_74 [1] : vector<64x64xf32> to vector<64xf32>
      %cst_75 = arith.constant 0xFF800000 : f32
      %200 = vector.broadcast %cst_75 : f32 to vector<64xf32>
      %201 = arith.maximumf %200, %199 : vector<64xf32>
      %202 = vector.shape_cast %201 : vector<64xf32> to vector<64x1xf32>
      %203 = vector.broadcast %202 : vector<64x1xf32> to vector<64x64xf32>
      %204 = arith.subf %198, %203 : vector<64x64xf32>
      %205 = math.exp %204 : vector<64x64xf32>
      %cst_76 = arith.constant dense<0.000000e+00> : vector<64xf32>
      %206 = vector.multi_reduction <add>, %205, %cst_76 [1] : vector<64x64xf32> to vector<64xf32>
      %207 = vector.shape_cast %206 : vector<64xf32> to vector<64x1xf32>
      %208 = vector.broadcast %207 : vector<64x1xf32> to vector<64x64xf32>
      %209 = arith.divf %205, %208 : vector<64x64xf32>
      %210 = arith.truncf %209 : vector<64x64xf32> to vector<64x64xbf16>
      %211 = arith.truncf %192 : vector<64x8xf32> to vector<64x8xbf16>
      %cst_77 = arith.constant dense<0.000000e+00> : vector<64x8xf32>
      %212 = tpu.matmul %210, %211, %cst_77 {dimension_numbers = #tpu.dot_dimension_numbers<[1], [0], [0], [1], [0, 0, 1, 1], [], []>} : vector<64x64xbf16>, vector<64x8xbf16>, vector<64x8xf32> -> vector<64x8xf32>
      %213 = vector.extract_strided_slice %212 {offsets = [0, 0], sizes = [16, 8], strides = [1, 1]} : vector<64x8xf32> to vector<16x8xf32>
      %c32_78 = arith.constant 32 : index
      %c0_79 = arith.constant 0 : index
      %214 = vector.load %arg16[%c32_78, %c0_79] : memref<64x32xbf16, #tpu.memory_space<vmem>>, vector<8x32xbf16>
      %215 = arith.truncf %213 : vector<16x8xf32> to vector<16x8xbf16>
      %cst_80 = arith.constant dense<0.000000e+00> : vector<16x32xf32>
      %216 = tpu.matmul %215, %214, %cst_80 {dimension_numbers = #tpu.dot_dimension_numbers<[1], [0], [0], [1], [0, 0, 1, 1], [], []>} : vector<16x8xbf16>, vector<8x32xbf16>, vector<16x32xf32> -> vector<16x32xf32>
      %217 = vector.extract_strided_slice %212 {offsets = [16, 0], sizes = [16, 8], strides = [1, 1]} : vector<64x8xf32> to vector<16x8xf32>
      %c40 = arith.constant 40 : index
      %c0_81 = arith.constant 0 : index
      %218 = vector.load %arg16[%c40, %c0_81] : memref<64x32xbf16, #tpu.memory_space<vmem>>, vector<8x32xbf16>
      %219 = arith.truncf %217 : vector<16x8xf32> to vector<16x8xbf16>
      %cst_82 = arith.constant dense<0.000000e+00> : vector<16x32xf32>
      %220 = tpu.matmul %219, %218, %cst_82 {dimension_numbers = #tpu.dot_dimension_numbers<[1], [0], [0], [1], [0, 0, 1, 1], [], []>} : vector<16x8xbf16>, vector<8x32xbf16>, vector<16x32xf32> -> vector<16x32xf32>
      %221 = arith.addf %216, %220 : vector<16x32xf32>
      %222 = vector.extract_strided_slice %212 {offsets = [32, 0], sizes = [16, 8], strides = [1, 1]} : vector<64x8xf32> to vector<16x8xf32>
      %c48 = arith.constant 48 : index
      %c0_83 = arith.constant 0 : index
      %223 = vector.load %arg16[%c48, %c0_83] : memref<64x32xbf16, #tpu.memory_space<vmem>>, vector<8x32xbf16>
      %224 = arith.truncf %222 : vector<16x8xf32> to vector<16x8xbf16>
      %cst_84 = arith.constant dense<0.000000e+00> : vector<16x32xf32>
      %225 = tpu.matmul %224, %223, %cst_84 {dimension_numbers = #tpu.dot_dimension_numbers<[1], [0], [0], [1], [0, 0, 1, 1], [], []>} : vector<16x8xbf16>, vector<8x32xbf16>, vector<16x32xf32> -> vector<16x32xf32>
      %226 = arith.addf %221, %225 : vector<16x32xf32>
      %227 = vector.extract_strided_slice %212 {offsets = [48, 0], sizes = [16, 8], strides = [1, 1]} : vector<64x8xf32> to vector<16x8xf32>
      %c56 = arith.constant 56 : index
      %c0_85 = arith.constant 0 : index
      %228 = vector.load %arg16[%c56, %c0_85] : memref<64x32xbf16, #tpu.memory_space<vmem>>, vector<8x32xbf16>
      %229 = arith.truncf %227 : vector<16x8xf32> to vector<16x8xbf16>
      %cst_86 = arith.constant dense<0.000000e+00> : vector<16x32xf32>
      %230 = tpu.matmul %229, %228, %cst_86 {dimension_numbers = #tpu.dot_dimension_numbers<[1], [0], [0], [1], [0, 0, 1, 1], [], []>} : vector<16x8xbf16>, vector<8x32xbf16>, vector<16x32xf32> -> vector<16x32xf32>
      %231 = arith.addf %226, %230 : vector<16x32xf32>
      %232 = arith.addf %148, %231 : vector<16x32xf32>
      %233 = vector.broadcast %151 : vector<1x32xf32> to vector<16x32xf32>
      %234 = arith.addf %232, %233 : vector<16x32xf32>
      %cst_87 = arith.constant dense<0.000000e+00> : vector<16xf32>
      %235 = vector.multi_reduction <add>, %234, %cst_87 [1] : vector<16x32xf32> to vector<16xf32>
      %236 = vector.shape_cast %235 : vector<16xf32> to vector<16x1xf32>
      %cst_88 = arith.constant 3.200000e+01 : f32
      %237 = vector.broadcast %cst_88 : f32 to vector<16x1xf32>
      %238 = arith.divf %236, %237 : vector<16x1xf32>
      %239 = vector.broadcast %238 : vector<16x1xf32> to vector<16x32xf32>
      %240 = arith.subf %234, %239 : vector<16x32xf32>
      %241 = arith.mulf %240, %240 : vector<16x32xf32>
      %cst_89 = arith.constant dense<0.000000e+00> : vector<16xf32>
      %242 = vector.multi_reduction <add>, %241, %cst_89 [1] : vector<16x32xf32> to vector<16xf32>
      %243 = vector.shape_cast %242 : vector<16xf32> to vector<16x1xf32>
      %cst_90 = arith.constant 3.200000e+01 : f32
      %244 = vector.broadcast %cst_90 : f32 to vector<16x1xf32>
      %245 = arith.divf %243, %244 : vector<16x1xf32>
      %246 = vector.broadcast %238 : vector<16x1xf32> to vector<16x32xf32>
      %247 = arith.subf %234, %246 : vector<16x32xf32>
      %cst_91 = arith.constant 9.99999997E-7 : f32
      %248 = vector.broadcast %cst_91 : f32 to vector<16x1xf32>
      %249 = arith.addf %245, %248 : vector<16x1xf32>
      %250 = math.rsqrt %249 : vector<16x1xf32>
      %251 = vector.broadcast %250 : vector<16x1xf32> to vector<16x32xf32>
      %252 = arith.mulf %247, %251 : vector<16x32xf32>
      %253 = vector.broadcast %152 : vector<1x32xf32> to vector<16x32xf32>
      %254 = arith.mulf %252, %253 : vector<16x32xf32>
      %255 = vector.broadcast %153 : vector<1x32xf32> to vector<16x32xf32>
      %256 = arith.addf %254, %255 : vector<16x32xf32>
      %c32_92 = arith.constant 32 : index
      %c0_93 = arith.constant 0 : index
      %257 = vector.load %arg17[%c32_92, %c0_93] : memref<64x128xbf16, #tpu.memory_space<vmem>>, vector<32x128xbf16>
      %258 = arith.truncf %256 : vector<16x32xf32> to vector<16x32xbf16>
      %cst_94 = arith.constant dense<0.000000e+00> : vector<16x128xf32>
      %259 = tpu.matmul %258, %257, %cst_94 {dimension_numbers = #tpu.dot_dimension_numbers<[1], [0], [0], [1], [0, 0, 1, 1], [], []>} : vector<16x32xbf16>, vector<32x128xbf16>, vector<16x128xf32> -> vector<16x128xf32>
      %260 = vector.broadcast %154 : vector<1x128xf32> to vector<16x128xf32>
      %261 = arith.addf %259, %260 : vector<16x128xf32>
      %262 = arith.mulf %261, %261 : vector<16x128xf32>
      %263 = arith.mulf %261, %262 : vector<16x128xf32>
      %cst_95 = arith.constant 4.471500e-02 : f32
      %264 = vector.broadcast %cst_95 : f32 to vector<16x128xf32>
      %265 = arith.mulf %264, %263 : vector<16x128xf32>
      %266 = arith.addf %261, %265 : vector<16x128xf32>
      %cst_96 = arith.constant 0.797884583 : f32
      %267 = vector.broadcast %cst_96 : f32 to vector<16x128xf32>
      %268 = arith.mulf %267, %266 : vector<16x128xf32>
      %269 = math.tanh %268 : vector<16x128xf32>
      %cst_97 = arith.constant 1.000000e+00 : f32
      %270 = vector.broadcast %cst_97 : f32 to vector<16x128xf32>
      %271 = arith.addf %270, %269 : vector<16x128xf32>
      %cst_98 = arith.constant 5.000000e-01 : f32
      %272 = vector.broadcast %cst_98 : f32 to vector<16x128xf32>
      %273 = arith.mulf %272, %271 : vector<16x128xf32>
      %274 = arith.mulf %261, %273 : vector<16x128xf32>
      %c128_99 = arith.constant 128 : index
      %c0_100 = arith.constant 0 : index
      %275 = vector.load %arg18[%c128_99, %c0_100] : memref<256x32xbf16, #tpu.memory_space<vmem>>, vector<128x32xbf16>
      %276 = arith.truncf %274 : vector<16x128xf32> to vector<16x128xbf16>
      %cst_101 = arith.constant dense<0.000000e+00> : vector<16x32xf32>
      %277 = tpu.matmul %276, %275, %cst_101 {dimension_numbers = #tpu.dot_dimension_numbers<[1], [0], [0], [1], [0, 0, 1, 1], [], []>} : vector<16x128xbf16>, vector<128x32xbf16>, vector<16x32xf32> -> vector<16x32xf32>
      %278 = arith.addf %234, %277 : vector<16x32xf32>
      %279 = vector.broadcast %155 : vector<1x32xf32> to vector<16x32xf32>
      %280 = arith.addf %278, %279 : vector<16x32xf32>
      %c0_102 = arith.constant 0 : index
      %c0_103 = arith.constant 0 : index
      %281 = vector.load %arg12[%c0_102, %c0_103] : memref<2x16xbf16, #tpu.memory_space<vmem>>, vector<2x16xbf16>
      %282 = arith.truncf %280 : vector<16x32xf32> to vector<16x32xbf16>
      %cst_104 = arith.constant dense<0.000000e+00> : vector<2x32xf32>
      %283 = tpu.matmul %281, %282, %cst_104 {dimension_numbers = #tpu.dot_dimension_numbers<[1], [0], [0], [1], [0, 0, 1, 1], [], []>} : vector<2x16xbf16>, vector<16x32xbf16>, vector<2x32xf32> -> vector<2x32xf32>
      %284 = vector.extract_strided_slice %6 {offsets = [15, 0], sizes = [1, 32], strides = [1, 1]} : vector<21x128xf32> to vector<1x32xf32>
      %285 = vector.extract_strided_slice %6 {offsets = [16, 0], sizes = [1, 32], strides = [1, 1]} : vector<21x128xf32> to vector<1x32xf32>
      %cst_105 = arith.constant dense<0.000000e+00> : vector<2xf32>
      %286 = vector.multi_reduction <add>, %283, %cst_105 [1] : vector<2x32xf32> to vector<2xf32>
      %287 = vector.shape_cast %286 : vector<2xf32> to vector<2x1xf32>
      %cst_106 = arith.constant 3.200000e+01 : f32
      %288 = vector.broadcast %cst_106 : f32 to vector<2x1xf32>
      %289 = arith.divf %287, %288 : vector<2x1xf32>
      %290 = vector.broadcast %289 : vector<2x1xf32> to vector<2x32xf32>
      %291 = arith.subf %283, %290 : vector<2x32xf32>
      %292 = arith.mulf %291, %291 : vector<2x32xf32>
      %cst_107 = arith.constant dense<0.000000e+00> : vector<2xf32>
      %293 = vector.multi_reduction <add>, %292, %cst_107 [1] : vector<2x32xf32> to vector<2xf32>
      %294 = vector.shape_cast %293 : vector<2xf32> to vector<2x1xf32>
      %cst_108 = arith.constant 3.200000e+01 : f32
      %295 = vector.broadcast %cst_108 : f32 to vector<2x1xf32>
      %296 = arith.divf %294, %295 : vector<2x1xf32>
      %297 = vector.broadcast %289 : vector<2x1xf32> to vector<2x32xf32>
      %298 = arith.subf %283, %297 : vector<2x32xf32>
      %cst_109 = arith.constant 9.99999997E-7 : f32
      %299 = vector.broadcast %cst_109 : f32 to vector<2x1xf32>
      %300 = arith.addf %296, %299 : vector<2x1xf32>
      %301 = math.rsqrt %300 : vector<2x1xf32>
      %302 = vector.broadcast %301 : vector<2x1xf32> to vector<2x32xf32>
      %303 = arith.mulf %298, %302 : vector<2x32xf32>
      %304 = vector.broadcast %284 : vector<1x32xf32> to vector<2x32xf32>
      %305 = arith.mulf %303, %304 : vector<2x32xf32>
      %306 = vector.broadcast %285 : vector<1x32xf32> to vector<2x32xf32>
      %307 = arith.addf %305, %306 : vector<2x32xf32>
      %c0_110 = arith.constant 0 : index
      %c0_111 = arith.constant 0 : index
      %308 = vector.load %arg19[%c0_110, %c0_111] : memref<32x64xbf16, #tpu.memory_space<vmem>>, vector<32x64xbf16>
      %309 = arith.truncf %307 : vector<2x32xf32> to vector<2x32xbf16>
      %cst_112 = arith.constant dense<0.000000e+00> : vector<2x64xf32>
      %310 = tpu.matmul %309, %308, %cst_112 {dimension_numbers = #tpu.dot_dimension_numbers<[1], [0], [0], [1], [0, 0, 1, 1], [], []>} : vector<2x32xbf16>, vector<32x64xbf16>, vector<2x64xf32> -> vector<2x64xf32>
      %311 = vector.extract_strided_slice %6 {offsets = [17, 0], sizes = [1, 64], strides = [1, 1]} : vector<21x128xf32> to vector<1x64xf32>
      %312 = vector.broadcast %311 : vector<1x64xf32> to vector<2x64xf32>
      %313 = arith.addf %310, %312 : vector<2x64xf32>
      %cst_113 = arith.constant dense<0.000000e+00> : vector<64xf32>
      %314 = vector.multi_reduction <add>, %313, %cst_113 [0] : vector<2x64xf32> to vector<64xf32>
      %315 = vector.shape_cast %314 : vector<64xf32> to vector<1x64xf32>
      %cst_114 = arith.constant 2.000000e+00 : f32
      %316 = vector.broadcast %cst_114 : f32 to vector<1x64xf32>
      %317 = arith.divf %315, %316 : vector<1x64xf32>
      %318 = vector.broadcast %317 : vector<1x64xf32> to vector<2x64xf32>
      %319 = arith.subf %313, %318 : vector<2x64xf32>
      %320 = arith.mulf %319, %319 : vector<2x64xf32>
      %cst_115 = arith.constant dense<0.000000e+00> : vector<64xf32>
      %321 = vector.multi_reduction <add>, %320, %cst_115 [0] : vector<2x64xf32> to vector<64xf32>
      %322 = vector.shape_cast %321 : vector<64xf32> to vector<1x64xf32>
      %cst_116 = arith.constant 2.000000e+00 : f32
      %323 = vector.broadcast %cst_116 : f32 to vector<1x64xf32>
      %324 = arith.divf %322, %323 : vector<1x64xf32>
      %325 = vector.broadcast %317 : vector<1x64xf32> to vector<2x64xf32>
      %326 = arith.subf %313, %325 : vector<2x64xf32>
      %cst_117 = arith.constant 9.99999974E-6 : f32
      %327 = vector.broadcast %cst_117 : f32 to vector<1x64xf32>
      %328 = arith.addf %324, %327 : vector<1x64xf32>
      %329 = math.rsqrt %328 : vector<1x64xf32>
      %330 = vector.broadcast %329 : vector<1x64xf32> to vector<2x64xf32>
      %331 = arith.mulf %326, %330 : vector<2x64xf32>
      %332 = vector.extract_strided_slice %6 {offsets = [18, 0], sizes = [1, 64], strides = [1, 1]} : vector<21x128xf32> to vector<1x64xf32>
      %333 = vector.broadcast %332 : vector<1x64xf32> to vector<2x64xf32>
      %334 = arith.mulf %331, %333 : vector<2x64xf32>
      %335 = vector.extract_strided_slice %6 {offsets = [19, 0], sizes = [1, 64], strides = [1, 1]} : vector<21x128xf32> to vector<1x64xf32>
      %336 = vector.broadcast %335 : vector<1x64xf32> to vector<2x64xf32>
      %337 = arith.addf %334, %336 : vector<2x64xf32>
      %cst_118 = arith.constant 0.000000e+00 : f32
      %338 = vector.broadcast %cst_118 : f32 to vector<2x64xf32>
      %339 = arith.maximumf %337, %338 : vector<2x64xf32>
      %c0_119 = arith.constant 0 : index
      %c0_120 = arith.constant 0 : index
      %340 = vector.load %arg20[%c0_119, %c0_120] : memref<64x32xbf16, #tpu.memory_space<vmem>>, vector<64x32xbf16>
      %341 = arith.truncf %339 : vector<2x64xf32> to vector<2x64xbf16>
      %cst_121 = arith.constant dense<0.000000e+00> : vector<2x32xf32>
      %342 = tpu.matmul %341, %340, %cst_121 {dimension_numbers = #tpu.dot_dimension_numbers<[1], [0], [0], [1], [0, 0, 1, 1], [], []>} : vector<2x64xbf16>, vector<64x32xbf16>, vector<2x32xf32> -> vector<2x32xf32>
      %343 = vector.extract_strided_slice %6 {offsets = [20, 0], sizes = [1, 32], strides = [1, 1]} : vector<21x128xf32> to vector<1x32xf32>
      %344 = vector.broadcast %343 : vector<1x32xf32> to vector<2x32xf32>
      %345 = arith.addf %342, %344 : vector<2x32xf32>
      %c0_122 = arith.constant 0 : index
      %c0_123 = arith.constant 0 : index
      %c0_124 = arith.constant 0 : index
      %346 = vector.load %arg22[%c0_122, %c0_123, %c0_124] : memref<1x2x32xf32, #tpu.memory_space<vmem>>, vector<1x2x32xf32>
      %347 = vector.shape_cast %346 : vector<1x2x32xf32> to vector<2x32xf32>
      %348 = vector.shape_cast %345 : vector<2x32xf32> to vector<1x2x32xf32>
      tpu.vector_store %arg22[%c0_122, %c0_123, %c0_124], %348 {strides = array<i32>} : memref<1x2x32xf32, #tpu.memory_space<vmem>>, vector<1x2x32xf32>,
    } else {
    }
    return
  }
  func.func @transform_0(%arg0: i32) -> (i32, i32, i32) {
    %c1_i32 = arith.constant 1 : i32
    %0 = arith.minsi %arg0, %c1_i32 : i32
    %c0_i32 = arith.constant 0 : i32
    %c0_i32_0 = arith.constant 0 : i32
    %c0_i32_1 = arith.constant 0 : i32
    return %0, %c0_i32, %c0_i32_0 : i32, i32, i32
  }
  func.func @transform_1(%arg0: i32) -> (i32, i32, i32) {
    %c1_i32 = arith.constant 1 : i32
    %0 = arith.minsi %arg0, %c1_i32 : i32
    %c0_i32 = arith.constant 0 : i32
    %c0_i32_0 = arith.constant 0 : i32
    %c0_i32_1 = arith.constant 0 : i32
    return %0, %c0_i32, %c0_i32_0 : i32, i32, i32
  }
  func.func @transform_2(%arg0: i32) -> (i32, i32, i32) {
    %c1_i32 = arith.constant 1 : i32
    %0 = arith.minsi %arg0, %c1_i32 : i32
    %c0_i32 = arith.constant 0 : i32
    %c0_i32_0 = arith.constant 0 : i32
    %c0_i32_1 = arith.constant 0 : i32
    return %0, %c0_i32, %c0_i32_0 : i32, i32, i32
  }
  func.func @transform_3(%arg0: i32) -> (i32, i32, i32) {
    %c1_i32 = arith.constant 1 : i32
    %0 = arith.minsi %arg0, %c1_i32 : i32
    %c0_i32 = arith.constant 0 : i32
    %c0_i32_0 = arith.constant 0 : i32
    %c0_i32_1 = arith.constant 0 : i32
    return %0, %c0_i32, %c0_i32_0 : i32, i32, i32
  }
  func.func @transform_4(%arg0: i32) -> (i32, i32, i32) {
    %c1_i32 = arith.constant 1 : i32
    %0 = arith.minsi %arg0, %c1_i32 : i32
    %c0_i32 = arith.constant 0 : i32
    %c0_i32_0 = arith.constant 0 : i32
    %c0_i32_1 = arith.constant 0 : i32
    return %0, %c0_i32, %c0_i32_0 : i32, i32, i32
  }
  func.func @transform_5(%arg0: i32) -> (i32, i32) {
    %c0_i32 = arith.constant 0 : i32
    %c0_i32_0 = arith.constant 0 : i32
    %c0_i32_1 = arith.constant 0 : i32
    return %c0_i32, %c0_i32_0 : i32, i32
  }
  func.func @transform_6(%arg0: i32) -> (i32, i32) {
    %c0_i32 = arith.constant 0 : i32
    %c0_i32_0 = arith.constant 0 : i32
    %c0_i32_1 = arith.constant 0 : i32
    return %c0_i32, %c0_i32_0 : i32, i32
  }
  func.func @transform_7(%arg0: i32) -> (i32, i32) {
    %c0_i32 = arith.constant 0 : i32
    %c0_i32_0 = arith.constant 0 : i32
    %c0_i32_1 = arith.constant 0 : i32
    return %c0_i32, %c0_i32_0 : i32, i32
  }
  func.func @transform_8(%arg0: i32) -> (i32, i32) {
    %c0_i32 = arith.constant 0 : i32
    %c0_i32_0 = arith.constant 0 : i32
    %c0_i32_1 = arith.constant 0 : i32
    return %c0_i32, %c0_i32_0 : i32, i32
  }
  func.func @transform_9(%arg0: i32) -> (i32, i32) {
    %c0_i32 = arith.constant 0 : i32
    %c0_i32_0 = arith.constant 0 : i32
    %c0_i32_1 = arith.constant 0 : i32
    return %c0_i32, %c0_i32_0 : i32, i32
  }
  func.func @transform_10(%arg0: i32) -> (i32, i32) {
    %c0_i32 = arith.constant 0 : i32
    %c0_i32_0 = arith.constant 0 : i32
    %c0_i32_1 = arith.constant 0 : i32
    return %c0_i32, %c0_i32_0 : i32, i32
  }
  func.func @transform_11(%arg0: i32) -> (i32, i32) {
    %c0_i32 = arith.constant 0 : i32
    %c0_i32_0 = arith.constant 0 : i32
    %c0_i32_1 = arith.constant 0 : i32
    return %c0_i32, %c0_i32_0 : i32, i32
  }
  func.func @transform_12(%arg0: i32) -> (i32, i32) {
    %c0_i32 = arith.constant 0 : i32
    %c0_i32_0 = arith.constant 0 : i32
    %c0_i32_1 = arith.constant 0 : i32
    return %c0_i32, %c0_i32_0 : i32, i32
  }
  func.func @transform_13(%arg0: i32) -> (i32, i32) {
    %c0_i32 = arith.constant 0 : i32
    %c0_i32_0 = arith.constant 0 : i32
    %c0_i32_1 = arith.constant 0 : i32
    return %c0_i32, %c0_i32_0 : i32, i32
  }
  func.func @transform_14(%arg0: i32) -> (i32, i32) {
    %c0_i32 = arith.constant 0 : i32
    %c0_i32_0 = arith.constant 0 : i32
    %c0_i32_1 = arith.constant 0 : i32
    return %c0_i32, %c0_i32_0 : i32, i32
  }
  func.func @transform_15(%arg0: i32) -> (i32, i32) {
    %c0_i32 = arith.constant 0 : i32
    %c0_i32_0 = arith.constant 0 : i32
    %c0_i32_1 = arith.constant 0 : i32
    return %c0_i32, %c0_i32_0 : i32, i32
  }
  func.func @transform_16(%arg0: i32) -> (i32, i32) {
    %c0_i32 = arith.constant 0 : i32
    %c0_i32_0 = arith.constant 0 : i32
    %c0_i32_1 = arith.constant 0 : i32
    return %c0_i32, %c0_i32_0 : i32, i32
  }
  func.func @transform_17(%arg0: i32) -> (i32, i32) {
    %c0_i32 = arith.constant 0 : i32
    %c0_i32_0 = arith.constant 0 : i32
    %c0_i32_1 = arith.constant 0 : i32
    return %c0_i32, %c0_i32_0 : i32, i32
  }
  func.func @transform_18(%arg0: i32) -> (i32, i32) {
    %c0_i32 = arith.constant 0 : i32
    %c0_i32_0 = arith.constant 0 : i32
    %c0_i32_1 = arith.constant 0 : i32
    return %c0_i32, %c0_i32_0 : i32, i32
  }
  func.func @transform_19(%arg0: i32) -> (i32, i32) {
    %c0_i32 = arith.constant 0 : i32
    %c0_i32_0 = arith.constant 0 : i32
    %c0_i32_1 = arith.constant 0 : i32
    return %c0_i32, %c0_i32_0 : i32, i32
  }
  func.func @transform_20(%arg0: i32) -> (i32, i32) {
    %c0_i32 = arith.constant 0 : i32
    %c0_i32_0 = arith.constant 0 : i32
    %c0_i32_1 = arith.constant 0 : i32
    return %c0_i32, %c0_i32_0 : i32, i32
  }
  func.func @transform_21(%arg0: i32) -> (i32, i32, i32) {
    %c0_i32 = arith.constant 0 : i32
    %c0_i32_0 = arith.constant 0 : i32
    %c0_i32_1 = arith.constant 0 : i32
    return %arg0, %c0_i32, %c0_i32_0 : i32, i32, i32
  }
}

</mosaic_0001>

<llo_original>
// kernel: forward.1
$region0: #{forward.1}
  #allocation0 [shape = 'u32[]', space=smem, size = 0x4, offset = 0x4, fixed_abs, tag = 'smem constant byte address 0x4 - core index']
  #allocation1 [shape = 'u32[72,128]{1,0:T(1,128)}', space=vmem, size = 0x9000, scoped, tag = 'internal scratch']
  %s0 = inlined_call_operand.vmem [shape: f32[2,128,16], index: 0, kind: input, shape index: {}]
  %s1 = inlined_call_operand.vmem [shape: bf16[2,16,32], index: 1, kind: input, shape index: {}]
  %s2 = inlined_call_operand.vmem [shape: bf16[2,32,64], index: 2, kind: input, shape index: {}]
  %s3 = inlined_call_operand.vmem [shape: bf16[2,64,32], index: 3, kind: input, shape index: {}]
  %s4 = inlined_call_operand.vmem [shape: f32[2,6,128], index: 4, kind: input, shape index: {}]
  %s5 = inlined_call_operand.vmem [shape: bf16[8,128], index: 5, kind: input, shape index: {}]
  %s6 = inlined_call_operand.vmem [shape: bf16[128,64], index: 6, kind: input, shape index: {}]
  %s7 = inlined_call_operand.vmem [shape: bf16[64,32], index: 7, kind: input, shape index: {}]
  %s8 = inlined_call_operand.vmem [shape: f32[16,64], index: 8, kind: input, shape index: {}]
  %s9 = inlined_call_operand.vmem [shape: bf16[64,32], index: 9, kind: input, shape index: {}]
  %s10 = inlined_call_operand.vmem [shape: f32[16,32], index: 10, kind: input, shape index: {}]
  %s11 = inlined_call_operand.vmem [shape: bf16[2,16], index: 11, kind: input, shape index: {}]
  %s12 = inlined_call_operand.vmem [shape: f32[64,64], index: 12, kind: input, shape index: {}]
  %s13 = inlined_call_operand.vmem [shape: bf16[256,24], index: 13, kind: input, shape index: {}]
  %s14 = inlined_call_operand.vmem [shape: f32[128,24], index: 14, kind: input, shape index: {}]
  %s15 = inlined_call_operand.vmem [shape: bf16[64,32], index: 15, kind: input, shape index: {}]
  %s16 = inlined_call_operand.vmem [shape: bf16[64,128], index: 16, kind: input, shape index: {}]
  %s17 = inlined_call_operand.vmem [shape: bf16[256,32], index: 17, kind: input, shape index: {}]
  %s18 = inlined_call_operand.vmem [shape: bf16[32,64], index: 18, kind: input, shape index: {}]
  %s19 = inlined_call_operand.vmem [shape: bf16[64,32], index: 19, kind: input, shape index: {}]
  %s20 = inlined_call_operand.vmem [shape: f32[21,128], index: 20, kind: input, shape index: {}]
  %s21 = inlined_call_operand.vmem [shape: f32[3,2,32], index: 21, kind: output, shape index: {}]
  %s22 = sld [smem:[#allocation0]]
  $region125: #{forward.1} parent=0
    _
  %s24 = ssub.s32 1, %s22
  %s25 = scalar_select 0, %s24, %s22
  loop: start=0, step=1, limit=5
  $region2: #{forward.1} parent=0 // loop_pre_header
    _
  $region3: #{forward.1} parent=0 // loop_header
    %s27 = sphi 0, %s31
    %p28 = scmp.ge.s32.totalorder %s27, 5
    %s41 = sphi 0, %s43
    %s44 = sphi 0, %s41
    %s45 = sphi 0, %s44
    %s61 = sphi 0, %s45
    %s71 = sphi 0, %s73
    %s74 = sphi 0, %s71
    %s75 = sphi 0, %s74
    %s91 = sphi 0, %s75
    %s101 = sphi 0, %s103
    %s104 = sphi 0, %s101
    %s105 = sphi 0, %s104
    %s121 = sphi 0, %s105
    %s131 = sphi 0, %s133
    %s134 = sphi 0, %s131
    %s135 = sphi 0, %s134
    %s151 = sphi 0, %s135
    %s161 = sphi 0, %s163
    %s164 = sphi 0, %s161
    %s165 = sphi 0, %s164
    %s181 = sphi 0, %s165
    %s185 = sphi 0, %s185
    %s187 = sphi 0, %s185
    %s188 = sphi 0, %s187
    %s202 = sphi 0, %s188
    %s206 = sphi 0, %s206
    %s208 = sphi 0, %s206
    %s209 = sphi 0, %s208
    %s223 = sphi 0, %s209
    %s227 = sphi 0, %s227
    %s229 = sphi 0, %s227
    %s230 = sphi 0, %s229
    %s244 = sphi 0, %s230
    %s248 = sphi 0, %s248
    %s250 = sphi 0, %s248
    %s251 = sphi 0, %s250
    %s265 = sphi 0, %s251
    %s269 = sphi 0, %s269
    %s271 = sphi 0, %s269
    %s272 = sphi 0, %s271
    %s286 = sphi 0, %s272
    %s290 = sphi 0, %s290
    %s292 = sphi 0, %s290
    %s293 = sphi 0, %s292
    %s307 = sphi 0, %s293
    %s311 = sphi 0, %s311
    %s313 = sphi 0, %s311
    %s314 = sphi 0, %s313
    %s328 = sphi 0, %s314
    %s332 = sphi 0, %s332
    %s334 = sphi 0, %s332
    %s335 = sphi 0, %s334
    %s349 = sphi 0, %s335
    %s353 = sphi 0, %s353
    %s355 = sphi 0, %s353
    %s356 = sphi 0, %s355
    %s370 = sphi 0, %s356
    %s374 = sphi 0, %s374
    %s376 = sphi 0, %s374
    %s377 = sphi 0, %s376
    %s391 = sphi 0, %s377
    %s395 = sphi 0, %s395
    %s397 = sphi 0, %s395
    %s398 = sphi 0, %s397
    %s412 = sphi 0, %s398
    %s416 = sphi 0, %s416
    %s418 = sphi 0, %s416
    %s419 = sphi 0, %s418
    %s433 = sphi 0, %s419
    %s437 = sphi 0, %s437
    %s439 = sphi 0, %s437
    %s440 = sphi 0, %s439
    %s454 = sphi 0, %s440
    %s458 = sphi 0, %s458
    %s460 = sphi 0, %s458
    %s461 = sphi 0, %s460
    %s475 = sphi 0, %s461
    %s479 = sphi 0, %s479
    %s481 = sphi 0, %s479
    %s482 = sphi 0, %s481
    %s496 = sphi 0, %s482
    %s500 = sphi 0, %s500
    %s502 = sphi 0, %s500
    %s503 = sphi 0, %s502
    %s517 = sphi 0, %s503
    %s523 = sphi 0, %s525
    %s526 = sphi 0, %s523
    %s527 = sphi 0, %s526
    %s543 = sphi 0, %s527
  $region4: #{forward.1} parent=0 // loop_header_branch
    %30 = sbr.rel (%p28) target = $region8
  $region5: #{forward.1} parent=0 // loop_body
    %s32 = ssub.s32 %s27, 1
    %s33 = ssub.s32 %s27, 2
    %s34 = sadd.s32 %s27, 1
    %p35 = scmp.lt.s32.totalorder %s27, 1
    %s36 = scalar_select %p35, %s27, 1
    %p37 = scmp.lt.s32.totalorder %s34, 1
    %s38 = scalar_select %p37, %s34, 1
    %s39 = ssub.s32 %s36, %s38
    %p40 = scmp.eq.s32.totalorder %s39, 0
    %s42 = sadd.s32 %s41, 1
    %s43 = scalar_select %p40, %s41, %s42
    %p46 = pneg %p40
    %p47 = scmp.eq.s32.totalorder %s27, 2
    %p48 = por %p46, %p47
    %p49 = scmp.ne.s32.totalorder %s41, %s44
    %p50 = scmp.eq.s32.totalorder %s27, 0
    %p51 = por %p49, %p50
    %p52 = scmp.ne.s32.totalorder %s41, %s44
    %p53 = scmp.eq.s32.totalorder %s32, 2
    %p54 = por %p52, %p53
    %p55 = scmp.ne.s32.totalorder %s44, %s45
    %p56 = scmp.eq.s32.totalorder %s32, 0
    %p57 = por %p55, %p56
    %p58 = scmp.ne.s32.totalorder %s44, %s45
    %p59 = scmp.eq.s32.totalorder %s33, 2
    %p60 = por %p58, %p59
    %p62 = scmp.ne.s32.totalorder %s45, %s61
    %p63 = scmp.eq.s32.totalorder %s33, 0
    %p64 = por %p62, %p63
    %p65 = scmp.lt.s32.totalorder %s27, 1
    %s66 = scalar_select %p65, %s27, 1
    %p67 = scmp.lt.s32.totalorder %s34, 1
    %s68 = scalar_select %p67, %s34, 1
    %s69 = ssub.s32 %s66, %s68
    %p70 = scmp.eq.s32.totalorder %s69, 0
    %s72 = sadd.s32 %s71, 1
    %s73 = scalar_select %p70, %s71, %s72
    %p76 = pneg %p70
    %p77 = scmp.eq.s32.totalorder %s27, 2
    %p78 = por %p76, %p77
    %p79 = scmp.ne.s32.totalorder %s71, %s74
    %p80 = scmp.eq.s32.totalorder %s27, 0
    %p81 = por %p79, %p80
    %p82 = scmp.ne.s32.totalorder %s71, %s74
    %p83 = scmp.eq.s32.totalorder %s32, 2
    %p84 = por %p82, %p83
    %p85 = scmp.ne.s32.totalorder %s74, %s75
    %p86 = scmp.eq.s32.totalorder %s32, 0
    %p87 = por %p85, %p86
    %p88 = scmp.ne.s32.totalorder %s74, %s75
    %p89 = scmp.eq.s32.totalorder %s33, 2
    %p90 = por %p88, %p89
    %p92 = scmp.ne.s32.totalorder %s75, %s91
    %p93 = scmp.eq.s32.totalorder %s33, 0
    %p94 = por %p92, %p93
    %p95 = scmp.lt.s32.totalorder %s27, 1
    %s96 = scalar_select %p95, %s27, 1
    %p97 = scmp.lt.s32.totalorder %s34, 1
    %s98 = scalar_select %p97, %s34, 1
    %s99 = ssub.s32 %s96, %s98
    %p100 = scmp.eq.s32.totalorder %s99, 0
    %s102 = sadd.s32 %s101, 1
    %s103 = scalar_select %p100, %s101, %s102
    %p106 = pneg %p100
    %p107 = scmp.eq.s32.totalorder %s27, 2
    %p108 = por %p106, %p107
    %p109 = scmp.ne.s32.totalorder %s101, %s104
    %p110 = scmp.eq.s32.totalorder %s27, 0
    %p111 = por %p109, %p110
    %p112 = scmp.ne.s32.totalorder %s101, %s104
    %p113 = scmp.eq.s32.totalorder %s32, 2
    %p114 = por %p112, %p113
    %p115 = scmp.ne.s32.totalorder %s104, %s105
    %p116 = scmp.eq.s32.totalorder %s32, 0
    %p117 = por %p115, %p116
    %p118 = scmp.ne.s32.totalorder %s104, %s105
    %p119 = scmp.eq.s32.totalorder %s33, 2
    %p120 = por %p118, %p119
    %p122 = scmp.ne.s32.totalorder %s105, %s121
    %p123 = scmp.eq.s32.totalorder %s33, 0
    %p124 = por %p122, %p123
    %p125 = scmp.lt.s32.totalorder %s27, 1
    %s126 = scalar_select %p125, %s27, 1
    %p127 = scmp.lt.s32.totalorder %s34, 1
    %s128 = scalar_select %p127, %s34, 1
    %s129 = ssub.s32 %s126, %s128
    %p130 = scmp.eq.s32.totalorder %s129, 0
    %s132 = sadd.s32 %s131, 1
    %s133 = scalar_select %p130, %s131, %s132
    %p136 = pneg %p130
    %p137 = scmp.eq.s32.totalorder %s27, 2
    %p138 = por %p136, %p137
    %p139 = scmp.ne.s32.totalorder %s131, %s134
    %p140 = scmp.eq.s32.totalorder %s27, 0
    %p141 = por %p139, %p140
    %p142 = scmp.ne.s32.totalorder %s131, %s134
    %p143 = scmp.eq.s32.totalorder %s32, 2
    %p144 = por %p142, %p143
    %p145 = scmp.ne.s32.totalorder %s134, %s135
    %p146 = scmp.eq.s32.totalorder %s32, 0
    %p147 = por %p145, %p146
    %p148 = scmp.ne.s32.totalorder %s134, %s135
    %p149 = scmp.eq.s32.totalorder %s33, 2
    %p150 = por %p148, %p149
    %p152 = scmp.ne.s32.totalorder %s135, %s151
    %p153 = scmp.eq.s32.totalorder %s33, 0
    %p154 = por %p152, %p153
    %p155 = scmp.lt.s32.totalorder %s27, 1
    %s156 = scalar_select %p155, %s27, 1
    %p157 = scmp.lt.s32.totalorder %s34, 1
    %s158 = scalar_select %p157, %s34, 1
    %s159 = ssub.s32 %s156, %s158
    %p160 = scmp.eq.s32.totalorder %s159, 0
    %s162 = sadd.s32 %s161, 1
    %s163 = scalar_select %p160, %s161, %s162
    %p166 = pneg %p160
    %p167 = scmp.eq.s32.totalorder %s27, 2
    %p168 = por %p166, %p167
    %p169 = scmp.ne.s32.totalorder %s161, %s164
    %p170 = scmp.eq.s32.totalorder %s27, 0
    %p171 = por %p169, %p170
    %p172 = scmp.ne.s32.totalorder %s161, %s164
    %p173 = scmp.eq.s32.totalorder %s32, 2
    %p174 = por %p172, %p173
    %p175 = scmp.ne.s32.totalorder %s164, %s165
    %p176 = scmp.eq.s32.totalorder %s32, 0
    %p177 = por %p175, %p176
    %p178 = scmp.ne.s32.totalorder %s164, %s165
    %p179 = scmp.eq.s32.totalorder %s33, 2
    %p180 = por %p178, %p179
    %p182 = scmp.ne.s32.totalorder %s165, %s181
    %p183 = scmp.eq.s32.totalorder %s33, 0
    %p184 = por %p182, %p183
    %s186 = sadd.s32 %s185, 1
    %p189 = scmp.eq.s32.totalorder %s27, 2
    %p190 = scmp.ne.s32.totalorder %s185, %s187
    %p191 = scmp.eq.s32.totalorder %s27, 0
    %p192 = por %p190, %p191
    %p193 = scmp.ne.s32.totalorder %s185, %s187
    %p194 = scmp.eq.s32.totalorder %s32, 2
    %p195 = por %p193, %p194
    %p196 = scmp.ne.s32.totalorder %s187, %s188
    %p197 = scmp.eq.s32.totalorder %s32, 0
    %p198 = por %p196, %p197
    %p199 = scmp.ne.s32.totalorder %s187, %s188
    %p200 = scmp.eq.s32.totalorder %s33, 2
    %p201 = por %p199, %p200
    %p203 = scmp.ne.s32.totalorder %s188, %s202
    %p204 = scmp.eq.s32.totalorder %s33, 0
    %p205 = por %p203, %p204
    %s207 = sadd.s32 %s206, 1
    %p210 = scmp.eq.s32.totalorder %s27, 2
    %p211 = scmp.ne.s32.totalorder %s206, %s208
    %p212 = scmp.eq.s32.totalorder %s27, 0
    %p213 = por %p211, %p212
    %p214 = scmp.ne.s32.totalorder %s206, %s208
    %p215 = scmp.eq.s32.totalorder %s32, 2
    %p216 = por %p214, %p215
    %p217 = scmp.ne.s32.totalorder %s208, %s209
    %p218 = scmp.eq.s32.totalorder %s32, 0
    %p219 = por %p217, %p218
    %p220 = scmp.ne.s32.totalorder %s208, %s209
    %p221 = scmp.eq.s32.totalorder %s33, 2
    %p222 = por %p220, %p221
    %p224 = scmp.ne.s32.totalorder %s209, %s223
    %p225 = scmp.eq.s32.totalorder %s33, 0
    %p226 = por %p224, %p225
    %s228 = sadd.s32 %s227, 1
    %p231 = scmp.eq.s32.totalorder %s27, 2
    %p232 = scmp.ne.s32.totalorder %s227, %s229
    %p233 = scmp.eq.s32.totalorder %s27, 0
    %p234 = por %p232, %p233
    %p235 = scmp.ne.s32.totalorder %s227, %s229
    %p236 = scmp.eq.s32.totalorder %s32, 2
    %p237 = por %p235, %p236
    %p238 = scmp.ne.s32.totalorder %s229, %s230
    %p239 = scmp.eq.s32.totalorder %s32, 0
    %p240 = por %p238, %p239
    %p241 = scmp.ne.s32.totalorder %s229, %s230
    %p242 = scmp.eq.s32.totalorder %s33, 2
    %p243 = por %p241, %p242
    %p245 = scmp.ne.s32.totalorder %s230, %s244
    %p246 = scmp.eq.s32.totalorder %s33, 0
    %p247 = por %p245, %p246
    %s249 = sadd.s32 %s248, 1
    %p252 = scmp.eq.s32.totalorder %s27, 2
    %p253 = scmp.ne.s32.totalorder %s248, %s250
    %p254 = scmp.eq.s32.totalorder %s27, 0
    %p255 = por %p253, %p254
    %p256 = scmp.ne.s32.totalorder %s248, %s250
    %p257 = scmp.eq.s32.totalorder %s32, 2
    %p258 = por %p256, %p257
    %p259 = scmp.ne.s32.totalorder %s250, %s251
    %p260 = scmp.eq.s32.totalorder %s32, 0
    %p261 = por %p259, %p260
    %p262 = scmp.ne.s32.totalorder %s250, %s251
    %p263 = scmp.eq.s32.totalorder %s33, 2
    %p264 = por %p262, %p263
    %p266 = scmp.ne.s32.totalorder %s251, %s265
    %p267 = scmp.eq.s32.totalorder %s33, 0
    %p268 = por %p266, %p267
    %s270 = sadd.s32 %s269, 1
    %p273 = scmp.eq.s32.totalorder %s27, 2
    %p274 = scmp.ne.s32.totalorder %s269, %s271
    %p275 = scmp.eq.s32.totalorder %s27, 0
    %p276 = por %p274, %p275
    %p277 = scmp.ne.s32.totalorder %s269, %s271
    %p278 = scmp.eq.s32.totalorder %s32, 2
    %p279 = por %p277, %p278
    %p280 = scmp.ne.s32.totalorder %s271, %s272
    %p281 = scmp.eq.s32.totalorder %s32, 0
    %p282 = por %p280, %p281
    %p283 = scmp.ne.s32.totalorder %s271, %s272
    %p284 = scmp.eq.s32.totalorder %s33, 2
    %p285 = por %p283, %p284
    %p287 = scmp.ne.s32.totalorder %s272, %s286
    %p288 = scmp.eq.s32.totalorder %s33, 0
    %p289 = por %p287, %p288
    %s291 = sadd.s32 %s290, 1
    %p294 = scmp.eq.s32.totalorder %s27, 2
    %p295 = scmp.ne.s32.totalorder %s290, %s292
    %p296 = scmp.eq.s32.totalorder %s27, 0
    %p297 = por %p295, %p296
    %p298 = scmp.ne.s32.totalorder %s290, %s292
    %p299 = scmp.eq.s32.totalorder %s32, 2
    %p300 = por %p298, %p299
    %p301 = scmp.ne.s32.totalorder %s292, %s293
    %p302 = scmp.eq.s32.totalorder %s32, 0
    %p303 = por %p301, %p302
    %p304 = scmp.ne.s32.totalorder %s292, %s293
    %p305 = scmp.eq.s32.totalorder %s33, 2
    %p306 = por %p304, %p305
    %p308 = scmp.ne.s32.totalorder %s293, %s307
    %p309 = scmp.eq.s32.totalorder %s33, 0
    %p310 = por %p308, %p309
    %s312 = sadd.s32 %s311, 1
    %p315 = scmp.eq.s32.totalorder %s27, 2
    %p316 = scmp.ne.s32.totalorder %s311, %s313
    %p317 = scmp.eq.s32.totalorder %s27, 0
    %p318 = por %p316, %p317
    %p319 = scmp.ne.s32.totalorder %s311, %s313
    %p320 = scmp.eq.s32.totalorder %s32, 2
    %p321 = por %p319, %p320
    %p322 = scmp.ne.s32.totalorder %s313, %s314
    %p323 = scmp.eq.s32.totalorder %s32, 0
    %p324 = por %p322, %p323
    %p325 = scmp.ne.s32.totalorder %s313, %s314
    %p326 = scmp.eq.s32.totalorder %s33, 2
    %p327 = por %p325, %p326
    %p329 = scmp.ne.s32.totalorder %s314, %s328
    %p330 = scmp.eq.s32.totalorder %s33, 0
    %p331 = por %p329, %p330
    %s333 = sadd.s32 %s332, 1
    %p336 = scmp.eq.s32.totalorder %s27, 2
    %p337 = scmp.ne.s32.totalorder %s332, %s334
    %p338 = scmp.eq.s32.totalorder %s27, 0
    %p339 = por %p337, %p338
    %p340 = scmp.ne.s32.totalorder %s332, %s334
    %p341 = scmp.eq.s32.totalorder %s32, 2
    %p342 = por %p340, %p341
    %p343 = scmp.ne.s32.totalorder %s334, %s335
    %p344 = scmp.eq.s32.totalorder %s32, 0
    %p345 = por %p343, %p344
    %p346 = scmp.ne.s32.totalorder %s334, %s335
    %p347 = scmp.eq.s32.totalorder %s33, 2
    %p348 = por %p346, %p347
    %p350 = scmp.ne.s32.totalorder %s335, %s349
    %p351 = scmp.eq.s32.totalorder %s33, 0
    %p352 = por %p350, %p351
    %s354 = sadd.s32 %s353, 1
    %p357 = scmp.eq.s32.totalorder %s27, 2
    %p358 = scmp.ne.s32.totalorder %s353, %s355
    %p359 = scmp.eq.s32.totalorder %s27, 0
    %p360 = por %p358, %p359
    %p361 = scmp.ne.s32.totalorder %s353, %s355
    %p362 = scmp.eq.s32.totalorder %s32, 2
    %p363 = por %p361, %p362
    %p364 = scmp.ne.s32.totalorder %s355, %s356
    %p365 = scmp.eq.s32.totalorder %s32, 0
    %p366 = por %p364, %p365
    %p367 = scmp.ne.s32.totalorder %s355, %s356
    %p368 = scmp.eq.s32.totalorder %s33, 2
    %p369 = por %p367, %p368
    %p371 = scmp.ne.s32.totalorder %s356, %s370
    %p372 = scmp.eq.s32.totalorder %s33, 0
    %p373 = por %p371, %p372
    %s375 = sadd.s32 %s374, 1
    %p378 = scmp.eq.s32.totalorder %s27, 2
    %p379 = scmp.ne.s32.totalorder %s374, %s376
    %p380 = scmp.eq.s32.totalorder %s27, 0
    %p381 = por %p379, %p380
    %p382 = scmp.ne.s32.totalorder %s374, %s376
    %p383 = scmp.eq.s32.totalorder %s32, 2
    %p384 = por %p382, %p383
    %p385 = scmp.ne.s32.totalorder %s376, %s377
    %p386 = scmp.eq.s32.totalorder %s32, 0
    %p387 = por %p385, %p386
    %p388 = scmp.ne.s32.totalorder %s376, %s377
    %p389 = scmp.eq.s32.totalorder %s33, 2
    %p390 = por %p388, %p389
    %p392 = scmp.ne.s32.totalorder %s377, %s391
    %p393 = scmp.eq.s32.totalorder %s33, 0
    %p394 = por %p392, %p393
    %s396 = sadd.s32 %s395, 1
    %p399 = scmp.eq.s32.totalorder %s27, 2
    %p400 = scmp.ne.s32.totalorder %s395, %s397
    %p401 = scmp.eq.s32.totalorder %s27, 0
    %p402 = por %p400, %p401
    %p403 = scmp.ne.s32.totalorder %s395, %s397
    %p404 = scmp.eq.s32.totalorder %s32, 2
    %p405 = por %p403, %p404
    %p406 = scmp.ne.s32.totalorder %s397, %s398
    %p407 = scmp.eq.s32.totalorder %s32, 0
    %p408 = por %p406, %p407
    %p409 = scmp.ne.s32.totalorder %s397, %s398
    %p410 = scmp.eq.s32.totalorder %s33, 2
    %p411 = por %p409, %p410
    %p413 = scmp.ne.s32.totalorder %s398, %s412
    %p414 = scmp.eq.s32.totalorder %s33, 0
    %p415 = por %p413, %p414
    %s417 = sadd.s32 %s416, 1
    %p420 = scmp.eq.s32.totalorder %s27, 2
    %p421 = scmp.ne.s32.totalorder %s416, %s418
    %p422 = scmp.eq.s32.totalorder %s27, 0
    %p423 = por %p421, %p422
    %p424 = scmp.ne.s32.totalorder %s416, %s418
    %p425 = scmp.eq.s32.totalorder %s32, 2
    %p426 = por %p424, %p425
    %p427 = scmp.ne.s32.totalorder %s418, %s419
    %p428 = scmp.eq.s32.totalorder %s32, 0
    %p429 = por %p427, %p428
    %p430 = scmp.ne.s32.totalorder %s418, %s419
    %p431 = scmp.eq.s32.totalorder %s33, 2
    %p432 = por %p430, %p431
    %p434 = scmp.ne.s32.totalorder %s419, %s433
    %p435 = scmp.eq.s32.totalorder %s33, 0
    %p436 = por %p434, %p435
    %s438 = sadd.s32 %s437, 1
    %p441 = scmp.eq.s32.totalorder %s27, 2
    %p442 = scmp.ne.s32.totalorder %s437, %s439
    %p443 = scmp.eq.s32.totalorder %s27, 0
    %p444 = por %p442, %p443
    %p445 = scmp.ne.s32.totalorder %s437, %s439
    %p446 = scmp.eq.s32.totalorder %s32, 2
    %p447 = por %p445, %p446
    %p448 = scmp.ne.s32.totalorder %s439, %s440
    %p449 = scmp.eq.s32.totalorder %s32, 0
    %p450 = por %p448, %p449
    %p451 = scmp.ne.s32.totalorder %s439, %s440
    %p452 = scmp.eq.s32.totalorder %s33, 2
    %p453 = por %p451, %p452
    %p455 = scmp.ne.s32.totalorder %s440, %s454
    %p456 = scmp.eq.s32.totalorder %s33, 0
    %p457 = por %p455, %p456
    %s459 = sadd.s32 %s458, 1
    %p462 = scmp.eq.s32.totalorder %s27, 2
    %p463 = scmp.ne.s32.totalorder %s458, %s460
    %p464 = scmp.eq.s32.totalorder %s27, 0
    %p465 = por %p463, %p464
    %p466 = scmp.ne.s32.totalorder %s458, %s460
    %p467 = scmp.eq.s32.totalorder %s32, 2
    %p468 = por %p466, %p467
    %p469 = scmp.ne.s32.totalorder %s460, %s461
    %p470 = scmp.eq.s32.totalorder %s32, 0
    %p471 = por %p469, %p470
    %p472 = scmp.ne.s32.totalorder %s460, %s461
    %p473 = scmp.eq.s32.totalorder %s33, 2
    %p474 = por %p472, %p473
    %p476 = scmp.ne.s32.totalorder %s461, %s475
    %p477 = scmp.eq.s32.totalorder %s33, 0
    %p478 = por %p476, %p477
    %s480 = sadd.s32 %s479, 1
    %p483 = scmp.eq.s32.totalorder %s27, 2
    %p484 = scmp.ne.s32.totalorder %s479, %s481
    %p485 = scmp.eq.s32.totalorder %s27, 0
    %p486 = por %p484, %p485
    %p487 = scmp.ne.s32.totalorder %s479, %s481
    %p488 = scmp.eq.s32.totalorder %s32, 2
    %p489 = por %p487, %p488
    %p490 = scmp.ne.s32.totalorder %s481, %s482
    %p491 = scmp.eq.s32.totalorder %s32, 0
    %p492 = por %p490, %p491
    %p493 = scmp.ne.s32.totalorder %s481, %s482
    %p494 = scmp.eq.s32.totalorder %s33, 2
    %p495 = por %p493, %p494
    %p497 = scmp.ne.s32.totalorder %s482, %s496
    %p498 = scmp.eq.s32.totalorder %s33, 0
    %p499 = por %p497, %p498
    %s501 = sadd.s32 %s500, 1
    %p504 = scmp.eq.s32.totalorder %s27, 2
    %p505 = scmp.ne.s32.totalorder %s500, %s502
    %p506 = scmp.eq.s32.totalorder %s27, 0
    %p507 = por %p505, %p506
    %p508 = scmp.ne.s32.totalorder %s500, %s502
    %p509 = scmp.eq.s32.totalorder %s32, 2
    %p510 = por %p508, %p509
    %p511 = scmp.ne.s32.totalorder %s502, %s503
    %p512 = scmp.eq.s32.totalorder %s32, 0
    %p513 = por %p511, %p512
    %p514 = scmp.ne.s32.totalorder %s502, %s503
    %p515 = scmp.eq.s32.totalorder %s33, 2
    %p516 = por %p514, %p515
    %p518 = scmp.ne.s32.totalorder %s503, %s517
    %p519 = scmp.eq.s32.totalorder %s33, 0
    %p520 = por %p518, %p519
    %s521 = ssub.s32 %s27, %s34
    %p522 = scmp.eq.s32.totalorder %s521, 0
    %s524 = sadd.s32 %s523, 1
    %s525 = scalar_select %p522, %s523, %s524
    %p528 = pneg %p522
    %p529 = scmp.eq.s32.totalorder %s27, 2
    %p530 = por %p528, %p529
    %p531 = scmp.ne.s32.totalorder %s523, %s526
    %p532 = scmp.eq.s32.totalorder %s27, 0
    %p533 = por %p531, %p532
    %p534 = scmp.ne.s32.totalorder %s523, %s526
    %p535 = scmp.eq.s32.totalorder %s32, 2
    %p536 = por %p534, %p535
    %p537 = scmp.ne.s32.totalorder %s526, %s527
    %p538 = scmp.eq.s32.totalorder %s32, 0
    %p539 = por %p537, %p538
    %p540 = scmp.ne.s32.totalorder %s526, %s527
    %p541 = scmp.eq.s32.totalorder %s33, 2
    %p542 = por %p540, %p541
    %p544 = scmp.ne.s32.totalorder %s527, %s543
    %p545 = scmp.eq.s32.totalorder %s33, 0
    %p546 = por %p544, %p545
    %p547 = scmp.le.s32.totalorder 1, %s27
    %p548 = scmp.lt.s32.totalorder %s27, 4
    %p549 = pnand %p547, %p548
    %p550 = pneg %p549
    // Predicated region
    $region9: #{forward.1} parent=5 // pred_check
      _
    $region10: #{forward.1} parent=5 // pred_check_branch
      %552 = sbr.rel (%p549) target = $region12
    $region11: #{forward.1} parent=5 // pred_region
      %s553 = ssub.s32 %s27, 1
      // Predicated region
      $region13: #{forward.1} parent=11 // pred_check
        %p554 = pneg %p198
      $region14: #{forward.1} parent=11 // pred_check_branch
        %556 = sbr.rel (%p554) target = $region16
      $region15: #{forward.1} parent=11 // pred_region
        _
      $region16: #{forward.1} parent=11 // pred_fallthru
        _
      // Predicated region
      $region17: #{forward.1} parent=11 // pred_check
        %p557 = pneg %p219
      $region18: #{forward.1} parent=11 // pred_check_branch
        %559 = sbr.rel (%p557) target = $region20
      $region19: #{forward.1} parent=11 // pred_region
        _
      $region20: #{forward.1} parent=11 // pred_fallthru
        _
      // Predicated region
      $region21: #{forward.1} parent=11 // pred_check
        %p560 = pneg %p240
      $region22: #{forward.1} parent=11 // pred_check_branch
        %562 = sbr.rel (%p560) target = $region24
      $region23: #{forward.1} parent=11 // pred_region
        _
      $region24: #{forward.1} parent=11 // pred_fallthru
        _
      // Predicated region
      $region25: #{forward.1} parent=11 // pred_check
        %p563 = pneg %p261
      $region26: #{forward.1} parent=11 // pred_check_branch
        %565 = sbr.rel (%p563) target = $region28
      $region27: #{forward.1} parent=11 // pred_region
        _
      $region28: #{forward.1} parent=11 // pred_fallthru
        _
      // Predicated region
      $region29: #{forward.1} parent=11 // pred_check
        %p566 = pneg %p282
      $region30: #{forward.1} parent=11 // pred_check_branch
        %568 = sbr.rel (%p566) target = $region32
      $region31: #{forward.1} parent=11 // pred_region
        _
      $region32: #{forward.1} parent=11 // pred_fallthru
        _
      // Predicated region
      $region33: #{forward.1} parent=11 // pred_check
        %p569 = pneg %p303
      $region34: #{forward.1} parent=11 // pred_check_branch
        %571 = sbr.rel (%p569) target = $region36
      $region35: #{forward.1} parent=11 // pred_region
        _
      $region36: #{forward.1} parent=11 // pred_fallthru
        _
      // Predicated region
      $region37: #{forward.1} parent=11 // pred_check
        %p572 = pneg %p324
      $region38: #{forward.1} parent=11 // pred_check_branch
        %574 = sbr.rel (%p572) target = $region40
      $region39: #{forward.1} parent=11 // pred_region
        _
      $region40: #{forward.1} parent=11 // pred_fallthru
        _
      // Predicated region
      $region41: #{forward.1} parent=11 // pred_check
        %p575 = pneg %p345
      $region42: #{forward.1} parent=11 // pred_check_branch
        %577 = sbr.rel (%p575) target = $region44
      $region43: #{forward.1} parent=11 // pred_region
        _
      $region44: #{forward.1} parent=11 // pred_fallthru
        _
      // Predicated region
      $region45: #{forward.1} parent=11 // pred_check
        %p578 = pneg %p366
      $region46: #{forward.1} parent=11 // pred_check_branch
        %580 = sbr.rel (%p578) target = $region48
      $region47: #{forward.1} parent=11 // pred_region
        _
      $region48: #{forward.1} parent=11 // pred_fallthru
        _
      // Predicated region
      $region49: #{forward.1} parent=11 // pred_check
        %p581 = pneg %p387
      $region50: #{forward.1} parent=11 // pred_check_branch
        %583 = sbr.rel (%p581) target = $region52
      $region51: #{forward.1} parent=11 // pred_region
        _
      $region52: #{forward.1} parent=11 // pred_fallthru
        _
      // Predicated region
      $region53: #{forward.1} parent=11 // pred_check
        %p584 = pneg %p408
      $region54: #{forward.1} parent=11 // pred_check_branch
        %586 = sbr.rel (%p584) target = $region56
      $region55: #{forward.1} parent=11 // pred_region
        _
      $region56: #{forward.1} parent=11 // pred_fallthru
        _
      // Predicated region
      $region57: #{forward.1} parent=11 // pred_check
        %p587 = pneg %p429
      $region58: #{forward.1} parent=11 // pred_check_branch
        %589 = sbr.rel (%p587) target = $region60
      $region59: #{forward.1} parent=11 // pred_region
        _
      $region60: #{forward.1} parent=11 // pred_fallthru
        _
      // Predicated region
      $region61: #{forward.1} parent=11 // pred_check
        %p590 = pneg %p450
      $region62: #{forward.1} parent=11 // pred_check_branch
        %592 = sbr.rel (%p590) target = $region64
      $region63: #{forward.1} parent=11 // pred_region
        _
      $region64: #{forward.1} parent=11 // pred_fallthru
        _
      // Predicated region
      $region65: #{forward.1} parent=11 // pred_check
        %p593 = pneg %p471
      $region66: #{forward.1} parent=11 // pred_check_branch
        %595 = sbr.rel (%p593) target = $region68
      $region67: #{forward.1} parent=11 // pred_region
        _
      $region68: #{forward.1} parent=11 // pred_fallthru
        _
      // Predicated region
      $region69: #{forward.1} parent=11 // pred_check
        %p596 = pneg %p492
      $region70: #{forward.1} parent=11 // pred_check_branch
        %598 = sbr.rel (%p596) target = $region72
      $region71: #{forward.1} parent=11 // pred_region
        _
      $region72: #{forward.1} parent=11 // pred_fallthru
        _
      // Predicated region
      $region73: #{forward.1} parent=11 // pred_check
        %p599 = pneg %p513
      $region74: #{forward.1} parent=11 // pred_check_branch
        %601 = sbr.rel (%p599) target = $region76
      $region75: #{forward.1} parent=11 // pred_region
        _
      $region76: #{forward.1} parent=11 // pred_fallthru
        _
    $region12: #{forward.1} parent=5 // pred_fallthru
      _
    %p602 = scmp.lt.s32.totalorder %s27, 3
    // Predicated region
    $region77: #{forward.1} parent=5 // pred_check
      %p603 = pneg %p602
    $region78: #{forward.1} parent=5 // pred_check_branch
      %605 = sbr.rel (%p603) target = $region80
    $region79: #{forward.1} parent=5 // pred_region
      // Predicated region
      $region81: #{forward.1} parent=79 // pred_check
        %p606 = pneg %p51
      $region82: #{forward.1} parent=79 // pred_check_branch
        %608 = sbr.rel (%p606) target = $region84
      $region83: #{forward.1} parent=79 // pred_region
        %p609 = scmp.lt.s32.totalorder %s27, 1
        %s610 = scalar_select %p609, %s27, 1
        %p611 = scmp.lt.s32.totalorder %s610, 1
        %s612 = scalar_select %p611, %s610, 1
        %s613 = smul.addr %s612, 16
        %s614 = smul.addr %s613, 8
        %s615 = scalar_lea.vmem %s0, %s614
        %p616 = scmp.lt.s32.totalorder %s27, 1
        %s617 = scalar_select %p616, %s27, 1
      $region84: #{forward.1} parent=79 // pred_fallthru
        _
      // Predicated region
      $region85: #{forward.1} parent=79 // pred_check
        %p618 = pneg %p81
      $region86: #{forward.1} parent=79 // pred_check_branch
        %620 = sbr.rel (%p618) target = $region88
      $region87: #{forward.1} parent=79 // pred_region
        %p621 = scmp.lt.s32.totalorder %s27, 1
        %s622 = scalar_select %p621, %s27, 1
        %p623 = scmp.lt.s32.totalorder %s622, 1
        %s624 = scalar_select %p623, %s622, 1
        %s625 = smul.addr %s624, 2
        %s626 = smul.addr %s625, 4
        %s627 = scalar_lea.vmem %s1, %s626
        %p628 = scmp.lt.s32.totalorder %s27, 1
        %s629 = scalar_select %p628, %s27, 1
      $region88: #{forward.1} parent=79 // pred_fallthru
        _
      // Predicated region
      $region89: #{forward.1} parent=79 // pred_check
        %p630 = pneg %p111
      $region90: #{forward.1} parent=79 // pred_check_branch
        %632 = sbr.rel (%p630) target = $region92
      $region91: #{forward.1} parent=79 // pred_region
        %p633 = scmp.lt.s32.totalorder %s27, 1
        %s634 = scalar_select %p633, %s27, 1
        %p635 = scmp.lt.s32.totalorder %s634, 1
        %s636 = scalar_select %p635, %s634, 1
        %s637 = smul.addr %s636, 4
        %s638 = smul.addr %s637, 4
        %s639 = scalar_lea.vmem %s2, %s638
        %p640 = scmp.lt.s32.totalorder %s27, 1
        %s641 = scalar_select %p640, %s27, 1
      $region92: #{forward.1} parent=79 // pred_fallthru
        _
      // Predicated region
      $region93: #{forward.1} parent=79 // pred_check
        %p642 = pneg %p141
      $region94: #{forward.1} parent=79 // pred_check_branch
        %644 = sbr.rel (%p642) target = $region96
      $region95: #{forward.1} parent=79 // pred_region
        %p645 = scmp.lt.s32.totalorder %s27, 1
        %s646 = scalar_select %p645, %s27, 1
        %p647 = scmp.lt.s32.totalorder %s646, 1
        %s648 = scalar_select %p647, %s646, 1
        %s649 = smul.addr %s648, 8
        %s650 = smul.addr %s649, 4
        %s651 = scalar_lea.vmem %s3, %s650
        %p652 = scmp.lt.s32.totalorder %s27, 1
        %s653 = scalar_select %p652, %s27, 1
      $region96: #{forward.1} parent=79 // pred_fallthru
        _
      // Predicated region
      $region97: #{forward.1} parent=79 // pred_check
        %p654 = pneg %p171
      $region98: #{forward.1} parent=79 // pred_check_branch
        %656 = sbr.rel (%p654) target = $region100
      $region99: #{forward.1} parent=79 // pred_region
        %p657 = scmp.lt.s32.totalorder %s27, 1
        %s658 = scalar_select %p657, %s27, 1
        %p659 = scmp.lt.s32.totalorder %s658, 1
        %s660 = scalar_select %p659, %s658, 1
        %s661 = smul.addr %s660, 8
        %s662 = scalar_lea.vmem %s4, %s661
        %p663 = scmp.lt.s32.totalorder %s27, 1
        %s664 = scalar_select %p663, %s27, 1
      $region100: #{forward.1} parent=79 // pred_fallthru
        _
    $region80: #{forward.1} parent=5 // pred_fallthru
      _
    %p665 = scmp.le.s32.totalorder 1, %s27
    %p666 = scmp.lt.s32.totalorder %s27, 4
    %p667 = pnand %p665, %p666
    %p668 = pneg %p667
    // Predicated region
    $region101: #{forward.1} parent=5 // pred_check
      _
    $region102: #{forward.1} parent=5 // pred_check_branch
      %670 = sbr.rel (%p667) target = $region104
    $region103: #{forward.1} parent=5 // pred_region
      %s671 = ssub.s32 %s27, 1
      %p672 = scmp.lt.s32.totalorder %s32, 1
      %s673 = scalar_select %p672, %s32, 1
      %p674 = scmp.lt.s32.totalorder %s673, 1
      %s675 = scalar_select %p674, %s673, 1
      %s676 = smul.addr %s675, 16
      %s677 = smul.addr %s676, 8
      %s678 = scalar_lea.vmem %s0, %s677
      %p679 = pneg %p57
      %p680 = pneg %p54
      %p681 = scmp.lt.s32.totalorder %s32, 1
      %s682 = scalar_select %p681, %s32, 1
      %p683 = scmp.lt.s32.totalorder %s682, 1
      %s684 = scalar_select %p683, %s682, 1
      %s685 = smul.addr %s684, 2
      %s686 = smul.addr %s685, 4
      %s687 = scalar_lea.vmem %s1, %s686
      %p688 = pneg %p87
      %p689 = pneg %p84
      %p690 = scmp.lt.s32.totalorder %s32, 1
      %s691 = scalar_select %p690, %s32, 1
      %p692 = scmp.lt.s32.totalorder %s691, 1
      %s693 = scalar_select %p692, %s691, 1
      %s694 = smul.addr %s693, 4
      %s695 = smul.addr %s694, 4
      %s696 = scalar_lea.vmem %s2, %s695
      %p697 = pneg %p117
      %p698 = pneg %p114
      %p699 = scmp.lt.s32.totalorder %s32, 1
      %s700 = scalar_select %p699, %s32, 1
      %p701 = scmp.lt.s32.totalorder %s700, 1
      %s702 = scalar_select %p701, %s700, 1
      %s703 = smul.addr %s702, 8
      %s704 = smul.addr %s703, 4
      %s705 = scalar_lea.vmem %s3, %s704
      %p706 = pneg %p147
      %p707 = pneg %p144
      %p708 = scmp.lt.s32.totalorder %s32, 1
      %s709 = scalar_select %p708, %s32, 1
      %p710 = scmp.lt.s32.totalorder %s709, 1
      %s711 = scalar_select %p710, %s709, 1
      %s712 = smul.addr %s711, 8
      %s713 = scalar_lea.vmem %s4, %s712
      %p714 = pneg %p177
      %p715 = pneg %p174
      %p716 = pneg %p198
      %p717 = pneg %p195
      %p718 = pneg %p219
      %p719 = pneg %p216
      %p720 = pneg %p240
      %p721 = pneg %p237
      %p722 = pneg %p261
      %p723 = pneg %p258
      %p724 = pneg %p282
      %p725 = pneg %p279
      %p726 = pneg %p303
      %p727 = pneg %p300
      %p728 = pneg %p324
      %p729 = pneg %p321
      %p730 = pneg %p345
      %p731 = pneg %p342
      %p732 = pneg %p366
      %p733 = pneg %p363
      %p734 = pneg %p387
      %p735 = pneg %p384
      %p736 = pneg %p408
      %p737 = pneg %p405
      %p738 = pneg %p429
      %p739 = pneg %p426
      %p740 = pneg %p450
      %p741 = pneg %p447
      %p742 = pneg %p471
      %p743 = pneg %p468
      %p744 = pneg %p492
      %p745 = pneg %p489
      %p746 = pneg %p513
      %p747 = pneg %p510
      %p748 = pneg %p539
      %p749 = pneg %p536
      %p750 = scmp.lt.s32.totalorder %s32, 2
      %s751 = scalar_select %p750, %s32, 2
      %s752 = smul.addr %s751, 2
      %s753 = scalar_lea.vmem %s21, %s752
      %p754 = scmp.lt.s32.totalorder %s32, 1
      %s755 = scalar_select %p754, %s32, 1
      %p756 = scmp.lt.s32.totalorder %s755, 1
      %s757 = scalar_select %p756, %s755, 1
      %s758 = smul.addr %s757, 16
      %s759 = smul.addr %s758, 8
      %s760 = scalar_lea.vmem %s0, %s759
      %p761 = scmp.lt.s32.totalorder %s32, 1
      %s762 = scalar_select %p761, %s32, 1
      %p763 = scmp.lt.s32.totalorder %s32, 1
      %s764 = scalar_select %p763, %s32, 1
      %p765 = scmp.lt.s32.totalorder %s764, 1
      %s766 = scalar_select %p765, %s764, 1
      %s767 = smul.addr %s766, 2
      %s768 = smul.addr %s767, 4
      %s769 = scalar_lea.vmem %s1, %s768
      %p770 = scmp.lt.s32.totalorder %s32, 1
      %s771 = scalar_select %p770, %s32, 1
      %p772 = scmp.lt.s32.totalorder %s32, 1
      %s773 = scalar_select %p772, %s32, 1
      %p774 = scmp.lt.s32.totalorder %s773, 1
      %s775 = scalar_select %p774, %s773, 1
      %s776 = smul.addr %s775, 4
      %s777 = smul.addr %s776, 4
      %s778 = scalar_lea.vmem %s2, %s777
      %p779 = scmp.lt.s32.totalorder %s32, 1
      %s780 = scalar_select %p779, %s32, 1
      %p781 = scmp.lt.s32.totalorder %s32, 1
      %s782 = scalar_select %p781, %s32, 1
      %p783 = scmp.lt.s32.totalorder %s782, 1
      %s784 = scalar_select %p783, %s782, 1
      %s785 = smul.addr %s784, 8
      %s786 = smul.addr %s785, 4
      %s787 = scalar_lea.vmem %s3, %s786
      %p788 = scmp.lt.s32.totalorder %s32, 1
      %s789 = scalar_select %p788, %s32, 1
      %p790 = scmp.lt.s32.totalorder %s32, 1
      %s791 = scalar_select %p790, %s32, 1
      %p792 = scmp.lt.s32.totalorder %s791, 1
      %s793 = scalar_select %p792, %s791, 1
      %s794 = smul.addr %s793, 8
      %s795 = scalar_lea.vmem %s4, %s794
      %p796 = scmp.lt.s32.totalorder %s32, 1
      %s797 = scalar_select %p796, %s32, 1
      %p798 = scmp.lt.s32.totalorder %s32, 2
      %s799 = scalar_select %p798, %s32, 2
      %s800 = smul.addr %s799, 2
      %s801 = scalar_lea.vmem %s21, %s800
      %p803 = scmp.lt.s32.totalorder %s32, 2
      // Predicated region
      $region105: #{forward.1} parent=103 // pred_check
        %p804 = pneg %p803
      $region106: #{forward.1} parent=103 // pred_check_branch
        %806 = sbr.rel (%p804) target = $region108
      $region107: #{forward.1} parent=103 // pred_region
        %v807 = vld [vmem:[%s795] sm:$0x3f]
        %v808 = vld [vmem:[%s760] sm:$0xff]
        %v809 = vld [vmem:[%s760 + $0x8] sm:$0xff]
        %v810 = vld [vmem:[%s760 + $0x10] sm:$0xff]
        %v811 = vld [vmem:[%s760 + $0x18] sm:$0xff]
        %v812 = vld [vmem:[%s760 + $0x20] sm:$0xff]
        %v813 = vld [vmem:[%s760 + $0x28] sm:$0xff]
        %v814 = vld [vmem:[%s760 + $0x30] sm:$0xff]
        %v815 = vld [vmem:[%s760 + $0x38] sm:$0xff]
        %v816 = vld [vmem:[%s760 + $0x40] sm:$0xff]
        %v817 = vld [vmem:[%s760 + $0x48] sm:$0xff]
        %v818 = vld [vmem:[%s760 + $0x50] sm:$0xff]
        %v819 = vld [vmem:[%s760 + $0x58] sm:$0xff]
        %v820 = vld [vmem:[%s760 + $0x60] sm:$0xff]
        %v821 = vld [vmem:[%s760 + $0x68] sm:$0xff]
        %v822 = vld [vmem:[%s760 + $0x70] sm:$0xff]
        %v823 = vld [vmem:[%s760 + $0x78] sm:$0xff]
        %v824 = vld [vmem:[%s769] sm:$0xf]
        %v825 = vld [vmem:[%s769 + $0x4] sm:$0xf]
        %v826 = vpack.c.bf16 %v809, %v808
        %v827 = vpack.c.bf16 %v811, %v810
        %v828 = vpack.c.bf16 %v813, %v812
        %v829 = vpack.c.bf16 %v815, %v814
        %v830 = vpack.c.bf16 %v817, %v816
        %v831 = vpack.c.bf16 %v819, %v818
        %v832 = vpack.c.bf16 %v821, %v820
        %v833 = vpack.c.bf16 %v823, %v822
        %v834 = vperm.slane %v807, 0
        %v837 = vunpack.c.l.b16 %v824
        %v838 = vunpack.c.l.b16 %v825
        %v839 = vpack.c.b16 %v838, %v837
        %vm841 = vcmask 130048
        %v843 = vsel %vm841, %v826, 0
        %v846 = vsel %vm841, %v827, 0
        %v849 = vsel %vm841, %v828, 0
        %v852 = vsel %vm841, %v829, 0
        %v855 = vsel %vm841, %v830, 0
        %v858 = vsel %vm841, %v831, 0
        %v861 = vsel %vm841, %v832, 0
        %v864 = vsel %vm841, %v833, 0
        %866 = vmatpush.bf16.msra.mxu0 0
        %867 = vmatpush.bf16.msra.mxu0 0
        %868 = vmatpush.bf16.msra.mxu0 0
        %869 = vmatpush.bf16.msra.mxu0 0
        %870 = vmatpush.bf16.msra.mxu0 0
        %871 = vmatpush.bf16.msra.mxu0 0
        %872 = vmatpush.bf16.msra.mxu0 0
        %873 = vmatpush.bf16.msra.mxu0 %v839
        %874 = vmatmul.bf16.gmra.mxu0 %v843
        %v875 = vpop.f32.mrf.mxu0
        %v876 = vadd.f32 %v834, %v875
        %v877 = vpop.f32.mrf.mxu0
        %v878 = vadd.f32 %v834, %v877
        %879 = vmatmul.bf16.gmra.mxu0 %v846
        %v880 = vpop.f32.mrf.mxu0
        %v881 = vadd.f32 %v834, %v880
        %v882 = vpop.f32.mrf.mxu0
        %v883 = vadd.f32 %v834, %v882
        %884 = vmatmul.bf16.gmra.mxu0 %v849
        %v885 = vpop.f32.mrf.mxu0
        %v886 = vadd.f32 %v834, %v885
        %v887 = vpop.f32.mrf.mxu0
        %v888 = vadd.f32 %v834, %v887
        %889 = vmatmul.bf16.gmra.mxu0 %v852
        %v890 = vpop.f32.mrf.mxu0
        %v891 = vadd.f32 %v834, %v890
        %v892 = vpop.f32.mrf.mxu0
        %v893 = vadd.f32 %v834, %v892
        %894 = vmatmul.bf16.gmra.mxu0 %v855
        %v895 = vpop.f32.mrf.mxu0
        %v896 = vadd.f32 %v834, %v895
        %v897 = vpop.f32.mrf.mxu0
        %v898 = vadd.f32 %v834, %v897
        %899 = vmatmul.bf16.gmra.mxu0 %v858
        %v900 = vpop.f32.mrf.mxu0
        %v901 = vadd.f32 %v834, %v900
        %v902 = vpop.f32.mrf.mxu0
        %v903 = vadd.f32 %v834, %v902
        %904 = vmatmul.bf16.gmra.mxu0 %v861
        %v905 = vpop.f32.mrf.mxu0
        %v906 = vadd.f32 %v834, %v905
        %v907 = vpop.f32.mrf.mxu0
        %v908 = vadd.f32 %v834, %v907
        %909 = vmatmul.bf16.gmra.mxu0 %v864
        %v910 = vpop.f32.mrf.mxu0
        %v911 = vadd.f32 %v834, %v910
        %v912 = vpop.f32.mrf.mxu0
        %v913 = vadd.f32 %v834, %v912
        %914 = vdwg.mxu0
        %v915 = vld [vmem:[%s5] sm:$0xf]
        %v916 = vpack.c.bf16 %v878, %v876
        %v917 = vpack.c.bf16 %v883, %v881
        %v918 = vpack.c.bf16 %v888, %v886
        %v919 = vpack.c.bf16 %v893, %v891
        %v920 = vpack.c.bf16 %v898, %v896
        %v921 = vpack.c.bf16 %v903, %v901
        %v922 = vpack.c.bf16 %v908, %v906
        %v923 = vpack.c.bf16 %v913, %v911
        %924 = vmatpush.bf16.msra.mxu0 %v923
        %925 = vmatpush.bf16.msra.mxu0 %v922
        %926 = vmatpush.bf16.msra.mxu0 %v921
        %927 = vmatpush.bf16.msra.mxu0 %v920
        %928 = vmatpush.bf16.msra.mxu0 %v919
        %929 = vmatpush.bf16.msra.mxu0 %v918
        %930 = vmatpush.bf16.msra.mxu0 %v917
        %931 = vmatpush.bf16.msra.mxu0 %v916
        %932 = vmatmul.bf16.gmra.mxu0 %v915
        %v933 = vpop.f32.mrf.mxu0
        %v934 = vadd.f32 0.0, %v933
        %v935 = vpop.f32.mrf.mxu0
        %936 = vdwg.mxu0
        %v937 = vld [vmem:[%s6] sm:$0xf]
        %v938 = vld [vmem:[%s6 + $0x4] sm:$0xf]
        %v939 = vld [vmem:[%s6 + $0x8] sm:$0xf]
        %v940 = vld [vmem:[%s6 + $0xc] sm:$0xf]
        %v941 = vpack.c.bf16 %v934, %v934
        %v942 = vld [vmem:[%s6 + $0x10] sm:$0xf]
        %v943 = vld [vmem:[%s6 + $0x14] sm:$0xf]
        %v944 = vld [vmem:[%s6 + $0x18] sm:$0xf]
        %v945 = vld [vmem:[%s6 + $0x1c] sm:$0xf]
        %v947 = vrot.slane %v941, 1
        %v952 = vunpack.c.l.b16 %v942
        %v953 = vunpack.c.l.b16 %v943
        %v954 = vunpack.c.l.b16 %v944
        %v955 = vunpack.c.l.b16 %v945
        %v956 = vpack.c.b16 %v953, %v952
        %v957 = vpack.c.b16 %v955, %v954
        %vm960 = vcmask 261120
        %v962 = vsel %vm960, %v947, 0
        %964 = vmatpush.bf16.msra.mxu0 0
        %965 = vmatpush.bf16.msra.mxu0 0
        %966 = vmatpush.bf16.msra.mxu0 0
        %967 = vmatpush.bf16.msra.mxu0 0
        %968 = vmatpush.bf16.msra.mxu0 0
        %969 = vmatpush.bf16.msra.mxu0 0
        %970 = vmatpush.bf16.msra.mxu0 %v957
        %971 = vmatpush.bf16.msra.mxu0 %v956
        %972 = vmatmul.bf16.gmra.mxu0 %v962
        %v973 = vpop.f32.mrf.mxu0
        %v974 = vadd.f32 0.0, %v973
        %v975 = vpop.f32.mrf.mxu0
        %976 = vdwg.mxu0
        %v981 = vunpack.c.l.b16 %v937
        %v982 = vunpack.c.l.b16 %v938
        %v983 = vunpack.c.l.b16 %v939
        %v984 = vunpack.c.l.b16 %v940
        %v985 = vpack.c.b16 %v982, %v981
        %v986 = vpack.c.b16 %v984, %v983
        %v990 = vsel %vm960, %v941, 0
        %992 = vmatpush.bf16.msra.mxu0 0
        %993 = vmatpush.bf16.msra.mxu0 0
        %994 = vmatpush.bf16.msra.mxu0 0
        %995 = vmatpush.bf16.msra.mxu0 0
        %996 = vmatpush.bf16.msra.mxu0 0
        %997 = vmatpush.bf16.msra.mxu0 0
        %998 = vmatpush.bf16.msra.mxu0 %v986
        %999 = vmatpush.bf16.msra.mxu0 %v985
        %1000 = vmatmul.bf16.gmra.mxu0 %v990
        %v1001 = vpop.f32.mrf.mxu0
        %v1002 = vadd.f32 %v974, %v1001
        %v1003 = vpop.f32.mrf.mxu0
        %1004 = vdwg.mxu0
        %v1005 = vld [vmem:[%s6 + $0x20] sm:$0xf]
        %v1006 = vld [vmem:[%s6 + $0x24] sm:$0xf]
        %v1007 = vld [vmem:[%s6 + $0x28] sm:$0xf]
        %v1008 = vld [vmem:[%s6 + $0x2c] sm:$0xf]
        %v1009 = vrot.slane %v941, 2
        %v1014 = vunpack.c.l.b16 %v1005
        %v1015 = vunpack.c.l.b16 %v1006
        %v1016 = vunpack.c.l.b16 %v1007
        %v1017 = vunpack.c.l.b16 %v1008
        %v1018 = vpack.c.b16 %v1015, %v1014
        %v1019 = vpack.c.b16 %v1017, %v1016
        %v1023 = vsel %vm960, %v1009, 0
        %1025 = vmatpush.bf16.msra.mxu0 0
        %1026 = vmatpush.bf16.msra.mxu0 0
        %1027 = vmatpush.bf16.msra.mxu0 0
        %1028 = vmatpush.bf16.msra.mxu0 0
        %1029 = vmatpush.bf16.msra.mxu0 0
        %1030 = vmatpush.bf16.msra.mxu0 0
        %1031 = vmatpush.bf16.msra.mxu0 %v1019
        %1032 = vmatpush.bf16.msra.mxu0 %v1018
        %1033 = vmatmul.bf16.gmra.mxu0 %v1023
        %v1034 = vpop.f32.mrf.mxu0
        %v1035 = vadd.f32 0.0, %v1034
        %v1036 = vpop.f32.mrf.mxu0
        %1037 = vdwg.mxu0
        %v1038 = vadd.f32 %v1002, %v1035
        %v1039 = vld [vmem:[%s6 + $0x30] sm:$0xf]
        %v1040 = vld [vmem:[%s6 + $0x34] sm:$0xf]
        %v1041 = vld [vmem:[%s6 + $0x38] sm:$0xf]
        %v1042 = vld [vmem:[%s6 + $0x3c] sm:$0xf]
        %v1043 = vrot.slane %v941, 3
        %v1048 = vunpack.c.l.b16 %v1039
        %v1049 = vunpack.c.l.b16 %v1040
        %v1050 = vunpack.c.l.b16 %v1041
        %v1051 = vunpack.c.l.b16 %v1042
        %v1052 = vpack.c.b16 %v1049, %v1048
        %v1053 = vpack.c.b16 %v1051, %v1050
        %v1057 = vsel %vm960, %v1043, 0
        %1059 = vmatpush.bf16.msra.mxu0 0
        %1060 = vmatpush.bf16.msra.mxu0 0
        %1061 = vmatpush.bf16.msra.mxu0 0
        %1062 = vmatpush.bf16.msra.mxu0 0
        %1063 = vmatpush.bf16.msra.mxu0 0
        %1064 = vmatpush.bf16.msra.mxu0 0
        %1065 = vmatpush.bf16.msra.mxu0 %v1053
        %1066 = vmatpush.bf16.msra.mxu0 %v1052
        %1067 = vmatmul.bf16.gmra.mxu0 %v1057
        %v1068 = vpop.f32.mrf.mxu0
        %v1069 = vadd.f32 0.0, %v1068
        %v1070 = vpop.f32.mrf.mxu0
        %1071 = vdwg.mxu0
        %v1072 = vadd.f32 %v1038, %v1069
        %v1073 = vperm.slane %v807, 1
        %v1074 = vadd.f32 %v1072, %v1073
        %v1075 = vmax.f32 %v1074, 0.0
        %v1076 = vld [vmem:[%s7] sm:$0xf]
        %v1077 = vld [vmem:[%s7 + $0x4] sm:$0xf]
        %v1078 = vld [vmem:[%s7 + $0x8] sm:$0xf]
        %v1079 = vld [vmem:[%s7 + $0xc] sm:$0xf]
        %v1080 = vld [vmem:[%s7 + $0x10] sm:$0xf]
        %v1081 = vld [vmem:[%s7 + $0x14] sm:$0xf]
        %v1082 = vld [vmem:[%s7 + $0x18] sm:$0xf]
        %v1083 = vld [vmem:[%s7 + $0x1c] sm:$0xf]
        %v1084 = vpack.c.bf16 %v1075, %v1075
        %v1085 = vperm.slane %v807, 2
        %v1094 = vunpack.c.l.b16 %v1076
        %v1095 = vunpack.c.l.b16 %v1077
        %v1096 = vunpack.c.l.b16 %v1078
        %v1097 = vunpack.c.l.b16 %v1079
        %v1098 = vunpack.c.l.b16 %v1080
        %v1099 = vunpack.c.l.b16 %v1081
        %v1100 = vunpack.c.l.b16 %v1082
        %v1101 = vunpack.c.l.b16 %v1083
        %v1102 = vpack.c.b16 %v1095, %v1094
        %v1103 = vpack.c.b16 %v1097, %v1096
        %v1104 = vpack.c.b16 %v1099, %v1098
        %v1105 = vpack.c.b16 %v1101, %v1100
        %vm1110 = vcmask 523264
        %v1112 = vsel %vm1110, %v1084, 0
        %1114 = vmatpush.bf16.msra.mxu0 0
        %1115 = vmatpush.bf16.msra.mxu0 0
        %1116 = vmatpush.bf16.msra.mxu0 0
        %1117 = vmatpush.bf16.msra.mxu0 0
        %1118 = vmatpush.bf16.msra.mxu0 %v1105
        %1119 = vmatpush.bf16.msra.mxu0 %v1104
        %1120 = vmatpush.bf16.msra.mxu0 %v1103
        %1121 = vmatpush.bf16.msra.mxu0 %v1102
        %1122 = vmatmul.bf16.gmra.mxu0 %v1112
        %v1123 = vpop.f32.mrf.mxu0
        %v1124 = vadd.f32 %v1085, %v1123
        %v1125 = vpop.f32.mrf.mxu0
        %1126 = vdwg.mxu0
        %v1127 = vld [vmem:[%s778] sm:$0xf]
        %v1128 = vld [vmem:[%s778 + $0x4] sm:$0xf]
        %v1129 = vld [vmem:[%s778 + $0x8] sm:$0xf]
        %v1130 = vld [vmem:[%s778 + $0xc] sm:$0xf]
        %v1131 = vpack.c.bf16 %v1124, %v1124
        %v1136 = vunpack.c.l.b16 %v1127
        %v1137 = vunpack.c.l.b16 %v1128
        %v1138 = vunpack.c.l.b16 %v1129
        %v1139 = vunpack.c.l.b16 %v1130
        %v1140 = vpack.c.b16 %v1137, %v1136
        %v1141 = vpack.c.b16 %v1139, %v1138
        %v1145 = vsel %vm960, %v1131, 0
        %1147 = vmatpush.bf16.msra.mxu0 0
        %1148 = vmatpush.bf16.msra.mxu0 0
        %1149 = vmatpush.bf16.msra.mxu0 0
        %1150 = vmatpush.bf16.msra.mxu0 0
        %1151 = vmatpush.bf16.msra.mxu0 0
        %1152 = vmatpush.bf16.msra.mxu0 0
        %1153 = vmatpush.bf16.msra.mxu0 %v1141
        %1154 = vmatpush.bf16.msra.mxu0 %v1140
        %1155 = vmatmul.bf16.gmra.mxu0 %v1145
        %v1156 = vpop.f32.mrf.mxu0
        %v1157 = vadd.f32 0.0, %v1156
        %v1158 = vpop.f32.mrf.mxu0
        %1159 = vdwg.mxu0
        %vm1160 = vcmask 517120
        %v1161 = vsel %vm1160, %v1157, 0.0
        %v1162 = vrot.slane %v1161, 4
        %v1163 = vadd.f32 %v1161, %v1162
        %v1164 = vrot.slane %v1163, 2
        %v1165 = vadd.f32 %v1163, %v1164
        %v1166 = vrot.slane %v1165, 1
        %v1167 = vadd.f32 %v1165, %v1166
        %v1168 = vrcp.pop 2.0
        %v1169 = vmul.f32 2.0, %v1168
        %v1170 = vsub.f32 1.0, %v1169
        %v1171 = vmul.f32 %v1168, %v1170
        %v1172 = vadd.f32 %v1168, %v1171
        %vm1173 = vweird.f32 %v1168
        %v1174 = vsel %vm1173, %v1168, %v1172
        %v1175 = vmul.f32 %v1167, %v1174
        %v1176 = vsub.f32 %v1157, %v1175
        %v1177 = vmul.f32 %v1176, %v1176
        %v1178 = vsel %vm1160, %v1177, 0.0
        %v1179 = vrot.slane %v1178, 4
        %v1180 = vadd.f32 %v1178, %v1179
        %v1181 = vrot.slane %v1180, 2
        %v1182 = vadd.f32 %v1180, %v1181
        %v1183 = vrot.slane %v1182, 1
        %v1184 = vadd.f32 %v1182, %v1183
        %v1185 = vmul.f32 %v1184, %v1174
        %v1186 = vadd.f32 %v1185, 1e-05
        %v1187 = vrsqrt.pop %v1186
        %v1188 = vmul.f32 %v1187, %v1186
        %v1189 = vmul.f32 %v1188, %v1187
        %v1190 = vmul.f32 0.5, %v1189
        %v1191 = vsub.f32 1.5, %v1190
        %v1192 = vmul.f32 %v1187, %v1191
        %vm1193 = vweird.f32 %v1186
        %vm1194 = vweird.f32 %v1187
        %vm1195 = vmor %vm1193, %vm1194
        %v1196 = vsel %vm1195, %v1187, %v1192
        %v1197 = vmul.f32 %v1176, %v1196
        %v1198 = vperm.slane %v807, 3
        %v1199 = vmul.f32 %v1197, %v1198
        %v1200 = vperm.slane %v807, 4
        %v1201 = vadd.f32 %v1199, %v1200
        %v1202 = vmax.f32 %v1201, 0.0
        %v1203 = vld [vmem:[%s787] sm:$0xf]
        %v1204 = vld [vmem:[%s787 + $0x4] sm:$0xf]
        %v1205 = vld [vmem:[%s787 + $0x8] sm:$0xf]
        %v1206 = vld [vmem:[%s787 + $0xc] sm:$0xf]
        %v1207 = vld [vmem:[%s787 + $0x10] sm:$0xf]
        %v1208 = vld [vmem:[%s787 + $0x14] sm:$0xf]
        %v1209 = vld [vmem:[%s787 + $0x18] sm:$0xf]
        %v1210 = vld [vmem:[%s787 + $0x1c] sm:$0xf]
        %v1211 = vpack.c.bf16 %v1202, %v1202
        %v1212 = vperm.slane %v807, 5
        %v1221 = vunpack.c.l.b16 %v1203
        %v1222 = vunpack.c.l.b16 %v1204
        %v1223 = vunpack.c.l.b16 %v1205
        %v1224 = vunpack.c.l.b16 %v1206
        %v1225 = vunpack.c.l.b16 %v1207
        %v1226 = vunpack.c.l.b16 %v1208
        %v1227 = vunpack.c.l.b16 %v1209
        %v1228 = vunpack.c.l.b16 %v1210
        %v1229 = vpack.c.b16 %v1222, %v1221
        %v1230 = vpack.c.b16 %v1224, %v1223
        %v1231 = vpack.c.b16 %v1226, %v1225
        %v1232 = vpack.c.b16 %v1228, %v1227
        %v1238 = vsel %vm1110, %v1211, 0
        %1240 = vmatpush.bf16.msra.mxu0 0
        %1241 = vmatpush.bf16.msra.mxu0 0
        %1242 = vmatpush.bf16.msra.mxu0 0
        %1243 = vmatpush.bf16.msra.mxu0 0
        %1244 = vmatpush.bf16.msra.mxu0 %v1232
        %1245 = vmatpush.bf16.msra.mxu0 %v1231
        %1246 = vmatpush.bf16.msra.mxu0 %v1230
        %1247 = vmatpush.bf16.msra.mxu0 %v1229
        %1248 = vmatmul.bf16.gmra.mxu0 %v1238
        %v1249 = vpop.f32.mrf.mxu0
        %v1250 = vadd.f32 %v1212, %v1249
        %v1251 = vpop.f32.mrf.mxu0
        %1252 = vdwg.mxu0
        %vm1253 = vcmask 254976
        %1254 = vst.msk [vmem:[%s801] sm:$0x3] %vm1253, %v1250
      $region108: #{forward.1} parent=103 // pred_fallthru
        _
      %p1255 = scmp.eq.s32.totalorder %s32, 2
      // Predicated region
      $region109: #{forward.1} parent=103 // pred_check
        %p1256 = pneg %p1255
      $region110: #{forward.1} parent=103 // pred_check_branch
        %1258 = sbr.rel (%p1256) target = $region112
      $region111: #{forward.1} parent=103 // pred_region
        %v1259 = vld [vmem:[%s20] sm:$0xff]
        %v1260 = vld [vmem:[%s20 + $0x8] sm:$0xff]
        %v1261 = vld [vmem:[%s20 + $0x10] sm:$0x1f]
        %v1262 = vld [vmem:[%s8] sm:$0xff]
        %v1263 = vld [vmem:[%s8 + $0x8] sm:$0xff]
        %v1264 = vld [vmem:[%s9] sm:$0xf]
        %v1265 = vld [vmem:[%s9 + $0x4] sm:$0xf]
        %v1266 = vld [vmem:[%s9 + $0x8] sm:$0xf]
        %v1267 = vld [vmem:[%s9 + $0xc] sm:$0xf]
        %v1268 = vld [vmem:[%s9 + $0x10] sm:$0xf]
        %v1269 = vld [vmem:[%s9 + $0x14] sm:$0xf]
        %v1270 = vld [vmem:[%s9 + $0x18] sm:$0xf]
        %v1271 = vld [vmem:[%s9 + $0x1c] sm:$0xf]
        %v1272 = vpack.c.bf16 %v1263, %v1262
        %v1273 = vperm.slane %v1260, 6
        %v1282 = vunpack.c.l.b16 %v1264
        %v1283 = vunpack.c.l.b16 %v1265
        %v1284 = vunpack.c.l.b16 %v1266
        %v1285 = vunpack.c.l.b16 %v1267
        %v1286 = vunpack.c.l.b16 %v1268
        %v1287 = vunpack.c.l.b16 %v1269
        %v1288 = vunpack.c.l.b16 %v1270
        %v1289 = vunpack.c.l.b16 %v1271
        %v1290 = vpack.c.b16 %v1283, %v1282
        %v1291 = vpack.c.b16 %v1285, %v1284
        %v1292 = vpack.c.b16 %v1287, %v1286
        %v1293 = vpack.c.b16 %v1289, %v1288
        %vm1298 = vcmask 523264
        %v1300 = vsel %vm1298, %v1272, 0
        %1302 = vmatpush.bf16.msra.mxu0 0
        %1303 = vmatpush.bf16.msra.mxu0 0
        %1304 = vmatpush.bf16.msra.mxu0 0
        %1305 = vmatpush.bf16.msra.mxu0 0
        %1306 = vmatpush.bf16.msra.mxu0 %v1293
        %1307 = vmatpush.bf16.msra.mxu0 %v1292
        %1308 = vmatpush.bf16.msra.mxu0 %v1291
        %1309 = vmatpush.bf16.msra.mxu0 %v1290
        %1310 = vmatmul.bf16.gmra.mxu0 %v1300
        %v1311 = vpop.f32.mrf.mxu0
        %v1312 = vadd.f32 %v1273, %v1311
        %v1313 = vpop.f32.mrf.mxu0
        %v1314 = vadd.f32 %v1273, %v1313
        %1315 = vdwg.mxu0
        %v1316 = vld [vmem:[%s10] sm:$0xff]
        %v1317 = vld [vmem:[%s10 + $0x8] sm:$0xff]
        %v1318 = vadd.f32 %v1312, %v1316
        %v1319 = vadd.f32 %v1314, %v1317
        %v1320 = vld [vmem:[%s12] sm:$0xff]
        %v1321 = vld [vmem:[%s12 + $0x8] sm:$0xff]
        %v1322 = vld [vmem:[%s12 + $0x10] sm:$0xff]
        %v1323 = vld [vmem:[%s12 + $0x18] sm:$0xff]
        %v1324 = vld [vmem:[%s12 + $0x20] sm:$0xff]
        %v1325 = vld [vmem:[%s12 + $0x28] sm:$0xff]
        %v1326 = vld [vmem:[%s12 + $0x30] sm:$0xff]
        %v1327 = vld [vmem:[%s12 + $0x38] sm:$0xff]
        %vm1328 = vcmask 261120
        %v1329 = vsel %vm1328, %v1318, 0.0
        %1330 = vadd.xlane.f32.xlu0 %v1329
        %v1331 = vpop.xlane.xlu0 %1330
        %v1332 = vsel %vm1328, %v1319, 0.0
        %1333 = vadd.xlane.f32.xlu0 %v1332
        %v1334 = vpop.xlane.xlu0 %1333
        %v1335 = vrcp.pop 32.0
        %v1336 = vmul.f32 32.0, %v1335
        %v1337 = vsub.f32 1.0, %v1336
        %v1338 = vmul.f32 %v1335, %v1337
        %v1339 = vadd.f32 %v1335, %v1338
        %vm1340 = vweird.f32 %v1335
        %v1341 = vsel %vm1340, %v1335, %v1339
        %v1342 = vmul.f32 %v1331, %v1341
        %v1343 = vmul.f32 %v1334, %v1341
        %v1344 = vsub.f32 %v1318, %v1342
        %v1345 = vsub.f32 %v1319, %v1343
        %v1346 = vmul.f32 %v1344, %v1344
        %v1347 = vmul.f32 %v1345, %v1345
        %v1348 = vsel %vm1328, %v1346, 0.0
        %1349 = vadd.xlane.f32.xlu0 %v1348
        %v1350 = vpop.xlane.xlu0 %1349
        %v1351 = vsel %vm1328, %v1347, 0.0
        %1352 = vadd.xlane.f32.xlu0 %v1351
        %v1353 = vpop.xlane.xlu0 %1352
        %v1354 = vmul.f32 %v1350, %v1341
        %v1355 = vmul.f32 %v1353, %v1341
        %v1356 = vadd.f32 %v1354, 1e-06
        %v1357 = vadd.f32 %v1355, 1e-06
        %v1358 = vrsqrt.pop %v1356
        %v1359 = vmul.f32 %v1358, %v1356
        %v1360 = vmul.f32 %v1359, %v1358
        %v1361 = vmul.f32 0.5, %v1360
        %v1362 = vsub.f32 1.5, %v1361
        %v1363 = vmul.f32 %v1358, %v1362
        %vm1364 = vweird.f32 %v1356
        %vm1365 = vweird.f32 %v1358
        %vm1366 = vmor %vm1364, %vm1365
        %v1367 = vsel %vm1366, %v1358, %v1363
        %v1368 = vrsqrt.pop %v1357
        %v1369 = vmul.f32 %v1368, %v1357
        %v1370 = vmul.f32 %v1369, %v1368
        %v1371 = vmul.f32 0.5, %v1370
        %v1372 = vsub.f32 1.5, %v1371
        %v1373 = vmul.f32 %v1368, %v1372
        %vm1374 = vweird.f32 %v1357
        %vm1375 = vweird.f32 %v1368
        %vm1376 = vmor %vm1374, %vm1375
        %v1377 = vsel %vm1376, %v1368, %v1373
        %v1378 = vmul.f32 %v1344, %v1367
        %v1379 = vmul.f32 %v1345, %v1377
        %v1380 = vperm.slane %v1259, 0
        %v1381 = vmul.f32 %v1378, %v1380
        %v1382 = vmul.f32 %v1379, %v1380
        %v1383 = vperm.slane %v1259, 1
        %v1384 = vadd.f32 %v1381, %v1383
        %v1385 = vadd.f32 %v1382, %v1383
        %v1386 = vpack.c.bf16 %v1385, %v1384
        %v1387 = vld [vmem:[%s13] sm:$0xf]
        %v1388 = vld [vmem:[%s13 + $0x4] sm:$0xf]
        %v1389 = vld [vmem:[%s13 + $0x8] sm:$0xf]
        %v1390 = vld [vmem:[%s13 + $0xc] sm:$0xf]
        %v1395 = vunpack.c.l.b16 %v1387
        %v1396 = vunpack.c.l.b16 %v1388
        %v1397 = vunpack.c.l.b16 %v1389
        %v1398 = vunpack.c.l.b16 %v1390
        %v1399 = vpack.c.b16 %v1396, %v1395
        %v1400 = vpack.c.b16 %v1398, %v1397
        %v1404 = vsel %vm1328, %v1386, 0
        %1406 = vmatpush.bf16.msra.mxu0 0
        %1407 = vmatpush.bf16.msra.mxu0 0
        %1408 = vmatpush.bf16.msra.mxu0 0
        %1409 = vmatpush.bf16.msra.mxu0 0
        %1410 = vmatpush.bf16.msra.mxu0 0
        %1411 = vmatpush.bf16.msra.mxu0 0
        %1412 = vmatpush.bf16.msra.mxu0 %v1400
        %1413 = vmatpush.bf16.msra.mxu0 %v1399
        %1414 = vmatmul.bf16.gmra.mxu0 %v1404
        %v1415 = vpop.f32.mrf.mxu0
        %v1416 = vadd.f32 0.0, %v1415
        %v1417 = vpop.f32.mrf.mxu0
        %v1418 = vadd.f32 0.0, %v1417
        %1419 = vdwg.mxu0
        %v1420 = vld [vmem:[%s13 + $0x10] sm:$0xf]
        %v1421 = vld [vmem:[%s13 + $0x14] sm:$0xf]
        %v1422 = vld [vmem:[%s13 + $0x18] sm:$0xf]
        %v1423 = vld [vmem:[%s13 + $0x1c] sm:$0xf]
        %v1428 = vunpack.c.l.b16 %v1420
        %v1429 = vunpack.c.l.b16 %v1421
        %v1430 = vunpack.c.l.b16 %v1422
        %v1431 = vunpack.c.l.b16 %v1423
        %v1432 = vpack.c.b16 %v1429, %v1428
        %v1433 = vpack.c.b16 %v1431, %v1430
        %1436 = vmatpush.bf16.msra.mxu0 0
        %1437 = vmatpush.bf16.msra.mxu0 0
        %1438 = vmatpush.bf16.msra.mxu0 0
        %1439 = vmatpush.bf16.msra.mxu0 0
        %1440 = vmatpush.bf16.msra.mxu0 0
        %1441 = vmatpush.bf16.msra.mxu0 0
        %1442 = vmatpush.bf16.msra.mxu0 %v1433
        %1443 = vmatpush.bf16.msra.mxu0 %v1432
        %1444 = vmatmul.bf16.gmra.mxu0 %v1404
        %v1445 = vpop.f32.mrf.mxu0
        %v1446 = vadd.f32 0.0, %v1445
        %v1447 = vpop.f32.mrf.mxu0
        %v1448 = vadd.f32 0.0, %v1447
        %1449 = vdwg.mxu0
        %v1450 = vld [vmem:[%s13 + $0x20] sm:$0xf]
        %v1451 = vld [vmem:[%s13 + $0x24] sm:$0xf]
        %v1452 = vld [vmem:[%s13 + $0x28] sm:$0xf]
        %v1453 = vld [vmem:[%s13 + $0x2c] sm:$0xf]
        %v1458 = vunpack.c.l.b16 %v1450
        %v1459 = vunpack.c.l.b16 %v1451
        %v1460 = vunpack.c.l.b16 %v1452
        %v1461 = vunpack.c.l.b16 %v1453
        %v1462 = vpack.c.b16 %v1459, %v1458
        %v1463 = vpack.c.b16 %v1461, %v1460
        %1466 = vmatpush.bf16.msra.mxu0 0
        %1467 = vmatpush.bf16.msra.mxu0 0
        %1468 = vmatpush.bf16.msra.mxu0 0
        %1469 = vmatpush.bf16.msra.mxu0 0
        %1470 = vmatpush.bf16.msra.mxu0 0
        %1471 = vmatpush.bf16.msra.mxu0 0
        %1472 = vmatpush.bf16.msra.mxu0 %v1463
        %1473 = vmatpush.bf16.msra.mxu0 %v1462
        %1474 = vmatmul.bf16.gmra.mxu0 %v1404
        %v1475 = vpop.f32.mrf.mxu0
        %v1476 = vadd.f32 0.0, %v1475
        %v1477 = vpop.f32.mrf.mxu0
        %v1478 = vadd.f32 0.0, %v1477
        %1479 = vdwg.mxu0
        %v1480 = vld [vmem:[%s13 + $0x30] sm:$0xf]
        %v1481 = vld [vmem:[%s13 + $0x34] sm:$0xf]
        %v1482 = vld [vmem:[%s13 + $0x38] sm:$0xf]
        %v1483 = vld [vmem:[%s13 + $0x3c] sm:$0xf]
        %v1488 = vunpack.c.l.b16 %v1480
        %v1489 = vunpack.c.l.b16 %v1481
        %v1490 = vunpack.c.l.b16 %v1482
        %v1491 = vunpack.c.l.b16 %v1483
        %v1492 = vpack.c.b16 %v1489, %v1488
        %v1493 = vpack.c.b16 %v1491, %v1490
        %1496 = vmatpush.bf16.msra.mxu0 0
        %1497 = vmatpush.bf16.msra.mxu0 0
        %1498 = vmatpush.bf16.msra.mxu0 0
        %1499 = vmatpush.bf16.msra.mxu0 0
        %1500 = vmatpush.bf16.msra.mxu0 0
        %1501 = vmatpush.bf16.msra.mxu0 0
        %1502 = vmatpush.bf16.msra.mxu0 %v1493
        %1503 = vmatpush.bf16.msra.mxu0 %v1492
        %1504 = vmatmul.bf16.gmra.mxu0 %v1404
        %v1505 = vpop.f32.mrf.mxu0
        %v1506 = vadd.f32 0.0, %v1505
        %v1507 = vpop.f32.mrf.mxu0
        %v1508 = vadd.f32 0.0, %v1507
        %1509 = vdwg.mxu0
        %v1510 = vld [vmem:[%s14] sm:$0xff]
        %v1511 = vld [vmem:[%s14 + $0x8] sm:$0xff]
        %v1512 = vld [vmem:[%s14 + $0x10] sm:$0xff]
        %v1513 = vld [vmem:[%s14 + $0x18] sm:$0xff]
        %v1514 = vld [vmem:[%s14 + $0x20] sm:$0xff]
        %v1515 = vld [vmem:[%s14 + $0x28] sm:$0xff]
        %v1516 = vld [vmem:[%s14 + $0x30] sm:$0xff]
        %v1517 = vld [vmem:[%s14 + $0x38] sm:$0xff]
        %v1518 = vadd.f32 %v1416, %v1510
        %v1519 = vadd.f32 %v1418, %v1511
        %v1520 = vadd.f32 %v1446, %v1512
        %v1521 = vadd.f32 %v1448, %v1513
        %v1522 = vadd.f32 %v1476, %v1514
        %v1523 = vadd.f32 %v1478, %v1515
        %v1524 = vadd.f32 %v1506, %v1516
        %v1525 = vadd.f32 %v1508, %v1517
        %v1526 = vpack.c.bf16 %v1519, %v1518
        %v1527 = vpack.c.bf16 %v1521, %v1520
        %v1528 = vpack.c.bf16 %v1523, %v1522
        %v1529 = vpack.c.bf16 %v1525, %v1524
        %1534 = vrot.lane.b32.xlu0 %v1526, 120
        %v1535 = vpop.permute.xlu0 %1534
        %1536 = vrot.lane.b32.xlu0 %v1527, 120
        %v1537 = vpop.permute.xlu0 %1536
        %1538 = vrot.lane.b32.xlu0 %v1528, 120
        %v1539 = vpop.permute.xlu0 %1538
        %1540 = vrot.lane.b32.xlu0 %v1529, 120
        %v1541 = vpop.permute.xlu0 %1540
        %vm1542 = vcmask 64512
        %v1544 = vsel %vm1542, %v1526, 0
        %v1547 = vsel %vm1542, %v1527, 0
        %v1550 = vsel %vm1542, %v1528, 0
        %v1553 = vsel %vm1542, %v1529, 0
        %v1556 = vsel %vm1542, %v1535, 0
        %v1559 = vsel %vm1542, %v1537, 0
        %v1562 = vsel %vm1542, %v1539, 0
        %v1565 = vsel %vm1542, %v1541, 0
        %1567 = vmatpush.bf16.xpose.msra.mxu0 0
        %1568 = vmatpush.bf16.xpose.msra.mxu0 0
        %1569 = vmatpush.bf16.xpose.msra.mxu0 0
        %1570 = vmatpush.bf16.xpose.msra.mxu0 0
        %1571 = vmatpush.bf16.xpose.msra.mxu0 %v1565
        %1572 = vmatpush.bf16.xpose.msra.mxu0 %v1562
        %1573 = vmatpush.bf16.xpose.msra.mxu0 %v1559
        %1574 = vmatpush.bf16.xpose.msra.mxu0 %v1556
        %1575 = vmatmul.bf16.gmra.mxu0 %v1544
        %v1576 = vpop.f32.mrf.mxu0
        %v1577 = vadd.f32 0.0, %v1576
        %v1578 = vpop.f32.mrf.mxu0
        %v1579 = vadd.f32 0.0, %v1578
        %1580 = vmatmul.bf16.gmra.mxu0 %v1547
        %v1581 = vpop.f32.mrf.mxu0
        %v1582 = vadd.f32 0.0, %v1581
        %v1583 = vpop.f32.mrf.mxu0
        %v1584 = vadd.f32 0.0, %v1583
        %1585 = vmatmul.bf16.gmra.mxu0 %v1550
        %v1586 = vpop.f32.mrf.mxu0
        %v1587 = vadd.f32 0.0, %v1586
        %v1588 = vpop.f32.mrf.mxu0
        %v1589 = vadd.f32 0.0, %v1588
        %1590 = vmatmul.bf16.gmra.mxu0 %v1553
        %v1591 = vpop.f32.mrf.mxu0
        %v1592 = vadd.f32 0.0, %v1591
        %v1593 = vpop.f32.mrf.mxu0
        %v1594 = vadd.f32 0.0, %v1593
        %1595 = vdwg.mxu0
        %v1596 = vmul.f32 %v1577, 0.35355338
        %v1597 = vmul.f32 %v1579, 0.35355338
        %v1598 = vmul.f32 %v1582, 0.35355338
        %v1599 = vmul.f32 %v1584, 0.35355338
        %v1600 = vmul.f32 %v1587, 0.35355338
        %v1601 = vmul.f32 %v1589, 0.35355338
        %v1602 = vmul.f32 %v1592, 0.35355338
        %v1603 = vmul.f32 %v1594, 0.35355338
        %v1604 = vadd.f32 %v1596, %v1320
        %v1605 = vadd.f32 %v1597, %v1321
        %v1606 = vadd.f32 %v1598, %v1322
        %v1607 = vadd.f32 %v1599, %v1323
        %v1608 = vadd.f32 %v1600, %v1324
        %v1609 = vadd.f32 %v1601, %v1325
        %v1610 = vadd.f32 %v1602, %v1326
        %v1611 = vadd.f32 %v1603, %v1327
        %v1612 = vsel %vm1298, %v1604, -inf
        %1613 = vmax.xlane.f32.xlu0 %v1612
        %v1614 = vpop.xlane.xlu0 %1613
        %v1615 = vsel %vm1298, %v1605, -inf
        %1616 = vmax.xlane.f32.xlu0 %v1615
        %v1617 = vpop.xlane.xlu0 %1616
        %v1618 = vsel %vm1298, %v1606, -inf
        %1619 = vmax.xlane.f32.xlu0 %v1618
        %v1620 = vpop.xlane.xlu0 %1619
        %v1621 = vsel %vm1298, %v1607, -inf
        %1622 = vmax.xlane.f32.xlu0 %v1621
        %v1623 = vpop.xlane.xlu0 %1622
        %v1624 = vsel %vm1298, %v1608, -inf
        %1625 = vmax.xlane.f32.xlu0 %v1624
        %v1626 = vpop.xlane.xlu0 %1625
        %v1627 = vsel %vm1298, %v1609, -inf
        %1628 = vmax.xlane.f32.xlu0 %v1627
        %v1629 = vpop.xlane.xlu0 %1628
        %v1630 = vsel %vm1298, %v1610, -inf
        %1631 = vmax.xlane.f32.xlu0 %v1630
        %v1632 = vpop.xlane.xlu0 %1631
        %v1633 = vsel %vm1298, %v1611, -inf
        %1634 = vmax.xlane.f32.xlu0 %v1633
        %v1635 = vpop.xlane.xlu0 %1634
        %v1636 = vsub.f32 %v1604, %v1614
        %v1637 = vsub.f32 %v1605, %v1617
        %v1638 = vsub.f32 %v1606, %v1620
        %v1639 = vsub.f32 %v1607, %v1623
        %v1640 = vsub.f32 %v1608, %v1626
        %v1641 = vsub.f32 %v1609, %v1629
        %v1642 = vsub.f32 %v1610, %v1632
        %v1643 = vsub.f32 %v1611, %v1635
        %v1644 = vmul.f32 %v1636, 1.442695
        %v1645 = vpow.pop %v1644
        %v1646 = vmul.f32 %v1637, 1.442695
        %v1647 = vpow.pop %v1646
        %v1648 = vmul.f32 %v1638, 1.442695
        %v1649 = vpow.pop %v1648
        %v1650 = vmul.f32 %v1639, 1.442695
        %v1651 = vpow.pop %v1650
        %v1652 = vmul.f32 %v1640, 1.442695
        %v1653 = vpow.pop %v1652
        %v1654 = vmul.f32 %v1641, 1.442695
        %v1655 = vpow.pop %v1654
        %v1656 = vmul.f32 %v1642, 1.442695
        %v1657 = vpow.pop %v1656
        %v1658 = vmul.f32 %v1643, 1.442695
        %v1659 = vpow.pop %v1658
        %v1660 = vsel %vm1298, %v1645, 0.0
        %1661 = vadd.xlane.f32.xlu0 %v1660
        %v1662 = vpop.xlane.xlu0 %1661
        %v1663 = vsel %vm1298, %v1647, 0.0
        %1664 = vadd.xlane.f32.xlu0 %v1663
        %v1665 = vpop.xlane.xlu0 %1664
        %v1666 = vsel %vm1298, %v1649, 0.0
        %1667 = vadd.xlane.f32.xlu0 %v1666
        %v1668 = vpop.xlane.xlu0 %1667
        %v1669 = vsel %vm1298, %v1651, 0.0
        %1670 = vadd.xlane.f32.xlu0 %v1669
        %v1671 = vpop.xlane.xlu0 %1670
        %v1672 = vsel %vm1298, %v1653, 0.0
        %1673 = vadd.xlane.f32.xlu0 %v1672
        %v1674 = vpop.xlane.xlu0 %1673
        %v1675 = vsel %vm1298, %v1655, 0.0
        %1676 = vadd.xlane.f32.xlu0 %v1675
        %v1677 = vpop.xlane.xlu0 %1676
        %v1678 = vsel %vm1298, %v1657, 0.0
        %1679 = vadd.xlane.f32.xlu0 %v1678
        %v1680 = vpop.xlane.xlu0 %1679
        %v1681 = vsel %vm1298, %v1659, 0.0
        %1682 = vadd.xlane.f32.xlu0 %v1681
        %v1683 = vpop.xlane.xlu0 %1682
        %v1684 = vrcp.pop %v1662
        %v1685 = vmul.f32 %v1662, %v1684
        %v1686 = vsub.f32 1.0, %v1685
        %v1687 = vmul.f32 %v1684, %v1686
        %v1688 = vadd.f32 %v1684, %v1687
        %vm1689 = vweird.f32 %v1662
        %vm1690 = vweird.f32 %v1684
        %vm1691 = vmor %vm1689, %vm1690
        %v1692 = vsel %vm1691, %v1684, %v1688
        %v1693 = vand.u32 2147483647, %v1662
        %vm1694 = vcmp.eq.f32.partialorder %v1693, 8.507059e+37
        %v1695 = vand.u32 %v1662, 2147483648
        %v1696 = vor.u32 1.1754944e-38, %v1695
        %v1697 = vsel %vm1694, %v1696, %v1692
        %v1698 = vmul.f32 %v1645, %v1697
        %v1699 = vrcp.pop %v1665
        %v1700 = vmul.f32 %v1665, %v1699
        %v1701 = vsub.f32 1.0, %v1700
        %v1702 = vmul.f32 %v1699, %v1701
        %v1703 = vadd.f32 %v1699, %v1702
        %vm1704 = vweird.f32 %v1665
        %vm1705 = vweird.f32 %v1699
        %vm1706 = vmor %vm1704, %vm1705
        %v1707 = vsel %vm1706, %v1699, %v1703
        %v1708 = vand.u32 2147483647, %v1665
        %vm1709 = vcmp.eq.f32.partialorder %v1708, 8.507059e+37
        %v1710 = vand.u32 %v1665, 2147483648
        %v1711 = vor.u32 1.1754944e-38, %v1710
        %v1712 = vsel %vm1709, %v1711, %v1707
        %v1713 = vmul.f32 %v1647, %v1712
        %v1714 = vrcp.pop %v1668
        %v1715 = vmul.f32 %v1668, %v1714
        %v1716 = vsub.f32 1.0, %v1715
        %v1717 = vmul.f32 %v1714, %v1716
        %v1718 = vadd.f32 %v1714, %v1717
        %vm1719 = vweird.f32 %v1668
        %vm1720 = vweird.f32 %v1714
        %vm1721 = vmor %vm1719, %vm1720
        %v1722 = vsel %vm1721, %v1714, %v1718
        %v1723 = vand.u32 2147483647, %v1668
        %vm1724 = vcmp.eq.f32.partialorder %v1723, 8.507059e+37
        %v1725 = vand.u32 %v1668, 2147483648
        %v1726 = vor.u32 1.1754944e-38, %v1725
        %v1727 = vsel %vm1724, %v1726, %v1722
        %v1728 = vmul.f32 %v1649, %v1727
        %v1729 = vrcp.pop %v1671
        %v1730 = vmul.f32 %v1671, %v1729
        %v1731 = vsub.f32 1.0, %v1730
        %v1732 = vmul.f32 %v1729, %v1731
        %v1733 = vadd.f32 %v1729, %v1732
        %vm1734 = vweird.f32 %v1671
        %vm1735 = vweird.f32 %v1729
        %vm1736 = vmor %vm1734, %vm1735
        %v1737 = vsel %vm1736, %v1729, %v1733
        %v1738 = vand.u32 2147483647, %v1671
        %vm1739 = vcmp.eq.f32.partialorder %v1738, 8.507059e+37
        %v1740 = vand.u32 %v1671, 2147483648
        %v1741 = vor.u32 1.1754944e-38, %v1740
        %v1742 = vsel %vm1739, %v1741, %v1737
        %v1743 = vmul.f32 %v1651, %v1742
        %v1744 = vrcp.pop %v1674
        %v1745 = vmul.f32 %v1674, %v1744
        %v1746 = vsub.f32 1.0, %v1745
        %v1747 = vmul.f32 %v1744, %v1746
        %v1748 = vadd.f32 %v1744, %v1747
        %vm1749 = vweird.f32 %v1674
        %vm1750 = vweird.f32 %v1744
        %vm1751 = vmor %vm1749, %vm1750
        %v1752 = vsel %vm1751, %v1744, %v1748
        %v1753 = vand.u32 2147483647, %v1674
        %vm1754 = vcmp.eq.f32.partialorder %v1753, 8.507059e+37
        %v1755 = vand.u32 %v1674, 2147483648
        %v1756 = vor.u32 1.1754944e-38, %v1755
        %v1757 = vsel %vm1754, %v1756, %v1752
        %v1758 = vmul.f32 %v1653, %v1757
        %v1759 = vrcp.pop %v1677
        %v1760 = vmul.f32 %v1677, %v1759
        %v1761 = vsub.f32 1.0, %v1760
        %v1762 = vmul.f32 %v1759, %v1761
        %v1763 = vadd.f32 %v1759, %v1762
        %vm1764 = vweird.f32 %v1677
        %vm1765 = vweird.f32 %v1759
        %vm1766 = vmor %vm1764, %vm1765
        %v1767 = vsel %vm1766, %v1759, %v1763
        %v1768 = vand.u32 2147483647, %v1677
        %vm1769 = vcmp.eq.f32.partialorder %v1768, 8.507059e+37
        %v1770 = vand.u32 %v1677, 2147483648
        %v1771 = vor.u32 1.1754944e-38, %v1770
        %v1772 = vsel %vm1769, %v1771, %v1767
        %v1773 = vmul.f32 %v1655, %v1772
        %v1774 = vrcp.pop %v1680
        %v1775 = vmul.f32 %v1680, %v1774
        %v1776 = vsub.f32 1.0, %v1775
        %v1777 = vmul.f32 %v1774, %v1776
        %v1778 = vadd.f32 %v1774, %v1777
        %vm1779 = vweird.f32 %v1680
        %vm1780 = vweird.f32 %v1774
        %vm1781 = vmor %vm1779, %vm1780
        %v1782 = vsel %vm1781, %v1774, %v1778
        %v1783 = vand.u32 2147483647, %v1680
        %vm1784 = vcmp.eq.f32.partialorder %v1783, 8.507059e+37
        %v1785 = vand.u32 %v1680, 2147483648
        %v1786 = vor.u32 1.1754944e-38, %v1785
        %v1787 = vsel %vm1784, %v1786, %v1782
        %v1788 = vmul.f32 %v1657, %v1787
        %v1789 = vrcp.pop %v1683
        %v1790 = vmul.f32 %v1683, %v1789
        %v1791 = vsub.f32 1.0, %v1790
        %v1792 = vmul.f32 %v1789, %v1791
        %v1793 = vadd.f32 %v1789, %v1792
        %vm1794 = vweird.f32 %v1683
        %vm1795 = vweird.f32 %v1789
        %vm1796 = vmor %vm1794, %vm1795
        %v1797 = vsel %vm1796, %v1789, %v1793
        %v1798 = vand.u32 2147483647, %v1683
        %vm1799 = vcmp.eq.f32.partialorder %v1798, 8.507059e+37
        %v1800 = vand.u32 %v1683, 2147483648
        %v1801 = vor.u32 1.1754944e-38, %v1800
        %v1802 = vsel %vm1799, %v1801, %v1797
        %v1803 = vmul.f32 %v1659, %v1802
        %v1804 = vpack.c.bf16 %v1713, %v1698
        %v1805 = vpack.c.bf16 %v1743, %v1728
        %v1806 = vpack.c.bf16 %v1773, %v1758
        %v1807 = vpack.c.bf16 %v1803, %v1788
        %1808 = vrot.lane.b32.xlu0 %v1526, 112
        %v1809 = vpop.permute.xlu0 %1808
        %1810 = vrot.lane.b32.xlu0 %v1527, 112
        %v1811 = vpop.permute.xlu0 %1810
        %1812 = vrot.lane.b32.xlu0 %v1528, 112
        %v1813 = vpop.permute.xlu0 %1812
        %1814 = vrot.lane.b32.xlu0 %v1529, 112
        %v1815 = vpop.permute.xlu0 %1814
        %v1821 = vsel %vm1298, %v1804, 0
        %v1824 = vsel %vm1298, %v1805, 0
        %v1827 = vsel %vm1298, %v1806, 0
        %v1830 = vsel %vm1298, %v1807, 0
        %1832 = vmatpush.bf16.msra.mxu0 0
        %1833 = vmatpush.bf16.msra.mxu0 0
        %1834 = vmatpush.bf16.msra.mxu0 0
        %1835 = vmatpush.bf16.msra.mxu0 0
        %1836 = vmatpush.bf16.msra.mxu0 %v1815
        %1837 = vmatpush.bf16.msra.mxu0 %v1813
        %1838 = vmatpush.bf16.msra.mxu0 %v1811
        %1839 = vmatpush.bf16.msra.mxu0 %v1809
        %1840 = vmatmul.bf16.gmra.mxu0 %v1821
        %v1841 = vpop.f32.mrf.mxu0
        %v1842 = vadd.f32 0.0, %v1841
        %v1843 = vpop.f32.mrf.mxu0
        %v1844 = vadd.f32 0.0, %v1843
        %1845 = vmatmul.bf16.gmra.mxu0 %v1824
        %v1846 = vpop.f32.mrf.mxu0
        %v1847 = vadd.f32 0.0, %v1846
        %v1848 = vpop.f32.mrf.mxu0
        %v1849 = vadd.f32 0.0, %v1848
        %1850 = vmatmul.bf16.gmra.mxu0 %v1827
        %v1851 = vpop.f32.mrf.mxu0
        %v1852 = vadd.f32 0.0, %v1851
        %v1853 = vpop.f32.mrf.mxu0
        %v1854 = vadd.f32 0.0, %v1853
        %1855 = vmatmul.bf16.gmra.mxu0 %v1830
        %v1856 = vpop.f32.mrf.mxu0
        %v1857 = vadd.f32 0.0, %v1856
        %v1858 = vpop.f32.mrf.mxu0
        %v1859 = vadd.f32 0.0, %v1858
        %1860 = vdwg.mxu0
        %v1861 = vld [vmem:[%s15] sm:$0xf]
        %v1862 = vpack.c.bf16 %v1844, %v1842
        %v1863 = vld [vmem:[%s15 + $0x4] sm:$0xf]
        %v1864 = vpack.c.bf16 %v1849, %v1847
        %v1866 = vsel %vm1542, %v1864, 0
        %vm1868 = vcmask 1043456
        %v1870 = vsel %vm1868, %v1863, 0
        %1872 = vmatpush.bf16.msra.mxu0 0
        %1873 = vmatpush.bf16.msra.mxu0 0
        %1874 = vmatpush.bf16.msra.mxu0 0
        %1875 = vmatpush.bf16.msra.mxu0 0
        %1876 = vmatpush.bf16.msra.mxu0 0
        %1877 = vmatpush.bf16.msra.mxu0 0
        %1878 = vmatpush.bf16.msra.mxu0 0
        %1879 = vmatpush.bf16.msra.mxu0 %v1870
        %1880 = vmatmul.bf16.gmra.mxu0 %v1866
        %v1881 = vpop.f32.mrf.mxu0
        %v1882 = vadd.f32 0.0, %v1881
        %v1883 = vpop.f32.mrf.mxu0
        %v1884 = vadd.f32 0.0, %v1883
        %1885 = vdwg.mxu0
        %v1887 = vsel %vm1542, %v1862, 0
        %v1890 = vsel %vm1868, %v1861, 0
        %1892 = vmatpush.bf16.msra.mxu0 0
        %1893 = vmatpush.bf16.msra.mxu0 0
        %1894 = vmatpush.bf16.msra.mxu0 0
        %1895 = vmatpush.bf16.msra.mxu0 0
        %1896 = vmatpush.bf16.msra.mxu0 0
        %1897 = vmatpush.bf16.msra.mxu0 0
        %1898 = vmatpush.bf16.msra.mxu0 0
        %1899 = vmatpush.bf16.msra.mxu0 %v1890
        %1900 = vmatmul.bf16.gmra.mxu0 %v1887
        %v1901 = vpop.f32.mrf.mxu0
        %v1902 = vadd.f32 %v1882, %v1901
        %v1903 = vpop.f32.mrf.mxu0
        %v1904 = vadd.f32 %v1884, %v1903
        %1905 = vdwg.mxu0
        %v1906 = vld [vmem:[%s15 + $0x8] sm:$0xf]
        %v1907 = vpack.c.bf16 %v1854, %v1852
        %v1909 = vsel %vm1542, %v1907, 0
        %v1912 = vsel %vm1868, %v1906, 0
        %1914 = vmatpush.bf16.msra.mxu0 0
        %1915 = vmatpush.bf16.msra.mxu0 0
        %1916 = vmatpush.bf16.msra.mxu0 0
        %1917 = vmatpush.bf16.msra.mxu0 0
        %1918 = vmatpush.bf16.msra.mxu0 0
        %1919 = vmatpush.bf16.msra.mxu0 0
        %1920 = vmatpush.bf16.msra.mxu0 0
        %1921 = vmatpush.bf16.msra.mxu0 %v1912
        %1922 = vmatmul.bf16.gmra.mxu0 %v1909
        %v1923 = vpop.f32.mrf.mxu0
        %v1924 = vadd.f32 0.0, %v1923
        %v1925 = vpop.f32.mrf.mxu0
        %v1926 = vadd.f32 0.0, %v1925
        %1927 = vdwg.mxu0
        %v1928 = vadd.f32 %v1902, %v1924
        %v1929 = vadd.f32 %v1904, %v1926
        %v1930 = vld [vmem:[%s15 + $0xc] sm:$0xf]
        %v1931 = vpack.c.bf16 %v1859, %v1857
        %v1933 = vsel %vm1542, %v1931, 0
        %v1936 = vsel %vm1868, %v1930, 0
        %1938 = vmatpush.bf16.msra.mxu0 0
        %1939 = vmatpush.bf16.msra.mxu0 0
        %1940 = vmatpush.bf16.msra.mxu0 0
        %1941 = vmatpush.bf16.msra.mxu0 0
        %1942 = vmatpush.bf16.msra.mxu0 0
        %1943 = vmatpush.bf16.msra.mxu0 0
        %1944 = vmatpush.bf16.msra.mxu0 0
        %1945 = vmatpush.bf16.msra.mxu0 %v1936
        %1946 = vmatmul.bf16.gmra.mxu0 %v1933
        %v1947 = vpop.f32.mrf.mxu0
        %v1948 = vadd.f32 0.0, %v1947
        %v1949 = vpop.f32.mrf.mxu0
        %v1950 = vadd.f32 0.0, %v1949
        %1951 = vdwg.mxu0
        %v1952 = vadd.f32 %v1928, %v1948
        %v1953 = vadd.f32 %v1929, %v1950
        %v1954 = vadd.f32 %v1318, %v1952
        %v1955 = vadd.f32 %v1319, %v1953
        %v1956 = vperm.slane %v1259, 2
        %v1957 = vadd.f32 %v1954, %v1956
        %v1958 = vadd.f32 %v1955, %v1956
        %v1959 = vsel %vm1328, %v1957, 0.0
        %1960 = vadd.xlane.f32.xlu0 %v1959
        %v1961 = vpop.xlane.xlu0 %1960
        %v1962 = vsel %vm1328, %v1958, 0.0
        %1963 = vadd.xlane.f32.xlu0 %v1962
        %v1964 = vpop.xlane.xlu0 %1963
        %v1965 = vmul.f32 %v1961, %v1341
        %v1966 = vmul.f32 %v1964, %v1341
        %v1967 = vsub.f32 %v1957, %v1965
        %v1968 = vsub.f32 %v1958, %v1966
        %v1969 = vmul.f32 %v1967, %v1967
        %v1970 = vmul.f32 %v1968, %v1968
        %v1971 = vsel %vm1328, %v1969, 0.0
        %1972 = vadd.xlane.f32.xlu0 %v1971
        %v1973 = vpop.xlane.xlu0 %1972
        %v1974 = vsel %vm1328, %v1970, 0.0
        %1975 = vadd.xlane.f32.xlu0 %v1974
        %v1976 = vpop.xlane.xlu0 %1975
        %v1977 = vmul.f32 %v1973, %v1341
        %v1978 = vmul.f32 %v1976, %v1341
        %v1979 = vadd.f32 %v1977, 1e-06
        %v1980 = vadd.f32 %v1978, 1e-06
        %v1981 = vrsqrt.pop %v1979
        %v1982 = vmul.f32 %v1981, %v1979
        %v1983 = vmul.f32 %v1982, %v1981
        %v1984 = vmul.f32 0.5, %v1983
        %v1985 = vsub.f32 1.5, %v1984
        %v1986 = vmul.f32 %v1981, %v1985
        %vm1987 = vweird.f32 %v1979
        %vm1988 = vweird.f32 %v1981
        %vm1989 = vmor %vm1987, %vm1988
        %v1990 = vsel %vm1989, %v1981, %v1986
        %v1991 = vrsqrt.pop %v1980
        %v1992 = vmul.f32 %v1991, %v1980
        %v1993 = vmul.f32 %v1992, %v1991
        %v1994 = vmul.f32 0.5, %v1993
        %v1995 = vsub.f32 1.5, %v1994
        %v1996 = vmul.f32 %v1991, %v1995
        %vm1997 = vweird.f32 %v1980
        %vm1998 = vweird.f32 %v1991
        %vm1999 = vmor %vm1997, %vm1998
        %v2000 = vsel %vm1999, %v1991, %v1996
        %v2001 = vmul.f32 %v1967, %v1990
        %v2002 = vmul.f32 %v1968, %v2000
        %v2003 = vperm.slane %v1259, 3
        %v2004 = vmul.f32 %v2001, %v2003
        %v2005 = vmul.f32 %v2002, %v2003
        %v2006 = vperm.slane %v1259, 4
        %v2007 = vadd.f32 %v2004, %v2006
        %v2008 = vadd.f32 %v2005, %v2006
        %v2009 = vld [vmem:[%s16] sm:$0xf]
        %v2010 = vld [vmem:[%s16 + $0x4] sm:$0xf]
        %v2011 = vld [vmem:[%s16 + $0x8] sm:$0xf]
        %v2012 = vld [vmem:[%s16 + $0xc] sm:$0xf]
        %v2013 = vpack.c.bf16 %v2008, %v2007
        %v2014 = vperm.slane %v1259, 5
        %v2019 = vunpack.c.l.b16 %v2009
        %v2020 = vunpack.c.l.b16 %v2010
        %v2021 = vunpack.c.l.b16 %v2011
        %v2022 = vunpack.c.l.b16 %v2012
        %v2023 = vpack.c.b16 %v2020, %v2019
        %v2024 = vpack.c.b16 %v2022, %v2021
        %v2028 = vsel %vm1328, %v2013, 0
        %2030 = vmatpush.bf16.msra.mxu0 0
        %2031 = vmatpush.bf16.msra.mxu0 0
        %2032 = vmatpush.bf16.msra.mxu0 0
        %2033 = vmatpush.bf16.msra.mxu0 0
        %2034 = vmatpush.bf16.msra.mxu0 0
        %2035 = vmatpush.bf16.msra.mxu0 0
        %2036 = vmatpush.bf16.msra.mxu0 %v2024
        %2037 = vmatpush.bf16.msra.mxu0 %v2023
        %2038 = vmatmul.bf16.gmra.mxu0 %v2028
        %v2039 = vpop.f32.mrf.mxu0
        %v2040 = vadd.f32 %v2014, %v2039
        %v2041 = vpop.f32.mrf.mxu0
        %v2042 = vadd.f32 %v2014, %v2041
        %2043 = vdwg.mxu0
        %v2044 = vmul.f32 %v2040, %v2040
        %v2045 = vmul.f32 %v2042, %v2042
        %v2046 = vmul.f32 %v2040, %v2044
        %v2047 = vmul.f32 %v2042, %v2045
        %v2048 = vmul.f32 %v2046, 0.044715
        %v2049 = vmul.f32 %v2047, 0.044715
        %v2050 = vadd.f32 %v2040, %v2048
        %v2051 = vadd.f32 %v2042, %v2049
        %v2052 = vmul.f32 %v2050, 0.7978846
        %v2053 = vmul.f32 %v2051, 0.7978846
        %v2054 = vtanh.pop %v2052
        %v2055 = vtanh.pop %v2053
        %v2056 = vadd.f32 %v2054, 1.0
        %v2057 = vadd.f32 %v2055, 1.0
        %v2058 = vmul.f32 %v2056, 0.5
        %v2059 = vmul.f32 %v2057, 0.5
        %v2060 = vmul.f32 %v2040, %v2058
        %v2061 = vmul.f32 %v2042, %v2059
        %v2062 = vld [vmem:[%s17] sm:$0xf]
        %v2063 = vld [vmem:[%s17 + $0x4] sm:$0xf]
        %v2064 = vld [vmem:[%s17 + $0x8] sm:$0xf]
        %v2065 = vld [vmem:[%s17 + $0xc] sm:$0xf]
        %v2066 = vld [vmem:[%s17 + $0x10] sm:$0xf]
        %v2067 = vld [vmem:[%s17 + $0x14] sm:$0xf]
        %v2068 = vld [vmem:[%s17 + $0x18] sm:$0xf]
        %v2069 = vld [vmem:[%s17 + $0x1c] sm:$0xf]
        %v2070 = vld [vmem:[%s17 + $0x20] sm:$0xf]
        %v2071 = vld [vmem:[%s17 + $0x24] sm:$0xf]
        %v2072 = vld [vmem:[%s17 + $0x28] sm:$0xf]
        %v2073 = vld [vmem:[%s17 + $0x2c] sm:$0xf]
        %v2074 = vld [vmem:[%s17 + $0x30] sm:$0xf]
        %v2075 = vld [vmem:[%s17 + $0x34] sm:$0xf]
        %v2076 = vld [vmem:[%s17 + $0x38] sm:$0xf]
        %v2077 = vld [vmem:[%s17 + $0x3c] sm:$0xf]
        %v2078 = vpack.c.bf16 %v2061, %v2060
        %v2095 = vunpack.c.l.b16 %v2062
        %v2096 = vunpack.c.l.b16 %v2063
        %v2097 = vunpack.c.l.b16 %v2064
        %v2098 = vunpack.c.l.b16 %v2065
        %v2099 = vunpack.c.l.b16 %v2066
        %v2100 = vunpack.c.l.b16 %v2067
        %v2101 = vunpack.c.l.b16 %v2068
        %v2102 = vunpack.c.l.b16 %v2069
        %v2103 = vunpack.c.l.b16 %v2070
        %v2104 = vunpack.c.l.b16 %v2071
        %v2105 = vunpack.c.l.b16 %v2072
        %v2106 = vunpack.c.l.b16 %v2073
        %v2107 = vunpack.c.l.b16 %v2074
        %v2108 = vunpack.c.l.b16 %v2075
        %v2109 = vunpack.c.l.b16 %v2076
        %v2110 = vunpack.c.l.b16 %v2077
        %v2111 = vpack.c.b16 %v2096, %v2095
        %v2112 = vpack.c.b16 %v2098, %v2097
        %v2113 = vpack.c.b16 %v2100, %v2099
        %v2114 = vpack.c.b16 %v2102, %v2101
        %v2115 = vpack.c.b16 %v2104, %v2103
        %v2116 = vpack.c.b16 %v2106, %v2105
        %v2117 = vpack.c.b16 %v2108, %v2107
        %v2118 = vpack.c.b16 %v2110, %v2109
        %2127 = vmatpush.bf16.msra.mxu0 %v2118
        %2128 = vmatpush.bf16.msra.mxu0 %v2117
        %2129 = vmatpush.bf16.msra.mxu0 %v2116
        %2130 = vmatpush.bf16.msra.mxu0 %v2115
        %2131 = vmatpush.bf16.msra.mxu0 %v2114
        %2132 = vmatpush.bf16.msra.mxu0 %v2113
        %2133 = vmatpush.bf16.msra.mxu0 %v2112
        %2134 = vmatpush.bf16.msra.mxu0 %v2111
        %2135 = vmatmul.bf16.gmra.mxu0 %v2078
        %v2136 = vpop.f32.mrf.mxu0
        %v2137 = vadd.f32 0.0, %v2136
        %v2138 = vpop.f32.mrf.mxu0
        %v2139 = vadd.f32 0.0, %v2138
        %2140 = vdwg.mxu0
        %v2141 = vadd.f32 %v1957, %v2137
        %v2142 = vadd.f32 %v1958, %v2139
        %v2143 = vperm.slane %v1259, 6
        %v2144 = vadd.f32 %v2141, %v2143
        %v2145 = vadd.f32 %v2142, %v2143
        %v2146 = vsel %vm1328, %v2144, 0.0
        %2147 = vadd.xlane.f32.xlu0 %v2146
        %v2148 = vpop.xlane.xlu0 %2147
        %v2149 = vsel %vm1328, %v2145, 0.0
        %2150 = vadd.xlane.f32.xlu0 %v2149
        %v2151 = vpop.xlane.xlu0 %2150
        %v2152 = vmul.f32 %v2148, %v1341
        %v2153 = vmul.f32 %v2151, %v1341
        %v2154 = vsub.f32 %v2144, %v2152
        %v2155 = vsub.f32 %v2145, %v2153
        %v2156 = vmul.f32 %v2154, %v2154
        %v2157 = vmul.f32 %v2155, %v2155
        %v2158 = vsel %vm1328, %v2156, 0.0
        %2159 = vadd.xlane.f32.xlu0 %v2158
        %v2160 = vpop.xlane.xlu0 %2159
        %v2161 = vsel %vm1328, %v2157, 0.0
        %2162 = vadd.xlane.f32.xlu0 %v2161
        %v2163 = vpop.xlane.xlu0 %2162
        %v2164 = vmul.f32 %v2160, %v1341
        %v2165 = vmul.f32 %v2163, %v1341
        %v2166 = vadd.f32 %v2164, 1e-06
        %v2167 = vadd.f32 %v2165, 1e-06
        %v2168 = vrsqrt.pop %v2166
        %v2169 = vmul.f32 %v2168, %v2166
        %v2170 = vmul.f32 %v2169, %v2168
        %v2171 = vmul.f32 0.5, %v2170
        %v2172 = vsub.f32 1.5, %v2171
        %v2173 = vmul.f32 %v2168, %v2172
        %vm2174 = vweird.f32 %v2166
        %vm2175 = vweird.f32 %v2168
        %vm2176 = vmor %vm2174, %vm2175
        %v2177 = vsel %vm2176, %v2168, %v2173
        %v2178 = vrsqrt.pop %v2167
        %v2179 = vmul.f32 %v2178, %v2167
        %v2180 = vmul.f32 %v2179, %v2178
        %v2181 = vmul.f32 0.5, %v2180
        %v2182 = vsub.f32 1.5, %v2181
        %v2183 = vmul.f32 %v2178, %v2182
        %vm2184 = vweird.f32 %v2167
        %vm2185 = vweird.f32 %v2178
        %vm2186 = vmor %vm2184, %vm2185
        %v2187 = vsel %vm2186, %v2178, %v2183
        %v2188 = vmul.f32 %v2154, %v2177
        %v2189 = vmul.f32 %v2155, %v2187
        %v2190 = vperm.slane %v1259, 7
        %v2191 = vmul.f32 %v2188, %v2190
        %v2192 = vmul.f32 %v2189, %v2190
        %v2193 = vperm.slane %v1260, 0
        %v2194 = vadd.f32 %v2191, %v2193
        %v2195 = vadd.f32 %v2192, %v2193
        %v2196 = vpack.c.bf16 %v2195, %v2194
        %v2197 = vld [vmem:[%s13 + $0x40] sm:$0xf]
        %v2198 = vld [vmem:[%s13 + $0x44] sm:$0xf]
        %v2199 = vld [vmem:[%s13 + $0x48] sm:$0xf]
        %v2200 = vld [vmem:[%s13 + $0x4c] sm:$0xf]
        %v2205 = vunpack.c.l.b16 %v2197
        %v2206 = vunpack.c.l.b16 %v2198
        %v2207 = vunpack.c.l.b16 %v2199
        %v2208 = vunpack.c.l.b16 %v2200
        %v2209 = vpack.c.b16 %v2206, %v2205
        %v2210 = vpack.c.b16 %v2208, %v2207
        %v2214 = vsel %vm1328, %v2196, 0
        %2216 = vmatpush.bf16.msra.mxu0 0
        %2217 = vmatpush.bf16.msra.mxu0 0
        %2218 = vmatpush.bf16.msra.mxu0 0
        %2219 = vmatpush.bf16.msra.mxu0 0
        %2220 = vmatpush.bf16.msra.mxu0 0
        %2221 = vmatpush.bf16.msra.mxu0 0
        %2222 = vmatpush.bf16.msra.mxu0 %v2210
        %2223 = vmatpush.bf16.msra.mxu0 %v2209
        %2224 = vmatmul.bf16.gmra.mxu0 %v2214
        %v2225 = vpop.f32.mrf.mxu0
        %v2226 = vadd.f32 0.0, %v2225
        %v2227 = vpop.f32.mrf.mxu0
        %v2228 = vadd.f32 0.0, %v2227
        %2229 = vdwg.mxu0
        %v2230 = vld [vmem:[%s13 + $0x50] sm:$0xf]
        %v2231 = vld [vmem:[%s13 + $0x54] sm:$0xf]
        %v2232 = vld [vmem:[%s13 + $0x58] sm:$0xf]
        %v2233 = vld [vmem:[%s13 + $0x5c] sm:$0xf]
        %v2238 = vunpack.c.l.b16 %v2230
        %v2239 = vunpack.c.l.b16 %v2231
        %v2240 = vunpack.c.l.b16 %v2232
        %v2241 = vunpack.c.l.b16 %v2233
        %v2242 = vpack.c.b16 %v2239, %v2238
        %v2243 = vpack.c.b16 %v2241, %v2240
        %2246 = vmatpush.bf16.msra.mxu0 0
        %2247 = vmatpush.bf16.msra.mxu0 0
        %2248 = vmatpush.bf16.msra.mxu0 0
        %2249 = vmatpush.bf16.msra.mxu0 0
        %2250 = vmatpush.bf16.msra.mxu0 0
        %2251 = vmatpush.bf16.msra.mxu0 0
        %2252 = vmatpush.bf16.msra.mxu0 %v2243
        %2253 = vmatpush.bf16.msra.mxu0 %v2242
        %2254 = vmatmul.bf16.gmra.mxu0 %v2214
        %v2255 = vpop.f32.mrf.mxu0
        %v2256 = vadd.f32 0.0, %v2255
        %v2257 = vpop.f32.mrf.mxu0
        %v2258 = vadd.f32 0.0, %v2257
        %2259 = vdwg.mxu0
        %v2260 = vld [vmem:[%s13 + $0x60] sm:$0xf]
        %v2261 = vld [vmem:[%s13 + $0x64] sm:$0xf]
        %v2262 = vld [vmem:[%s13 + $0x68] sm:$0xf]
        %v2263 = vld [vmem:[%s13 + $0x6c] sm:$0xf]
        %v2268 = vunpack.c.l.b16 %v2260
        %v2269 = vunpack.c.l.b16 %v2261
        %v2270 = vunpack.c.l.b16 %v2262
        %v2271 = vunpack.c.l.b16 %v2263
        %v2272 = vpack.c.b16 %v2269, %v2268
        %v2273 = vpack.c.b16 %v2271, %v2270
        %2276 = vmatpush.bf16.msra.mxu0 0
        %2277 = vmatpush.bf16.msra.mxu0 0
        %2278 = vmatpush.bf16.msra.mxu0 0
        %2279 = vmatpush.bf16.msra.mxu0 0
        %2280 = vmatpush.bf16.msra.mxu0 0
        %2281 = vmatpush.bf16.msra.mxu0 0
        %2282 = vmatpush.bf16.msra.mxu0 %v2273
        %2283 = vmatpush.bf16.msra.mxu0 %v2272
        %2284 = vmatmul.bf16.gmra.mxu0 %v2214
        %v2285 = vpop.f32.mrf.mxu0
        %v2286 = vadd.f32 0.0, %v2285
        %v2287 = vpop.f32.mrf.mxu0
        %v2288 = vadd.f32 0.0, %v2287
        %2289 = vdwg.mxu0
        %v2290 = vld [vmem:[%s13 + $0x70] sm:$0xf]
        %v2291 = vld [vmem:[%s13 + $0x74] sm:$0xf]
        %v2292 = vld [vmem:[%s13 + $0x78] sm:$0xf]
        %v2293 = vld [vmem:[%s13 + $0x7c] sm:$0xf]
        %v2298 = vunpack.c.l.b16 %v2290
        %v2299 = vunpack.c.l.b16 %v2291
        %v2300 = vunpack.c.l.b16 %v2292
        %v2301 = vunpack.c.l.b16 %v2293
        %v2302 = vpack.c.b16 %v2299, %v2298
        %v2303 = vpack.c.b16 %v2301, %v2300
        %2306 = vmatpush.bf16.msra.mxu0 0
        %2307 = vmatpush.bf16.msra.mxu0 0
        %2308 = vmatpush.bf16.msra.mxu0 0
        %2309 = vmatpush.bf16.msra.mxu0 0
        %2310 = vmatpush.bf16.msra.mxu0 0
        %2311 = vmatpush.bf16.msra.mxu0 0
        %2312 = vmatpush.bf16.msra.mxu0 %v2303
        %2313 = vmatpush.bf16.msra.mxu0 %v2302
        %2314 = vmatmul.bf16.gmra.mxu0 %v2214
        %v2315 = vpop.f32.mrf.mxu0
        %v2316 = vadd.f32 0.0, %v2315
        %v2317 = vpop.f32.mrf.mxu0
        %v2318 = vadd.f32 0.0, %v2317
        %2319 = vdwg.mxu0
        %v2320 = vld [vmem:[%s14 + $0x40] sm:$0xff]
        %v2321 = vld [vmem:[%s14 + $0x48] sm:$0xff]
        %v2322 = vld [vmem:[%s14 + $0x50] sm:$0xff]
        %v2323 = vld [vmem:[%s14 + $0x58] sm:$0xff]
        %v2324 = vld [vmem:[%s14 + $0x60] sm:$0xff]
        %v2325 = vld [vmem:[%s14 + $0x68] sm:$0xff]
        %v2326 = vld [vmem:[%s14 + $0x70] sm:$0xff]
        %v2327 = vld [vmem:[%s14 + $0x78] sm:$0xff]
        %v2328 = vadd.f32 %v2226, %v2320
        %v2329 = vadd.f32 %v2228, %v2321
        %v2330 = vadd.f32 %v2256, %v2322
        %v2331 = vadd.f32 %v2258, %v2323
        %v2332 = vadd.f32 %v2286, %v2324
        %v2333 = vadd.f32 %v2288, %v2325
        %v2334 = vadd.f32 %v2316, %v2326
        %v2335 = vadd.f32 %v2318, %v2327
        %v2336 = vpack.c.bf16 %v2329, %v2328
        %v2337 = vpack.c.bf16 %v2331, %v2330
        %v2338 = vpack.c.bf16 %v2333, %v2332
        %v2339 = vpack.c.bf16 %v2335, %v2334
        %2344 = vrot.lane.b32.xlu0 %v2336, 120
        %v2345 = vpop.permute.xlu0 %2344
        %2346 = vrot.lane.b32.xlu0 %v2337, 120
        %v2347 = vpop.permute.xlu0 %2346
        %2348 = vrot.lane.b32.xlu0 %v2338, 120
        %v2349 = vpop.permute.xlu0 %2348
        %2350 = vrot.lane.b32.xlu0 %v2339, 120
        %v2351 = vpop.permute.xlu0 %2350
        %v2353 = vsel %vm1542, %v2336, 0
        %v2356 = vsel %vm1542, %v2337, 0
        %v2359 = vsel %vm1542, %v2338, 0
        %v2362 = vsel %vm1542, %v2339, 0
        %v2365 = vsel %vm1542, %v2345, 0
        %v2368 = vsel %vm1542, %v2347, 0
        %v2371 = vsel %vm1542, %v2349, 0
        %v2374 = vsel %vm1542, %v2351, 0
        %2376 = vmatpush.bf16.xpose.msra.mxu0 0
        %2377 = vmatpush.bf16.xpose.msra.mxu0 0
        %2378 = vmatpush.bf16.xpose.msra.mxu0 0
        %2379 = vmatpush.bf16.xpose.msra.mxu0 0
        %2380 = vmatpush.bf16.xpose.msra.mxu0 %v2374
        %2381 = vmatpush.bf16.xpose.msra.mxu0 %v2371
        %2382 = vmatpush.bf16.xpose.msra.mxu0 %v2368
        %2383 = vmatpush.bf16.xpose.msra.mxu0 %v2365
        %2384 = vmatmul.bf16.gmra.mxu0 %v2353
        %v2385 = vpop.f32.mrf.mxu0
        %v2386 = vadd.f32 0.0, %v2385
        %v2387 = vpop.f32.mrf.mxu0
        %v2388 = vadd.f32 0.0, %v2387
        %2389 = vmatmul.bf16.gmra.mxu0 %v2356
        %v2390 = vpop.f32.mrf.mxu0
        %v2391 = vadd.f32 0.0, %v2390
        %v2392 = vpop.f32.mrf.mxu0
        %v2393 = vadd.f32 0.0, %v2392
        %2394 = vmatmul.bf16.gmra.mxu0 %v2359
        %v2395 = vpop.f32.mrf.mxu0
        %v2396 = vadd.f32 0.0, %v2395
        %v2397 = vpop.f32.mrf.mxu0
        %v2398 = vadd.f32 0.0, %v2397
        %2399 = vmatmul.bf16.gmra.mxu0 %v2362
        %v2400 = vpop.f32.mrf.mxu0
        %v2401 = vadd.f32 0.0, %v2400
        %v2402 = vpop.f32.mrf.mxu0
        %v2403 = vadd.f32 0.0, %v2402
        %2404 = vdwg.mxu0
        %v2405 = vmul.f32 %v2386, 0.35355338
        %v2406 = vmul.f32 %v2388, 0.35355338
        %v2407 = vmul.f32 %v2391, 0.35355338
        %v2408 = vmul.f32 %v2393, 0.35355338
        %v2409 = vmul.f32 %v2396, 0.35355338
        %v2410 = vmul.f32 %v2398, 0.35355338
        %v2411 = vmul.f32 %v2401, 0.35355338
        %v2412 = vmul.f32 %v2403, 0.35355338
        %v2413 = vadd.f32 %v2405, %v1320
        %v2414 = vadd.f32 %v2406, %v1321
        %v2415 = vadd.f32 %v2407, %v1322
        %v2416 = vadd.f32 %v2408, %v1323
        %v2417 = vadd.f32 %v2409, %v1324
        %v2418 = vadd.f32 %v2410, %v1325
        %v2419 = vadd.f32 %v2411, %v1326
        %v2420 = vadd.f32 %v2412, %v1327
        %v2421 = vsel %vm1298, %v2413, -inf
        %2422 = vmax.xlane.f32.xlu0 %v2421
        %v2423 = vpop.xlane.xlu0 %2422
        %v2424 = vsel %vm1298, %v2414, -inf
        %2425 = vmax.xlane.f32.xlu0 %v2424
        %v2426 = vpop.xlane.xlu0 %2425
        %v2427 = vsel %vm1298, %v2415, -inf
        %2428 = vmax.xlane.f32.xlu0 %v2427
        %v2429 = vpop.xlane.xlu0 %2428
        %v2430 = vsel %vm1298, %v2416, -inf
        %2431 = vmax.xlane.f32.xlu0 %v2430
        %v2432 = vpop.xlane.xlu0 %2431
        %v2433 = vsel %vm1298, %v2417, -inf
        %2434 = vmax.xlane.f32.xlu0 %v2433
        %v2435 = vpop.xlane.xlu0 %2434
        %v2436 = vsel %vm1298, %v2418, -inf
        %2437 = vmax.xlane.f32.xlu0 %v2436
        %v2438 = vpop.xlane.xlu0 %2437
        %v2439 = vsel %vm1298, %v2419, -inf
        %2440 = vmax.xlane.f32.xlu0 %v2439
        %v2441 = vpop.xlane.xlu0 %2440
        %v2442 = vsel %vm1298, %v2420, -inf
        %2443 = vmax.xlane.f32.xlu0 %v2442
        %v2444 = vpop.xlane.xlu0 %2443
        %v2445 = vsub.f32 %v2413, %v2423
        %v2446 = vsub.f32 %v2414, %v2426
        %v2447 = vsub.f32 %v2415, %v2429
        %v2448 = vsub.f32 %v2416, %v2432
        %v2449 = vsub.f32 %v2417, %v2435
        %v2450 = vsub.f32 %v2418, %v2438
        %v2451 = vsub.f32 %v2419, %v2441
        %v2452 = vsub.f32 %v2420, %v2444
        %v2453 = vmul.f32 %v2445, 1.442695
        %v2454 = vpow.pop %v2453
        %v2455 = vmul.f32 %v2446, 1.442695
        %v2456 = vpow.pop %v2455
        %v2457 = vmul.f32 %v2447, 1.442695
        %v2458 = vpow.pop %v2457
        %v2459 = vmul.f32 %v2448, 1.442695
        %v2460 = vpow.pop %v2459
        %v2461 = vmul.f32 %v2449, 1.442695
        %v2462 = vpow.pop %v2461
        %v2463 = vmul.f32 %v2450, 1.442695
        %v2464 = vpow.pop %v2463
        %v2465 = vmul.f32 %v2451, 1.442695
        %v2466 = vpow.pop %v2465
        %v2467 = vmul.f32 %v2452, 1.442695
        %v2468 = vpow.pop %v2467
        %v2469 = vsel %vm1298, %v2454, 0.0
        %2470 = vadd.xlane.f32.xlu0 %v2469
        %v2471 = vpop.xlane.xlu0 %2470
        %v2472 = vsel %vm1298, %v2456, 0.0
        %2473 = vadd.xlane.f32.xlu0 %v2472
        %v2474 = vpop.xlane.xlu0 %2473
        %v2475 = vsel %vm1298, %v2458, 0.0
        %2476 = vadd.xlane.f32.xlu0 %v2475
        %v2477 = vpop.xlane.xlu0 %2476
        %v2478 = vsel %vm1298, %v2460, 0.0
        %2479 = vadd.xlane.f32.xlu0 %v2478
        %v2480 = vpop.xlane.xlu0 %2479
        %v2481 = vsel %vm1298, %v2462, 0.0
        %2482 = vadd.xlane.f32.xlu0 %v2481
        %v2483 = vpop.xlane.xlu0 %2482
        %v2484 = vsel %vm1298, %v2464, 0.0
        %2485 = vadd.xlane.f32.xlu0 %v2484
        %v2486 = vpop.xlane.xlu0 %2485
        %v2487 = vsel %vm1298, %v2466, 0.0
        %2488 = vadd.xlane.f32.xlu0 %v2487
        %v2489 = vpop.xlane.xlu0 %2488
        %v2490 = vsel %vm1298, %v2468, 0.0
        %2491 = vadd.xlane.f32.xlu0 %v2490
        %v2492 = vpop.xlane.xlu0 %2491
        %v2493 = vrcp.pop %v2471
        %v2494 = vmul.f32 %v2471, %v2493
        %v2495 = vsub.f32 1.0, %v2494
        %v2496 = vmul.f32 %v2493, %v2495
        %v2497 = vadd.f32 %v2493, %v2496
        %vm2498 = vweird.f32 %v2471
        %vm2499 = vweird.f32 %v2493
        %vm2500 = vmor %vm2498, %vm2499
        %v2501 = vsel %vm2500, %v2493, %v2497
        %v2502 = vand.u32 2147483647, %v2471
        %vm2503 = vcmp.eq.f32.partialorder %v2502, 8.507059e+37
        %v2504 = vand.u32 %v2471, 2147483648
        %v2505 = vor.u32 1.1754944e-38, %v2504
        %v2506 = vsel %vm2503, %v2505, %v2501
        %v2507 = vmul.f32 %v2454, %v2506
        %v2508 = vrcp.pop %v2474
        %v2509 = vmul.f32 %v2474, %v2508
        %v2510 = vsub.f32 1.0, %v2509
        %v2511 = vmul.f32 %v2508, %v2510
        %v2512 = vadd.f32 %v2508, %v2511
        %vm2513 = vweird.f32 %v2474
        %vm2514 = vweird.f32 %v2508
        %vm2515 = vmor %vm2513, %vm2514
        %v2516 = vsel %vm2515, %v2508, %v2512
        %v2517 = vand.u32 2147483647, %v2474
        %vm2518 = vcmp.eq.f32.partialorder %v2517, 8.507059e+37
        %v2519 = vand.u32 %v2474, 2147483648
        %v2520 = vor.u32 1.1754944e-38, %v2519
        %v2521 = vsel %vm2518, %v2520, %v2516
        %v2522 = vmul.f32 %v2456, %v2521
        %v2523 = vrcp.pop %v2477
        %v2524 = vmul.f32 %v2477, %v2523
        %v2525 = vsub.f32 1.0, %v2524
        %v2526 = vmul.f32 %v2523, %v2525
        %v2527 = vadd.f32 %v2523, %v2526
        %vm2528 = vweird.f32 %v2477
        %vm2529 = vweird.f32 %v2523
        %vm2530 = vmor %vm2528, %vm2529
        %v2531 = vsel %vm2530, %v2523, %v2527
        %v2532 = vand.u32 2147483647, %v2477
        %vm2533 = vcmp.eq.f32.partialorder %v2532, 8.507059e+37
        %v2534 = vand.u32 %v2477, 2147483648
        %v2535 = vor.u32 1.1754944e-38, %v2534
        %v2536 = vsel %vm2533, %v2535, %v2531
        %v2537 = vmul.f32 %v2458, %v2536
        %v2538 = vrcp.pop %v2480
        %v2539 = vmul.f32 %v2480, %v2538
        %v2540 = vsub.f32 1.0, %v2539
        %v2541 = vmul.f32 %v2538, %v2540
        %v2542 = vadd.f32 %v2538, %v2541
        %vm2543 = vweird.f32 %v2480
        %vm2544 = vweird.f32 %v2538
        %vm2545 = vmor %vm2543, %vm2544
        %v2546 = vsel %vm2545, %v2538, %v2542
        %v2547 = vand.u32 2147483647, %v2480
        %vm2548 = vcmp.eq.f32.partialorder %v2547, 8.507059e+37
        %v2549 = vand.u32 %v2480, 2147483648
        %v2550 = vor.u32 1.1754944e-38, %v2549
        %v2551 = vsel %vm2548, %v2550, %v2546
        %v2552 = vmul.f32 %v2460, %v2551
        %v2553 = vrcp.pop %v2483
        %v2554 = vmul.f32 %v2483, %v2553
        %v2555 = vsub.f32 1.0, %v2554
        %v2556 = vmul.f32 %v2553, %v2555
        %v2557 = vadd.f32 %v2553, %v2556
        %vm2558 = vweird.f32 %v2483
        %vm2559 = vweird.f32 %v2553
        %vm2560 = vmor %vm2558, %vm2559
        %v2561 = vsel %vm2560, %v2553, %v2557
        %v2562 = vand.u32 2147483647, %v2483
        %vm2563 = vcmp.eq.f32.partialorder %v2562, 8.507059e+37
        %v2564 = vand.u32 %v2483, 2147483648
        %v2565 = vor.u32 1.1754944e-38, %v2564
        %v2566 = vsel %vm2563, %v2565, %v2561
        %v2567 = vmul.f32 %v2462, %v2566
        %v2568 = vrcp.pop %v2486
        %v2569 = vmul.f32 %v2486, %v2568
        %v2570 = vsub.f32 1.0, %v2569
        %v2571 = vmul.f32 %v2568, %v2570
        %v2572 = vadd.f32 %v2568, %v2571
        %vm2573 = vweird.f32 %v2486
        %vm2574 = vweird.f32 %v2568
        %vm2575 = vmor %vm2573, %vm2574
        %v2576 = vsel %vm2575, %v2568, %v2572
        %v2577 = vand.u32 2147483647, %v2486
        %vm2578 = vcmp.eq.f32.partialorder %v2577, 8.507059e+37
        %v2579 = vand.u32 %v2486, 2147483648
        %v2580 = vor.u32 1.1754944e-38, %v2579
        %v2581 = vsel %vm2578, %v2580, %v2576
        %v2582 = vmul.f32 %v2464, %v2581
        %v2583 = vrcp.pop %v2489
        %v2584 = vmul.f32 %v2489, %v2583
        %v2585 = vsub.f32 1.0, %v2584
        %v2586 = vmul.f32 %v2583, %v2585
        %v2587 = vadd.f32 %v2583, %v2586
        %vm2588 = vweird.f32 %v2489
        %vm2589 = vweird.f32 %v2583
        %vm2590 = vmor %vm2588, %vm2589
        %v2591 = vsel %vm2590, %v2583, %v2587
        %v2592 = vand.u32 2147483647, %v2489
        %vm2593 = vcmp.eq.f32.partialorder %v2592, 8.507059e+37
        %v2594 = vand.u32 %v2489, 2147483648
        %v2595 = vor.u32 1.1754944e-38, %v2594
        %v2596 = vsel %vm2593, %v2595, %v2591
        %v2597 = vmul.f32 %v2466, %v2596
        %v2598 = vrcp.pop %v2492
        %v2599 = vmul.f32 %v2492, %v2598
        %v2600 = vsub.f32 1.0, %v2599
        %v2601 = vmul.f32 %v2598, %v2600
        %v2602 = vadd.f32 %v2598, %v2601
        %vm2603 = vweird.f32 %v2492
        %vm2604 = vweird.f32 %v2598
        %vm2605 = vmor %vm2603, %vm2604
        %v2606 = vsel %vm2605, %v2598, %v2602
        %v2607 = vand.u32 2147483647, %v2492
        %vm2608 = vcmp.eq.f32.partialorder %v2607, 8.507059e+37
        %v2609 = vand.u32 %v2492, 2147483648
        %v2610 = vor.u32 1.1754944e-38, %v2609
        %v2611 = vsel %vm2608, %v2610, %v2606
        %v2612 = vmul.f32 %v2468, %v2611
        %v2613 = vpack.c.bf16 %v2522, %v2507
        %v2614 = vpack.c.bf16 %v2552, %v2537
        %v2615 = vpack.c.bf16 %v2582, %v2567
        %v2616 = vpack.c.bf16 %v2612, %v2597
        %2617 = vrot.lane.b32.xlu0 %v2336, 112
        %v2618 = vpop.permute.xlu0 %2617
        %2619 = vrot.lane.b32.xlu0 %v2337, 112
        %v2620 = vpop.permute.xlu0 %2619
        %2621 = vrot.lane.b32.xlu0 %v2338, 112
        %v2622 = vpop.permute.xlu0 %2621
        %2623 = vrot.lane.b32.xlu0 %v2339, 112
        %v2624 = vpop.permute.xlu0 %2623
        %v2630 = vsel %vm1298, %v2613, 0
        %v2633 = vsel %vm1298, %v2614, 0
        %v2636 = vsel %vm1298, %v2615, 0
        %v2639 = vsel %vm1298, %v2616, 0
        %2641 = vmatpush.bf16.msra.mxu0 0
        %2642 = vmatpush.bf16.msra.mxu0 0
        %2643 = vmatpush.bf16.msra.mxu0 0
        %2644 = vmatpush.bf16.msra.mxu0 0
        %2645 = vmatpush.bf16.msra.mxu0 %v2624
        %2646 = vmatpush.bf16.msra.mxu0 %v2622
        %2647 = vmatpush.bf16.msra.mxu0 %v2620
        %2648 = vmatpush.bf16.msra.mxu0 %v2618
        %2649 = vmatmul.bf16.gmra.mxu0 %v2630
        %v2650 = vpop.f32.mrf.mxu0
        %v2651 = vadd.f32 0.0, %v2650
        %v2652 = vpop.f32.mrf.mxu0
        %v2653 = vadd.f32 0.0, %v2652
        %2654 = vmatmul.bf16.gmra.mxu0 %v2633
        %v2655 = vpop.f32.mrf.mxu0
        %v2656 = vadd.f32 0.0, %v2655
        %v2657 = vpop.f32.mrf.mxu0
        %v2658 = vadd.f32 0.0, %v2657
        %2659 = vmatmul.bf16.gmra.mxu0 %v2636
        %v2660 = vpop.f32.mrf.mxu0
        %v2661 = vadd.f32 0.0, %v2660
        %v2662 = vpop.f32.mrf.mxu0
        %v2663 = vadd.f32 0.0, %v2662
        %2664 = vmatmul.bf16.gmra.mxu0 %v2639
        %v2665 = vpop.f32.mrf.mxu0
        %v2666 = vadd.f32 0.0, %v2665
        %v2667 = vpop.f32.mrf.mxu0
        %v2668 = vadd.f32 0.0, %v2667
        %2669 = vdwg.mxu0
        %v2670 = vld [vmem:[%s15 + $0x10] sm:$0xf]
        %v2671 = vpack.c.bf16 %v2653, %v2651
        %v2672 = vld [vmem:[%s15 + $0x14] sm:$0xf]
        %v2673 = vpack.c.bf16 %v2658, %v2656
        %v2675 = vsel %vm1542, %v2673, 0
        %v2678 = vsel %vm1868, %v2672, 0
        %2680 = vmatpush.bf16.msra.mxu0 0
        %2681 = vmatpush.bf16.msra.mxu0 0
        %2682 = vmatpush.bf16.msra.mxu0 0
        %2683 = vmatpush.bf16.msra.mxu0 0
        %2684 = vmatpush.bf16.msra.mxu0 0
        %2685 = vmatpush.bf16.msra.mxu0 0
        %2686 = vmatpush.bf16.msra.mxu0 0
        %2687 = vmatpush.bf16.msra.mxu0 %v2678
        %2688 = vmatmul.bf16.gmra.mxu0 %v2675
        %v2689 = vpop.f32.mrf.mxu0
        %v2690 = vadd.f32 0.0, %v2689
        %v2691 = vpop.f32.mrf.mxu0
        %v2692 = vadd.f32 0.0, %v2691
        %2693 = vdwg.mxu0
        %v2695 = vsel %vm1542, %v2671, 0
        %v2698 = vsel %vm1868, %v2670, 0
        %2700 = vmatpush.bf16.msra.mxu0 0
        %2701 = vmatpush.bf16.msra.mxu0 0
        %2702 = vmatpush.bf16.msra.mxu0 0
        %2703 = vmatpush.bf16.msra.mxu0 0
        %2704 = vmatpush.bf16.msra.mxu0 0
        %2705 = vmatpush.bf16.msra.mxu0 0
        %2706 = vmatpush.bf16.msra.mxu0 0
        %2707 = vmatpush.bf16.msra.mxu0 %v2698
        %2708 = vmatmul.bf16.gmra.mxu0 %v2695
        %v2709 = vpop.f32.mrf.mxu0
        %v2710 = vadd.f32 %v2690, %v2709
        %v2711 = vpop.f32.mrf.mxu0
        %v2712 = vadd.f32 %v2692, %v2711
        %2713 = vdwg.mxu0
        %v2714 = vld [vmem:[%s15 + $0x18] sm:$0xf]
        %v2715 = vpack.c.bf16 %v2663, %v2661
        %v2717 = vsel %vm1542, %v2715, 0
        %v2720 = vsel %vm1868, %v2714, 0
        %2722 = vmatpush.bf16.msra.mxu0 0
        %2723 = vmatpush.bf16.msra.mxu0 0
        %2724 = vmatpush.bf16.msra.mxu0 0
        %2725 = vmatpush.bf16.msra.mxu0 0
        %2726 = vmatpush.bf16.msra.mxu0 0
        %2727 = vmatpush.bf16.msra.mxu0 0
        %2728 = vmatpush.bf16.msra.mxu0 0
        %2729 = vmatpush.bf16.msra.mxu0 %v2720
        %2730 = vmatmul.bf16.gmra.mxu0 %v2717
        %v2731 = vpop.f32.mrf.mxu0
        %v2732 = vadd.f32 0.0, %v2731
        %v2733 = vpop.f32.mrf.mxu0
        %v2734 = vadd.f32 0.0, %v2733
        %2735 = vdwg.mxu0
        %v2736 = vadd.f32 %v2710, %v2732
        %v2737 = vadd.f32 %v2712, %v2734
        %v2738 = vld [vmem:[%s15 + $0x1c] sm:$0xf]
        %v2739 = vpack.c.bf16 %v2668, %v2666
        %v2741 = vsel %vm1542, %v2739, 0
        %v2744 = vsel %vm1868, %v2738, 0
        %2746 = vmatpush.bf16.msra.mxu0 0
        %2747 = vmatpush.bf16.msra.mxu0 0
        %2748 = vmatpush.bf16.msra.mxu0 0
        %2749 = vmatpush.bf16.msra.mxu0 0
        %2750 = vmatpush.bf16.msra.mxu0 0
        %2751 = vmatpush.bf16.msra.mxu0 0
        %2752 = vmatpush.bf16.msra.mxu0 0
        %2753 = vmatpush.bf16.msra.mxu0 %v2744
        %2754 = vmatmul.bf16.gmra.mxu0 %v2741
        %v2755 = vpop.f32.mrf.mxu0
        %v2756 = vadd.f32 0.0, %v2755
        %v2757 = vpop.f32.mrf.mxu0
        %v2758 = vadd.f32 0.0, %v2757
        %2759 = vdwg.mxu0
        %v2760 = vadd.f32 %v2736, %v2756
        %v2761 = vadd.f32 %v2737, %v2758
        %v2762 = vadd.f32 %v2144, %v2760
        %v2763 = vadd.f32 %v2145, %v2761
        %v2764 = vperm.slane %v1260, 1
        %v2765 = vadd.f32 %v2762, %v2764
        %v2766 = vadd.f32 %v2763, %v2764
        %v2767 = vsel %vm1328, %v2765, 0.0
        %2768 = vadd.xlane.f32.xlu0 %v2767
        %v2769 = vpop.xlane.xlu0 %2768
        %v2770 = vsel %vm1328, %v2766, 0.0
        %2771 = vadd.xlane.f32.xlu0 %v2770
        %v2772 = vpop.xlane.xlu0 %2771
        %v2773 = vmul.f32 %v2769, %v1341
        %v2774 = vmul.f32 %v2772, %v1341
        %v2775 = vsub.f32 %v2765, %v2773
        %v2776 = vsub.f32 %v2766, %v2774
        %v2777 = vmul.f32 %v2775, %v2775
        %v2778 = vmul.f32 %v2776, %v2776
        %v2779 = vsel %vm1328, %v2777, 0.0
        %2780 = vadd.xlane.f32.xlu0 %v2779
        %v2781 = vpop.xlane.xlu0 %2780
        %v2782 = vsel %vm1328, %v2778, 0.0
        %2783 = vadd.xlane.f32.xlu0 %v2782
        %v2784 = vpop.xlane.xlu0 %2783
        %v2785 = vmul.f32 %v2781, %v1341
        %v2786 = vmul.f32 %v2784, %v1341
        %v2787 = vadd.f32 %v2785, 1e-06
        %v2788 = vadd.f32 %v2786, 1e-06
        %v2789 = vrsqrt.pop %v2787
        %v2790 = vmul.f32 %v2789, %v2787
        %v2791 = vmul.f32 %v2790, %v2789
        %v2792 = vmul.f32 0.5, %v2791
        %v2793 = vsub.f32 1.5, %v2792
        %v2794 = vmul.f32 %v2789, %v2793
        %vm2795 = vweird.f32 %v2787
        %vm2796 = vweird.f32 %v2789
        %vm2797 = vmor %vm2795, %vm2796
        %v2798 = vsel %vm2797, %v2789, %v2794
        %v2799 = vrsqrt.pop %v2788
        %v2800 = vmul.f32 %v2799, %v2788
        %v2801 = vmul.f32 %v2800, %v2799
        %v2802 = vmul.f32 0.5, %v2801
        %v2803 = vsub.f32 1.5, %v2802
        %v2804 = vmul.f32 %v2799, %v2803
        %vm2805 = vweird.f32 %v2788
        %vm2806 = vweird.f32 %v2799
        %vm2807 = vmor %vm2805, %vm2806
        %v2808 = vsel %vm2807, %v2799, %v2804
        %v2809 = vmul.f32 %v2775, %v2798
        %v2810 = vmul.f32 %v2776, %v2808
        %v2811 = vperm.slane %v1260, 2
        %v2812 = vmul.f32 %v2809, %v2811
        %v2813 = vmul.f32 %v2810, %v2811
        %v2814 = vperm.slane %v1260, 3
        %v2815 = vadd.f32 %v2812, %v2814
        %v2816 = vadd.f32 %v2813, %v2814
        %v2817 = vld [vmem:[%s16 + $0x10] sm:$0xf]
        %v2818 = vld [vmem:[%s16 + $0x14] sm:$0xf]
        %v2819 = vld [vmem:[%s16 + $0x18] sm:$0xf]
        %v2820 = vld [vmem:[%s16 + $0x1c] sm:$0xf]
        %v2821 = vpack.c.bf16 %v2816, %v2815
        %v2822 = vperm.slane %v1260, 4
        %v2827 = vunpack.c.l.b16 %v2817
        %v2828 = vunpack.c.l.b16 %v2818
        %v2829 = vunpack.c.l.b16 %v2819
        %v2830 = vunpack.c.l.b16 %v2820
        %v2831 = vpack.c.b16 %v2828, %v2827
        %v2832 = vpack.c.b16 %v2830, %v2829
        %v2836 = vsel %vm1328, %v2821, 0
        %2838 = vmatpush.bf16.msra.mxu0 0
        %2839 = vmatpush.bf16.msra.mxu0 0
        %2840 = vmatpush.bf16.msra.mxu0 0
        %2841 = vmatpush.bf16.msra.mxu0 0
        %2842 = vmatpush.bf16.msra.mxu0 0
        %2843 = vmatpush.bf16.msra.mxu0 0
        %2844 = vmatpush.bf16.msra.mxu0 %v2832
        %2845 = vmatpush.bf16.msra.mxu0 %v2831
        %2846 = vmatmul.bf16.gmra.mxu0 %v2836
        %v2847 = vpop.f32.mrf.mxu0
        %v2848 = vadd.f32 %v2822, %v2847
        %v2849 = vpop.f32.mrf.mxu0
        %v2850 = vadd.f32 %v2822, %v2849
        %2851 = vdwg.mxu0
        %v2852 = vmul.f32 %v2848, %v2848
        %v2853 = vmul.f32 %v2850, %v2850
        %v2854 = vmul.f32 %v2848, %v2852
        %v2855 = vmul.f32 %v2850, %v2853
        %v2856 = vmul.f32 %v2854, 0.044715
        %v2857 = vmul.f32 %v2855, 0.044715
        %v2858 = vadd.f32 %v2848, %v2856
        %v2859 = vadd.f32 %v2850, %v2857
        %v2860 = vmul.f32 %v2858, 0.7978846
        %v2861 = vmul.f32 %v2859, 0.7978846
        %v2862 = vtanh.pop %v2860
        %v2863 = vtanh.pop %v2861
        %v2864 = vadd.f32 %v2862, 1.0
        %v2865 = vadd.f32 %v2863, 1.0
        %v2866 = vmul.f32 %v2864, 0.5
        %v2867 = vmul.f32 %v2865, 0.5
        %v2868 = vmul.f32 %v2848, %v2866
        %v2869 = vmul.f32 %v2850, %v2867
        %v2870 = vld [vmem:[%s17 + $0x40] sm:$0xf]
        %v2871 = vld [vmem:[%s17 + $0x44] sm:$0xf]
        %v2872 = vld [vmem:[%s17 + $0x48] sm:$0xf]
        %v2873 = vld [vmem:[%s17 + $0x4c] sm:$0xf]
        %v2874 = vld [vmem:[%s17 + $0x50] sm:$0xf]
        %v2875 = vld [vmem:[%s17 + $0x54] sm:$0xf]
        %v2876 = vld [vmem:[%s17 + $0x58] sm:$0xf]
        %v2877 = vld [vmem:[%s17 + $0x5c] sm:$0xf]
        %v2878 = vld [vmem:[%s17 + $0x60] sm:$0xf]
        %v2879 = vld [vmem:[%s17 + $0x64] sm:$0xf]
        %v2880 = vld [vmem:[%s17 + $0x68] sm:$0xf]
        %v2881 = vld [vmem:[%s17 + $0x6c] sm:$0xf]
        %v2882 = vld [vmem:[%s17 + $0x70] sm:$0xf]
        %v2883 = vld [vmem:[%s17 + $0x74] sm:$0xf]
        %v2884 = vld [vmem:[%s17 + $0x78] sm:$0xf]
        %v2885 = vld [vmem:[%s17 + $0x7c] sm:$0xf]
        %v2886 = vpack.c.bf16 %v2869, %v2868
        %v2903 = vunpack.c.l.b16 %v2870
        %v2904 = vunpack.c.l.b16 %v2871
        %v2905 = vunpack.c.l.b16 %v2872
        %v2906 = vunpack.c.l.b16 %v2873
        %v2907 = vunpack.c.l.b16 %v2874
        %v2908 = vunpack.c.l.b16 %v2875
        %v2909 = vunpack.c.l.b16 %v2876
        %v2910 = vunpack.c.l.b16 %v2877
        %v2911 = vunpack.c.l.b16 %v2878
        %v2912 = vunpack.c.l.b16 %v2879
        %v2913 = vunpack.c.l.b16 %v2880
        %v2914 = vunpack.c.l.b16 %v2881
        %v2915 = vunpack.c.l.b16 %v2882
        %v2916 = vunpack.c.l.b16 %v2883
        %v2917 = vunpack.c.l.b16 %v2884
        %v2918 = vunpack.c.l.b16 %v2885
        %v2919 = vpack.c.b16 %v2904, %v2903
        %v2920 = vpack.c.b16 %v2906, %v2905
        %v2921 = vpack.c.b16 %v2908, %v2907
        %v2922 = vpack.c.b16 %v2910, %v2909
        %v2923 = vpack.c.b16 %v2912, %v2911
        %v2924 = vpack.c.b16 %v2914, %v2913
        %v2925 = vpack.c.b16 %v2916, %v2915
        %v2926 = vpack.c.b16 %v2918, %v2917
        %2935 = vmatpush.bf16.msra.mxu0 %v2926
        %2936 = vmatpush.bf16.msra.mxu0 %v2925
        %2937 = vmatpush.bf16.msra.mxu0 %v2924
        %2938 = vmatpush.bf16.msra.mxu0 %v2923
        %2939 = vmatpush.bf16.msra.mxu0 %v2922
        %2940 = vmatpush.bf16.msra.mxu0 %v2921
        %2941 = vmatpush.bf16.msra.mxu0 %v2920
        %2942 = vmatpush.bf16.msra.mxu0 %v2919
        %2943 = vmatmul.bf16.gmra.mxu0 %v2886
        %v2944 = vpop.f32.mrf.mxu0
        %v2945 = vadd.f32 0.0, %v2944
        %v2946 = vpop.f32.mrf.mxu0
        %v2947 = vadd.f32 0.0, %v2946
        %2948 = vdwg.mxu0
        %v2949 = vadd.f32 %v2765, %v2945
        %v2950 = vadd.f32 %v2766, %v2947
        %v2951 = vperm.slane %v1260, 5
        %v2952 = vadd.f32 %v2949, %v2951
        %v2953 = vadd.f32 %v2950, %v2951
        %v2954 = vld [vmem:[%s11] sm:$0x1]
        %v2955 = vpack.c.bf16 %v2953, %v2952
        %vm2956 = vcmask 130048
        %v2958 = vsel %vm2956, %v2954, 0
        %2960 = vmatpush.bf16.msra.mxu0 0
        %2961 = vmatpush.bf16.msra.mxu0 0
        %2962 = vmatpush.bf16.msra.mxu0 0
        %2963 = vmatpush.bf16.msra.mxu0 0
        %2964 = vmatpush.bf16.msra.mxu0 0
        %2965 = vmatpush.bf16.msra.mxu0 0
        %2966 = vmatpush.bf16.msra.mxu0 0
        %2967 = vmatpush.bf16.msra.mxu0 %v2955
        %2968 = vmatmul.bf16.gmra.mxu0 %v2958
        %v2969 = vpop.f32.mrf.mxu0
        %v2970 = vadd.f32 0.0, %v2969
        %v2971 = vpop.f32.mrf.mxu0
        %2972 = vdwg.mxu0
        %vm2973 = vcmask 254976
        %v2974 = vsel %vm2973, %v2970, 0.0
        %2975 = vadd.xlane.f32.xlu0 %v2974
        %v2976 = vpop.xlane.xlu0 %2975
        %v2977 = vmul.f32 %v2976, %v1341
        %v2978 = vsub.f32 %v2970, %v2977
        %v2979 = vmul.f32 %v2978, %v2978
        %v2980 = vsel %vm2973, %v2979, 0.0
        %2981 = vadd.xlane.f32.xlu0 %v2980
        %v2982 = vpop.xlane.xlu0 %2981
        %v2983 = vmul.f32 %v2982, %v1341
        %v2984 = vadd.f32 %v2983, 1e-06
        %v2985 = vrsqrt.pop %v2984
        %v2986 = vmul.f32 %v2985, %v2984
        %v2987 = vmul.f32 %v2986, %v2985
        %v2988 = vmul.f32 0.5, %v2987
        %v2989 = vsub.f32 1.5, %v2988
        %v2990 = vmul.f32 %v2985, %v2989
        %vm2991 = vweird.f32 %v2984
        %vm2992 = vweird.f32 %v2985
        %vm2993 = vmor %vm2991, %vm2992
        %v2994 = vsel %vm2993, %v2985, %v2990
        %v2995 = vmul.f32 %v2978, %v2994
        %v2996 = vperm.slane %v1260, 7
        %v2997 = vmul.f32 %v2995, %v2996
        %v2998 = vperm.slane %v1261, 0
        %v2999 = vadd.f32 %v2997, %v2998
        %v3000 = vld [vmem:[%s18] sm:$0xf]
        %v3001 = vld [vmem:[%s18 + $0x4] sm:$0xf]
        %v3002 = vld [vmem:[%s18 + $0x8] sm:$0xf]
        %v3003 = vld [vmem:[%s18 + $0xc] sm:$0xf]
        %v3004 = vpack.c.bf16 %v2999, %v2999
        %v3005 = vperm.slane %v1261, 1
        %v3010 = vunpack.c.l.b16 %v3000
        %v3011 = vunpack.c.l.b16 %v3001
        %v3012 = vunpack.c.l.b16 %v3002
        %v3013 = vunpack.c.l.b16 %v3003
        %v3014 = vpack.c.b16 %v3011, %v3010
        %v3015 = vpack.c.b16 %v3013, %v3012
        %v3019 = vsel %vm1328, %v3004, 0
        %3021 = vmatpush.bf16.msra.mxu0 0
        %3022 = vmatpush.bf16.msra.mxu0 0
        %3023 = vmatpush.bf16.msra.mxu0 0
        %3024 = vmatpush.bf16.msra.mxu0 0
        %3025 = vmatpush.bf16.msra.mxu0 0
        %3026 = vmatpush.bf16.msra.mxu0 0
        %3027 = vmatpush.bf16.msra.mxu0 %v3015
        %3028 = vmatpush.bf16.msra.mxu0 %v3014
        %3029 = vmatmul.bf16.gmra.mxu0 %v3019
        %v3030 = vpop.f32.mrf.mxu0
        %v3031 = vadd.f32 %v3005, %v3030
        %v3032 = vpop.f32.mrf.mxu0
        %3033 = vdwg.mxu0
        %vm3034 = vcmask 517120
        %v3035 = vsel %vm3034, %v3031, 0.0
        %v3036 = vrot.slane %v3035, 4
        %v3037 = vadd.f32 %v3035, %v3036
        %v3038 = vrot.slane %v3037, 2
        %v3039 = vadd.f32 %v3037, %v3038
        %v3040 = vrot.slane %v3039, 1
        %v3041 = vadd.f32 %v3039, %v3040
        %v3042 = vrcp.pop 2.0
        %v3043 = vmul.f32 2.0, %v3042
        %v3044 = vsub.f32 1.0, %v3043
        %v3045 = vmul.f32 %v3042, %v3044
        %v3046 = vadd.f32 %v3042, %v3045
        %vm3047 = vweird.f32 %v3042
        %v3048 = vsel %vm3047, %v3042, %v3046
        %v3049 = vmul.f32 %v3041, %v3048
        %v3050 = vsub.f32 %v3031, %v3049
        %v3051 = vmul.f32 %v3050, %v3050
        %v3052 = vsel %vm3034, %v3051, 0.0
        %v3053 = vrot.slane %v3052, 4
        %v3054 = vadd.f32 %v3052, %v3053
        %v3055 = vrot.slane %v3054, 2
        %v3056 = vadd.f32 %v3054, %v3055
        %v3057 = vrot.slane %v3056, 1
        %v3058 = vadd.f32 %v3056, %v3057
        %v3059 = vmul.f32 %v3058, %v3048
        %v3060 = vadd.f32 %v3059, 1e-05
        %v3061 = vrsqrt.pop %v3060
        %v3062 = vmul.f32 %v3061, %v3060
        %v3063 = vmul.f32 %v3062, %v3061
        %v3064 = vmul.f32 0.5, %v3063
        %v3065 = vsub.f32 1.5, %v3064
        %v3066 = vmul.f32 %v3061, %v3065
        %vm3067 = vweird.f32 %v3060
        %vm3068 = vweird.f32 %v3061
        %vm3069 = vmor %vm3067, %vm3068
        %v3070 = vsel %vm3069, %v3061, %v3066
        %v3071 = vmul.f32 %v3050, %v3070
        %v3072 = vperm.slane %v1261, 2
        %v3073 = vmul.f32 %v3071, %v3072
        %v3074 = vperm.slane %v1261, 3
        %v3075 = vadd.f32 %v3073, %v3074
        %v3076 = vmax.f32 %v3075, 0.0
        %v3077 = vld [vmem:[%s19] sm:$0xf]
        %v3078 = vld [vmem:[%s19 + $0x4] sm:$0xf]
        %v3079 = vld [vmem:[%s19 + $0x8] sm:$0xf]
        %v3080 = vld [vmem:[%s19 + $0xc] sm:$0xf]
        %v3081 = vld [vmem:[%s19 + $0x10] sm:$0xf]
        %v3082 = vld [vmem:[%s19 + $0x14] sm:$0xf]
        %v3083 = vld [vmem:[%s19 + $0x18] sm:$0xf]
        %v3084 = vld [vmem:[%s19 + $0x1c] sm:$0xf]
        %v3085 = vpack.c.bf16 %v3076, %v3076
        %v3086 = vperm.slane %v1261, 4
        %v3095 = vunpack.c.l.b16 %v3077
        %v3096 = vunpack.c.l.b16 %v3078
        %v3097 = vunpack.c.l.b16 %v3079
        %v3098 = vunpack.c.l.b16 %v3080
        %v3099 = vunpack.c.l.b16 %v3081
        %v3100 = vunpack.c.l.b16 %v3082
        %v3101 = vunpack.c.l.b16 %v3083
        %v3102 = vunpack.c.l.b16 %v3084
        %v3103 = vpack.c.b16 %v3096, %v3095
        %v3104 = vpack.c.b16 %v3098, %v3097
        %v3105 = vpack.c.b16 %v3100, %v3099
        %v3106 = vpack.c.b16 %v3102, %v3101
        %v3112 = vsel %vm1298, %v3085, 0
        %3114 = vmatpush.bf16.msra.mxu0 0
        %3115 = vmatpush.bf16.msra.mxu0 0
        %3116 = vmatpush.bf16.msra.mxu0 0
        %3117 = vmatpush.bf16.msra.mxu0 0
        %3118 = vmatpush.bf16.msra.mxu0 %v3106
        %3119 = vmatpush.bf16.msra.mxu0 %v3105
        %3120 = vmatpush.bf16.msra.mxu0 %v3104
        %3121 = vmatpush.bf16.msra.mxu0 %v3103
        %3122 = vmatmul.bf16.gmra.mxu0 %v3112
        %v3123 = vpop.f32.mrf.mxu0
        %v3124 = vadd.f32 %v3086, %v3123
        %v3125 = vpop.f32.mrf.mxu0
        %3126 = vdwg.mxu0
        %3127 = vst.msk [vmem:[%s801] sm:$0x3] %vm2973, %v3124
      $region112: #{forward.1} parent=103 // pred_fallthru
        _
      %p3128 = scmp.lt.s32.totalorder %s32, 2
      %s3129 = scalar_select %p3128, %s32, 2
      %s3130 = smul.addr %s3129, 2
      %s3131 = scalar_lea.vmem %s21, %s3130
      // Predicated region
      $region113: #{forward.1} parent=103 // pred_check
        %p3132 = pneg %p536
      $region114: #{forward.1} parent=103 // pred_check_branch
        %3134 = sbr.rel (%p3132) target = $region116
      $region115: #{forward.1} parent=103 // pred_region
        _
      $region116: #{forward.1} parent=103 // pred_fallthru
        _
    $region104: #{forward.1} parent=5 // pred_fallthru
      _
    %p3135 = scmp.le.s32.totalorder 2, %s27
    // Predicated region
    $region117: #{forward.1} parent=5 // pred_check
      %p3136 = pneg %p3135
    $region118: #{forward.1} parent=5 // pred_check_branch
      %3138 = sbr.rel (%p3136) target = $region120
    $region119: #{forward.1} parent=5 // pred_region
      %s3139 = ssub.s32 %s27, 2
      // Predicated region
      $region121: #{forward.1} parent=119 // pred_check
        %p3140 = pneg %p542
      $region122: #{forward.1} parent=119 // pred_check_branch
        %3142 = sbr.rel (%p3140) target = $region124
      $region123: #{forward.1} parent=119 // pred_region
        %p3143 = scmp.lt.s32.totalorder %s33, 2
        %s3144 = scalar_select %p3143, %s33, 2
        %s3145 = smul.addr %s3144, 2
        %s3146 = scalar_lea.vmem %s21, %s3145
      $region124: #{forward.1} parent=119 // pred_fallthru
        _
    $region120: #{forward.1} parent=5 // pred_fallthru
      _
  $region6: #{forward.1} parent=0 // loop_footer
    %s31 = sadd.s32 1, %s27
  $region7: #{forward.1} parent=0 // loop_footer_branch
    %26 = sbr.rel target = $region3
  $region8: #{forward.1} parent=0 // loop_exit
    _

</llo_original>
